<compile_context>
chip_gen: v6e
topology: v6e:2x2x1
jax: 0.10.0
libtpu: 0.0.40
codegen_flags: <defaults>
</compile_context>

<pallas_src>
import math
from functools import partial

import jax
import jax.numpy as jnp
from jax.experimental import pallas as pl
from jax.experimental.pallas import tpu as pltpu

# Scoped-VMEM budget for the kernels.  64 MiB is above the v5e/v6e scoped
# defaults (16/32 MiB) and not above any generation's physical VMEM (v7x has
# 64 MiB per TensorCore).  At production ECAPA shapes the resident bf16 weight
# of the biggest 1x1 conv is ~18 MiB; shrink TM / this budget on v7x if the
# double-buffered plan gets tight.
_VMEM_LIMIT = 64 * 1024 * 1024


def _round_up(x, m):
    return (x + m - 1) // m * m


def _apply_act(x, act):
    if act == "relu":
        return jnp.maximum(x, 0.0)
    if act == "tanh":
        return jnp.tanh(x)
    if act == "sigmoid":
        return jax.nn.sigmoid(x)
    return x


def _compiler_params(sem):
    return pltpu.CompilerParams(dimension_semantics=sem,
                                vmem_limit_bytes=_VMEM_LIMIT)


# --------------------- pointwise (1x1) conv as tiled matmul ----------------
# Grid is over M = B*L tiles only; weight / bias / prologue vectors are
# grid-invariant, so Pallas fetches them once and keeps them VMEM-resident.
# NOTE: pipeline_mode=pl.Buffered(1) on the invariant blocks would halve their
# VMEM footprint; left at the default double buffer for portability.

def _mm_kernel(x_ref, w_ref, b_ref, o_ref, *, act):
    acc = jnp.dot(x_ref[...], w_ref[...], preferred_element_type=jnp.float32)
    acc = acc + b_ref[...]
    o_ref[...] = _apply_act(acc, act).astype(o_ref.dtype)


def _mm_pre_kernel(x_ref, s_ref, t_ref, w_ref, b_ref, o_ref, *, act, pre_act):
    # fused input prologue: per-channel affine (BatchNorm apply) + activation
    x = x_ref[...].astype(jnp.float32) * s_ref[...] + t_ref[...]
    x = _apply_act(x, pre_act).astype(jnp.bfloat16)
    acc = jnp.dot(x, w_ref[...], preferred_element_type=jnp.float32)
    acc = acc + b_ref[...]
    o_ref[...] = _apply_act(acc, act).astype(o_ref.dtype)


def conv1x1(x, w2d, b, act="none", pre_scale=None, pre_shift=None,
            pre_act="none", out_dtype=jnp.bfloat16):
    """Pointwise conv (B, L, C_in) @ (C_in, C_out), fused prologue/bias/act."""
    B, L, C_in = x.shape
    C_out = w2d.shape[1]
    M = B * L
    x2 = x.reshape(M, C_in).astype(jnp.bfloat16)

    # No per-call jnp.pad of the activations: a single full-M block when small,
    # otherwise a ragged cdiv grid (out-of-bounds rows dropped on writeback).
    TM = M if M <= 1024 else 512
    grid = (pl.cdiv(M, TM),)

    args = [x2]
    in_specs = [pl.BlockSpec((TM, C_in), lambda i: (i, 0))]
    if pre_scale is not None:
        args += [pre_scale.reshape(1, C_in).astype(jnp.float32),
                 pre_shift.reshape(1, C_in).astype(jnp.float32)]
        in_specs += [pl.BlockSpec((1, C_in), lambda i: (0, 0)),
                     pl.BlockSpec((1, C_in), lambda i: (0, 0))]
        kernel = partial(_mm_pre_kernel, act=act, pre_act=pre_act)
    else:
        kernel = partial(_mm_kernel, act=act)
    args += [w2d.astype(jnp.bfloat16), b.reshape(1, C_out).astype(jnp.float32)]
    in_specs += [pl.BlockSpec((C_in, C_out), lambda i: (0, 0)),
                 pl.BlockSpec((1, C_out), lambda i: (0, 0))]

    out = pl.pallas_call(
        kernel,
        out_shape=jax.ShapeDtypeStruct((M, C_out), out_dtype),
        grid=grid,
        in_specs=in_specs,
        out_specs=pl.BlockSpec((TM, C_out), lambda i: (i, 0)),
        compiler_params=_compiler_params(("parallel",)),
    )(*args)
    return out.reshape(B, L, C_out)


# --------------------- K>1 dilated conv (stacked-tap contraction) ----------

def _convk_kernel(x_ref, w_ref, b_ref, o_ref, *, K, dilation, TL, act):
    base = pl.multiple_of(pl.program_id(1) * TL, 8)
    taps = [x_ref[0, pl.ds(base + k * dilation, TL), :] for k in range(K)]
    xs = jnp.concatenate(taps, axis=-1) if K > 1 else taps[0]   # (TL, K*C_in)
    acc = jnp.dot(xs.astype(jnp.bfloat16), w_ref[...],
                  preferred_element_type=jnp.float32)
    acc = acc + b_ref[...]
    o_ref[0] = _apply_act(acc, act).astype(o_ref.dtype)


def conv_dilated(x, w, b, dilation, act="none", out_dtype=jnp.bfloat16):
    """Dilated conv, stride 1, SpeechBrain 'same' symmetric reflect padding."""
    B, L, C_in = x.shape
    K, _, C_out = w.shape
    L_valid = L - dilation * (K - 1)
    pad = (L - L_valid) // 2
    L_out = L + 2 * pad - dilation * (K - 1)
    assert pad < L, "reflect padding requires pad < sequence length"
    # TODO(synk): the whole-sequence block stays f32 because the in-kernel tap
    # slices start at unaligned (base + k*dilation) sublane offsets; packed
    # bf16 dynamic slices at odd offsets are a lowering risk.  Only the small
    # C_in layers (block0 / res2net) take this path; heavy layers are K=1.
    xf = x.astype(jnp.float32)
    xp = jnp.pad(xf, ((0, 0), (pad, pad), (0, 0)), mode="reflect") if pad else xf

    TL = min(512, _round_up(L_out, 8))
    n_lt = pl.cdiv(L_out, TL)
    L_out_pad = n_lt * TL
    extra = L_out_pad - L_out
    if extra:
        xp = jnp.pad(xp, ((0, 0), (0, extra), (0, 0)))
    L_in_pad = xp.shape[1]

    w2d = w.reshape(K * C_in, C_out).astype(jnp.bfloat16)

    out = pl.pallas_call(
        partial(_convk_kernel, K=K, dilation=dilation, TL=TL, act=act),
        out_shape=jax.ShapeDtypeStruct((B, L_out_pad, C_out), out_dtype),
        grid=(B, n_lt),
        in_specs=[
            # whole (padded) sequence per batch: index is invariant along the
            # inner li axis, so it is only DMA'd when the batch index changes.
            pl.BlockSpec((1, L_in_pad, C_in), lambda bi, li: (bi, 0, 0)),
            pl.BlockSpec((K * C_in, C_out), lambda bi, li: (0, 0)),
            pl.BlockSpec((1, C_out), lambda bi, li: (0, 0)),
        ],
        out_specs=pl.BlockSpec((1, TL, C_out), lambda bi, li: (bi, li, 0)),
        compiler_params=_compiler_params(("parallel", "parallel")),
    )(xp, w2d, b.reshape(1, C_out).astype(jnp.float32))
    return out[:, :L_out, :]


# --------------------- attentive-statistics pooling kernel -----------------
# Channel-tiled (grid = (B, C/TC)); softmax over time and weighted mean/std
# are independent per channel.  The mfa BatchNorm apply is fused in-register
# (x_norm = x_raw * scale + shift), so the normalized mfa output is never
# materialized in HBM.

def _asp_kernel(x_ref, s_ref, t_ref, a_ref, o_ref, *, eps):
    x = x_ref[0].astype(jnp.float32) * s_ref[0] + t_ref[0]    # (L, TC) normed
    a = a_ref[0].astype(jnp.float32)                          # attention logits
    a = a - jnp.max(a, axis=0, keepdims=True)                 # stable softmax
    e = jnp.exp(a)
    wgt = e / jnp.sum(e, axis=0, keepdims=True)
    mean = jnp.sum(wgt * x, axis=0, keepdims=True)                     # (1, TC)
    var = jnp.sum(wgt * (x - mean) ** 2, axis=0, keepdims=True)
    std = jnp.sqrt(jnp.maximum(var, eps))
    o_ref[0, 0:1, :] = mean.astype(o_ref.dtype)
    o_ref[0, 1:2, :] = std.astype(o_ref.dtype)


def asp_pool_pallas(x_raw, bn_scale, bn_shift, logits, eps=1e-12):
    B, L, C = x_raw.shape
    if C > 1024 and C % 1024 == 0:
        TC = 1024
    elif C > 512 and C % 512 == 0:
        TC = 512
    elif C > 256 and C % 256 == 0:
        TC = 256
    else:
        TC = C
    return pl.pallas_call(
        partial(_asp_kernel, eps=eps),
        out_shape=jax.ShapeDtypeStruct((B, 2, C), jnp.float32),
        grid=(B, C // TC),
        in_specs=[pl.BlockSpec((1, L, TC), lambda b, c: (b, 0, c)),
                  pl.BlockSpec((1, 1, TC), lambda b, c: (0, 0, c)),
                  pl.BlockSpec((1, 1, TC), lambda b, c: (0, 0, c)),
                  pl.BlockSpec((1, L, TC), lambda b, c: (b, 0, c))],
        out_specs=pl.BlockSpec((1, 2, TC), lambda b, c: (b, 0, c)),
        compiler_params=_compiler_params(("parallel", "parallel")),
    )(x_raw.astype(jnp.bfloat16),
      bn_scale.reshape(1, 1, C).astype(jnp.float32),
      bn_shift.reshape(1, 1, C).astype(jnp.float32),
      logits.astype(jnp.bfloat16))


# ----------------------------- JAX glue -------------------------------------

def batchnorm_stats(x, eps=1e-5):
    # TODO(synk): training-mode BatchNorm needs cross-batch statistics; the
    # stats reduction stays in XLA.  No affine / running stats (default init).
    xf = x.astype(jnp.float32)
    mean = jnp.mean(xf, axis=(0, 1))
    var = jnp.var(xf, axis=(0, 1))
    scale = jax.lax.rsqrt(var + eps)
    return scale, -mean * scale            # norm(x) = x * scale + shift


def batchnorm_apply(x, scale, shift, dtype=jnp.bfloat16):
    return (x.astype(jnp.float32) * scale + shift).astype(dtype)


def batchnorm_train(x, eps=1e-5):
    scale, shift = batchnorm_stats(x, eps)
    return x.astype(jnp.float32) * scale + shift


def instance_norm(x, eps=1e-5):
    # nn.InstanceNorm1d (affine=False): per (batch, channel) over time.
    mean = jnp.mean(x, axis=1, keepdims=True)
    var = jnp.var(x, axis=1, keepdims=True)
    return (x - mean) / jnp.sqrt(var + eps)


def conv_block(x, p, dilation, act):
    w = p["w"]
    if w.shape[0] == 1:
        return conv1x1(x, w[0], p["b"], act)
    return conv_dilated(x, w, p["b"], dilation, act)


def tdnn_block_raw(x, p, dilation):
    # conv -> ReLU fused in the kernel epilogue; return raw output + BN affine.
    y = conv_block(x, p, dilation, act="relu")
    scale, shift = batchnorm_stats(y)
    return y, scale, shift


def tdnn_block(x, p, dilation):
    y, scale, shift = tdnn_block_raw(x, p, dilation)
    # BN output must be materialized here (residual / chunk / SE consumers);
    # kept as a single bf16 XLA elementwise pass.
    return batchnorm_apply(y, scale, shift)


def res2net_block(x, plist, scale, dilation):
    chunks = jnp.split(x, scale, axis=-1)
    ys, yi = [], None
    for i, xi in enumerate(chunks):
        if i == 0:
            yi = xi
        elif i == 1:
            yi = tdnn_block(xi, plist[i - 1], dilation)
        else:
            yi = tdnn_block(xi + yi, plist[i - 1], dilation)
        ys.append(yi)
    return jnp.concatenate(ys, axis=-1)


def se_block(x, p1, p2):
    # (B,1,C) squeeze path: one-row-per-batch matmuls are overhead-bound in
    # Pallas, so run them as plain XLA dots (per perf guidance).
    s = jnp.mean(x.astype(jnp.float32), axis=1)               # (B, C)
    s = jnp.maximum(s @ p1["w"][0] + p1["b"], 0.0)            # (B, se)
    g = jax.nn.sigmoid(s @ p2["w"][0] + p2["b"])              # (B, C)
    return (x.astype(jnp.float32) * g[:, None, :]).astype(jnp.bfloat16)


def seres2net_block(x, p, scale, dilation):
    if p["shortcut"] is None:
        residual = x
    else:
        residual = conv1x1(x, p["shortcut"]["w"][0], p["shortcut"]["b"], "none")
    y = tdnn_block(x, p["tdnn1"], 1)
    y = res2net_block(y, p["res2net"], scale, dilation)
    y = tdnn_block(y, p["tdnn2"], 1)
    y = se_block(y, p["se1"], p["se2"])
    return y + residual


def attentive_stats_pooling(x_raw, bn_scale, bn_shift, p_tdnn, p_conv,
                            eps=1e-12):
    """ASP with the mfa BatchNorm folded in (x_norm = x_raw*scale + shift).

    lengths=None -> uniform mask, global_context=True.  The (B, L, 3C) concat
    is never materialized: the attention TDNN weight is split into three
    C-wide chunks, mean/std contribute a per-batch bias (constant over L),
    and the mfa-BN affine is folded into the x-chunk of the weight.
    """
    B, L, C = x_raw.shape
    A = p_tdnn["w"].shape[-1]
    xf = x_raw.astype(jnp.float32)
    mean_raw = jnp.mean(xf, axis=1)                                   # (B, C)
    var_raw = jnp.mean(jnp.square(xf - mean_raw[:, None, :]), axis=1)
    mean_b = mean_raw * bn_scale + bn_shift                  # stats of norm(x)
    std_b = jnp.sqrt(jnp.maximum(var_raw * jnp.square(bn_scale), eps))

    w3 = p_tdnn["w"][0]                                               # (3C, A)
    wx, wm, ws = w3[:C], w3[C:2 * C], w3[2 * C:]
    wx_f = bn_scale[:, None] * wx                  # fold mfa-BN scale into W
    bias_b = mean_b @ wm + std_b @ ws + bn_shift @ wx + p_tdnn["b"]   # (B, A)

    h = conv1x1(x_raw, wx_f, jnp.zeros((A,), jnp.float32),
                act="none", out_dtype=jnp.float32)                 # (B, L, A)
    # TODO(synk): per-batch bias + ReLU kept as one small XLA pass (A chans);
    # fusing it would need a (batch, L-tile) grid variant of the 1x1 kernel.
    h = jnp.maximum(h + bias_b[:, None, :], 0.0)
    a_scale, a_shift = batchnorm_stats(h)
    # attention-BN apply + tanh fused as the logits-conv prologue.
    logits = conv1x1(h, p_conv["w"][0], p_conv["b"], act="none",
                     pre_scale=a_scale, pre_shift=a_shift, pre_act="tanh")
    pooled = asp_pool_pallas(x_raw, bn_scale, bn_shift, logits, eps=eps)
    return pooled.reshape(B, 1, 2 * C)                          # [mean | std]


def ecapa_forward(x, params, cfg):
    """x: (B, L, n_mels) channels-last.  Returns ((B, lin_neurons), None)."""
    dil = cfg["dilations"]
    sc = cfg["res2net_scale"]

    x = jnp.log(x + 1e-6)
    x = instance_norm(x)

    xl = []
    x = tdnn_block(x, params["block0"], dil[0])
    xl.append(x)
    for i, bp in enumerate(params["se_blocks"]):
        x = seres2net_block(x, bp, sc, dil[i + 1])
        xl.append(x)

    x = jnp.concatenate(xl[1:], axis=-1)
    # mfa: keep the conv+ReLU output raw; its BN affine is folded downstream.
    y_raw, mfa_scale, mfa_shift = tdnn_block_raw(x, params["mfa"], dil[-1])

    pooled = attentive_stats_pooling(y_raw, mfa_scale, mfa_shift,
                                     params["asp_tdnn"], params["asp_conv"])
    pooled = batchnorm_train(pooled)                          # asp_bn
    # Final fc on (B, 1, 2C): one row per batch -> plain XLA dot.
    out = pooled[:, 0, :] @ params["fc"]["w"][0] + params["fc"]["b"]
    return out, None


# ----------------------------- parameter init ------------------------------

def _conv_init(key, c_in, c_out, K):
    k1, k2 = jax.random.split(key)
    scale = 1.0 / math.sqrt(c_in * K)
    w = jax.random.uniform(k1, (K, c_in, c_out), jnp.float32, -scale, scale)
    b = jax.random.uniform(k2, (c_out,), jnp.float32, -scale, scale)
    return {"w": w, "b": b}


def init_params(key, cfg):
    ch, ks = cfg["channels"], cfg["kernel_sizes"]
    sc = cfg["res2net_scale"]
    keys = iter(jax.random.split(key, 64))
    p = {"block0": _conv_init(next(keys), cfg["input_size"], ch[0], ks[0])}
    ses = []
    for i in range(1, len(ch) - 1):
        hidden = ch[i] // sc
        bp = {
            "tdnn1": _conv_init(next(keys), ch[i - 1], ch[i], 1),
            "res2net": [_conv_init(next(keys), hidden, hidden, ks[i])
                        for _ in range(sc - 1)],
            "tdnn2": _conv_init(next(keys), ch[i], ch[i], 1),
            "se1": _conv_init(next(keys), ch[i], cfg["se_channels"], 1),
            "se2": _conv_init(next(keys), cfg["se_channels"], ch[i], 1),
            "shortcut": (_conv_init(next(keys), ch[i - 1], ch[i], 1)
                         if ch[i - 1] != ch[i] else None),
        }
        ses.append(bp)
    p["se_blocks"] = ses
    p["mfa"] = _conv_init(next(keys), ch[-1], ch[-1], ks[-1])
    p["asp_tdnn"] = _conv_init(next(keys), ch[-1] * 3, cfg["attention_channels"], 1)
    p["asp_conv"] = _conv_init(next(keys), cfg["attention_channels"], ch[-1], 1)
    p["fc"] = _conv_init(next(keys), ch[-1] * 2, cfg["lin_neurons"], 1)
    return p


# ----------------------------- main -----------------------------------------

if __name__ == "__main__":
    # Small but structurally faithful config (channels[-1] == sum(channels[1:4]))
    cfg = dict(
        input_size=8,
        channels=[16, 16, 16, 16, 48],
        kernel_sizes=[5, 3, 3, 3, 1],
        dilations=[1, 2, 3, 4, 1],
        attention_channels=8,
        res2net_scale=4,
        se_channels=8,
        lin_neurons=16,
    )
    B, L = 2, 16

    key = jax.random.PRNGKey(0)
    kp, kx = jax.random.split(key)
    params = init_params(kp, cfg)

    # PyTorch input layout is (B, n_mels, L); values must be > 0 (log applied).
    x_ncl = jax.random.uniform(kx, (B, cfg["input_size"], L), jnp.float32,
                               minval=0.1, maxval=1.0)
    x = jnp.transpose(x_ncl, (0, 2, 1))  # -> (B, L, n_mels) channels-last

    fwd = jax.jit(partial(ecapa_forward, cfg=cfg))
    emb, attn = fwd(x, params)
    emb = jax.block_until_ready(emb)

    assert emb.shape == (B, cfg["lin_neurons"])
    assert attn is None
    print("KERNEL_OK")
</pallas_src>

<mosaic_0001>
module attributes {stable_mosaic.version = 11 : i64} {
  func.func @_convk_kernel(%arg0: i32, %arg1: i32, %arg2: memref<1x20x8xf32, #tpu.memory_space<vmem>>, %arg3: memref<40x16xbf16, #tpu.memory_space<vmem>>, %arg4: memref<1x16xf32, #tpu.memory_space<vmem>>, %arg5: memref<1x16x16xbf16, #tpu.memory_space<vmem>>) attributes {dimension_semantics = [#tpu.dimension_semantics<parallel>, #tpu.dimension_semantics<parallel>], iteration_bounds = array<i64: 2, 1>, scalar_prefetch = 0 : i64, scratch_operands = 0 : i64, tpu.core_type = #tpu.core_type<tc>, window_params = [{transform_indices = @transform_0, window_bounds = array<i64: 1, 20, 8>}, {pipeline_mode = #tpu.pipeline_mode<synchronous>, transform_indices = @transform_1, window_bounds = array<i64: 40, 16>}, {pipeline_mode = #tpu.pipeline_mode<synchronous>, transform_indices = @transform_2, window_bounds = array<i64: 1, 16>}, {transform_indices = @transform_3, window_bounds = array<i64: 1, 16, 16>}]} {
    %c16_i32 = arith.constant 16 : i32
    %0 = arith.muli %arg1, %c16_i32 : i32
    %1 = tpu.assume_multiple %0, 8 : i32
    %c0_i32 = arith.constant 0 : i32
    %2 = arith.addi %1, %c0_i32 : i32
    %c0 = arith.constant 0 : index
    %3 = arith.index_cast %2 : i32 to index
    %c0_0 = arith.constant 0 : index
    %4 = vector.load %arg2[%c0, %3, %c0_0] : memref<1x20x8xf32, #tpu.memory_space<vmem>>, vector<1x16x8xf32>
    %5 = vector.shape_cast %4 : vector<1x16x8xf32> to vector<16x8xf32>
    %c1_i32 = arith.constant 1 : i32
    %6 = arith.addi %1, %c1_i32 : i32
    %c0_1 = arith.constant 0 : index
    %7 = arith.index_cast %6 : i32 to index
    %c0_2 = arith.constant 0 : index
    %8 = vector.load %arg2[%c0_1, %7, %c0_2] : memref<1x20x8xf32, #tpu.memory_space<vmem>>, vector<1x16x8xf32>
    %9 = vector.shape_cast %8 : vector<1x16x8xf32> to vector<16x8xf32>
    %c2_i32 = arith.constant 2 : i32
    %10 = arith.addi %1, %c2_i32 : i32
    %c0_3 = arith.constant 0 : index
    %11 = arith.index_cast %10 : i32 to index
    %c0_4 = arith.constant 0 : index
    %12 = vector.load %arg2[%c0_3, %11, %c0_4] : memref<1x20x8xf32, #tpu.memory_space<vmem>>, vector<1x16x8xf32>
    %13 = vector.shape_cast %12 : vector<1x16x8xf32> to vector<16x8xf32>
    %c3_i32 = arith.constant 3 : i32
    %14 = arith.addi %1, %c3_i32 : i32
    %c0_5 = arith.constant 0 : index
    %15 = arith.index_cast %14 : i32 to index
    %c0_6 = arith.constant 0 : index
    %16 = vector.load %arg2[%c0_5, %15, %c0_6] : memref<1x20x8xf32, #tpu.memory_space<vmem>>, vector<1x16x8xf32>
    %17 = vector.shape_cast %16 : vector<1x16x8xf32> to vector<16x8xf32>
    %c4_i32 = arith.constant 4 : i32
    %18 = arith.addi %1, %c4_i32 : i32
    %c0_7 = arith.constant 0 : index
    %19 = arith.index_cast %18 : i32 to index
    %c0_8 = arith.constant 0 : index
    %20 = vector.load %arg2[%c0_7, %19, %c0_8] : memref<1x20x8xf32, #tpu.memory_space<vmem>>, vector<1x16x8xf32>
    %21 = vector.shape_cast %20 : vector<1x16x8xf32> to vector<16x8xf32>
    %22 = tpu.concatenate %5, %9, %13, %17, %21 in 1 : vector<16x8xf32>, vector<16x8xf32>, vector<16x8xf32>, vector<16x8xf32>, vector<16x8xf32> -> vector<16x40xf32>
    %23 = arith.truncf %22 : vector<16x40xf32> to vector<16x40xbf16>
    %c0_9 = arith.constant 0 : index
    %c0_10 = arith.constant 0 : index
    %24 = vector.load %arg3[%c0_9, %c0_10] : memref<40x16xbf16, #tpu.memory_space<vmem>>, vector<40x16xbf16>
    %cst = arith.constant dense<0.000000e+00> : vector<16x16xf32>
    %25 = tpu.matmul %23, %24, %cst {dimension_numbers = #tpu.dot_dimension_numbers<[1], [0], [0], [1], [0, 0, 1, 1], [], []>} : vector<16x40xbf16>, vector<40x16xbf16>, vector<16x16xf32> -> vector<16x16xf32>
    %c0_11 = arith.constant 0 : index
    %c0_12 = arith.constant 0 : index
    %26 = vector.load %arg4[%c0_11, %c0_12] : memref<1x16xf32, #tpu.memory_space<vmem>>, vector<1x16xf32>
    %27 = vector.broadcast %26 : vector<1x16xf32> to vector<16x16xf32>
    %28 = arith.addf %25, %27 : vector<16x16xf32>
    %cst_13 = arith.constant 0.000000e+00 : f32
    %29 = vector.broadcast %cst_13 : f32 to vector<16x16xf32>
    %30 = arith.maximumf %28, %29 : vector<16x16xf32>
    %31 = arith.truncf %30 : vector<16x16xf32> to vector<16x16xbf16>
    %c0_14 = arith.constant 0 : index
    %c0_15 = arith.constant 0 : index
    %c0_16 = arith.constant 0 : index
    %32 = vector.load %arg5[%c0_14, %c0_15, %c0_16] : memref<1x16x16xbf16, #tpu.memory_space<vmem>>, vector<1x16x16xbf16>
    %33 = vector.shape_cast %32 : vector<1x16x16xbf16> to vector<16x16xbf16>
    %34 = vector.shape_cast %31 : vector<16x16xbf16> to vector<1x16x16xbf16>
    tpu.vector_store %arg5[%c0_14, %c0_15, %c0_16], %34 {strides = array<i32>} : memref<1x16x16xbf16, #tpu.memory_space<vmem>>, vector<1x16x16xbf16>,
    return
  }
  func.func @transform_0(%arg0: i32, %arg1: i32) -> (i32, i32, i32) {
    %c0_i32 = arith.constant 0 : i32
    %c0_i32_0 = arith.constant 0 : i32
    %c0_i32_1 = arith.constant 0 : i32
    return %arg0, %c0_i32, %c0_i32_0 : i32, i32, i32
  }
  func.func @transform_1(%arg0: i32, %arg1: i32) -> (i32, i32) {
    %c0_i32 = arith.constant 0 : i32
    %c0_i32_0 = arith.constant 0 : i32
    %c0_i32_1 = arith.constant 0 : i32
    return %c0_i32, %c0_i32_0 : i32, i32
  }
  func.func @transform_2(%arg0: i32, %arg1: i32) -> (i32, i32) {
    %c0_i32 = arith.constant 0 : i32
    %c0_i32_0 = arith.constant 0 : i32
    %c0_i32_1 = arith.constant 0 : i32
    return %c0_i32, %c0_i32_0 : i32, i32
  }
  func.func @transform_3(%arg0: i32, %arg1: i32) -> (i32, i32, i32) {
    %c0_i32 = arith.constant 0 : i32
    %c0_i32_0 = arith.constant 0 : i32
    return %arg0, %arg1, %c0_i32 : i32, i32, i32
  }
}

module attributes {stable_mosaic.version = 11 : i64} {
  func.func @_mm_kernel(%arg0: i32, %arg1: memref<32x16xbf16, #tpu.memory_space<vmem>>, %arg2: memref<16x16xbf16, #tpu.memory_space<vmem>>, %arg3: memref<1x16xf32, #tpu.memory_space<vmem>>, %arg4: memref<32x16xbf16, #tpu.memory_space<vmem>>) attributes {dimension_semantics = [#tpu.dimension_semantics<parallel>], iteration_bounds = array<i64: 1>, scalar_prefetch = 0 : i64, scratch_operands = 0 : i64, tpu.core_type = #tpu.core_type<tc>, window_params = [{transform_indices = @transform_0, window_bounds = array<i64: 32, 16>}, {pipeline_mode = #tpu.pipeline_mode<synchronous>, transform_indices = @transform_1, window_bounds = array<i64: 16, 16>}, {pipeline_mode = #tpu.pipeline_mode<synchronous>, transform_indices = @transform_2, window_bounds = array<i64: 1, 16>}, {transform_indices = @transform_3, window_bounds = array<i64: 32, 16>}]} {
    %c0 = arith.constant 0 : index
    %c0_0 = arith.constant 0 : index
    %0 = vector.load %arg1[%c0, %c0_0] : memref<32x16xbf16, #tpu.memory_space<vmem>>, vector<32x16xbf16>
    %c0_1 = arith.constant 0 : index
    %c0_2 = arith.constant 0 : index
    %1 = vector.load %arg2[%c0_1, %c0_2] : memref<16x16xbf16, #tpu.memory_space<vmem>>, vector<16x16xbf16>
    %cst = arith.constant dense<0.000000e+00> : vector<32x16xf32>
    %2 = tpu.matmul %0, %1, %cst {dimension_numbers = #tpu.dot_dimension_numbers<[1], [0], [0], [1], [0, 0, 1, 1], [], []>} : vector<32x16xbf16>, vector<16x16xbf16>, vector<32x16xf32> -> vector<32x16xf32>
    %c0_3 = arith.constant 0 : index
    %c0_4 = arith.constant 0 : index
    %3 = vector.load %arg3[%c0_3, %c0_4] : memref<1x16xf32, #tpu.memory_space<vmem>>, vector<1x16xf32>
    %4 = vector.broadcast %3 : vector<1x16xf32> to vector<32x16xf32>
    %5 = arith.addf %2, %4 : vector<32x16xf32>
    %cst_5 = arith.constant 0.000000e+00 : f32
    %6 = vector.broadcast %cst_5 : f32 to vector<32x16xf32>
    %7 = arith.maximumf %5, %6 : vector<32x16xf32>
    %8 = arith.truncf %7 : vector<32x16xf32> to vector<32x16xbf16>
    %c0_6 = arith.constant 0 : index
    %c0_7 = arith.constant 0 : index
    %9 = vector.load %arg4[%c0_6, %c0_7] : memref<32x16xbf16, #tpu.memory_space<vmem>>, vector<32x16xbf16>
    tpu.vector_store %arg4[%c0_6, %c0_7], %8 {strides = array<i32>} : memref<32x16xbf16, #tpu.memory_space<vmem>>, vector<32x16xbf16>,
    return
  }
  func.func @transform_0(%arg0: i32) -> (i32, i32) {
    %c0_i32 = arith.constant 0 : i32
    %c0_i32_0 = arith.constant 0 : i32
    return %arg0, %c0_i32 : i32, i32
  }
  func.func @transform_1(%arg0: i32) -> (i32, i32) {
    %c0_i32 = arith.constant 0 : i32
    %c0_i32_0 = arith.constant 0 : i32
    %c0_i32_1 = arith.constant 0 : i32
    return %c0_i32, %c0_i32_0 : i32, i32
  }
  func.func @transform_2(%arg0: i32) -> (i32, i32) {
    %c0_i32 = arith.constant 0 : i32
    %c0_i32_0 = arith.constant 0 : i32
    %c0_i32_1 = arith.constant 0 : i32
    return %c0_i32, %c0_i32_0 : i32, i32
  }
  func.func @transform_3(%arg0: i32) -> (i32, i32) {
    %c0_i32 = arith.constant 0 : i32
    %c0_i32_0 = arith.constant 0 : i32
    return %arg0, %c0_i32 : i32, i32
  }
}

module attributes {stable_mosaic.version = 11 : i64} {
  func.func @_convk_kernel(%arg0: i32, %arg1: i32, %arg2: memref<1x20x4xf32, #tpu.memory_space<vmem>>, %arg3: memref<12x4xbf16, #tpu.memory_space<vmem>>, %arg4: memref<1x4xf32, #tpu.memory_space<vmem>>, %arg5: memref<1x16x4xbf16, #tpu.memory_space<vmem>>) attributes {dimension_semantics = [#tpu.dimension_semantics<parallel>, #tpu.dimension_semantics<parallel>], iteration_bounds = array<i64: 2, 1>, scalar_prefetch = 0 : i64, scratch_operands = 0 : i64, tpu.core_type = #tpu.core_type<tc>, window_params = [{transform_indices = @transform_0, window_bounds = array<i64: 1, 20, 4>}, {pipeline_mode = #tpu.pipeline_mode<synchronous>, transform_indices = @transform_1, window_bounds = array<i64: 12, 4>}, {pipeline_mode = #tpu.pipeline_mode<synchronous>, transform_indices = @transform_2, window_bounds = array<i64: 1, 4>}, {transform_indices = @transform_3, window_bounds = array<i64: 1, 16, 4>}]} {
    %c16_i32 = arith.constant 16 : i32
    %0 = arith.muli %arg1, %c16_i32 : i32
    %1 = tpu.assume_multiple %0, 8 : i32
    %c0_i32 = arith.constant 0 : i32
    %2 = arith.addi %1, %c0_i32 : i32
    %c0 = arith.constant 0 : index
    %3 = arith.index_cast %2 : i32 to index
    %c0_0 = arith.constant 0 : index
    %4 = vector.load %arg2[%c0, %3, %c0_0] : memref<1x20x4xf32, #tpu.memory_space<vmem>>, vector<1x16x4xf32>
    %5 = vector.shape_cast %4 : vector<1x16x4xf32> to vector<16x4xf32>
    %c2_i32 = arith.constant 2 : i32
    %6 = arith.addi %1, %c2_i32 : i32
    %c0_1 = arith.constant 0 : index
    %7 = arith.index_cast %6 : i32 to index
    %c0_2 = arith.constant 0 : index
    %8 = vector.load %arg2[%c0_1, %7, %c0_2] : memref<1x20x4xf32, #tpu.memory_space<vmem>>, vector<1x16x4xf32>
    %9 = vector.shape_cast %8 : vector<1x16x4xf32> to vector<16x4xf32>
    %c4_i32 = arith.constant 4 : i32
    %10 = arith.addi %1, %c4_i32 : i32
    %c0_3 = arith.constant 0 : index
    %11 = arith.index_cast %10 : i32 to index
    %c0_4 = arith.constant 0 : index
    %12 = vector.load %arg2[%c0_3, %11, %c0_4] : memref<1x20x4xf32, #tpu.memory_space<vmem>>, vector<1x16x4xf32>
    %13 = vector.shape_cast %12 : vector<1x16x4xf32> to vector<16x4xf32>
    %14 = tpu.concatenate %5, %9, %13 in 1 : vector<16x4xf32>, vector<16x4xf32>, vector<16x4xf32> -> vector<16x12xf32>
    %15 = arith.truncf %14 : vector<16x12xf32> to vector<16x12xbf16>
    %c0_5 = arith.constant 0 : index
    %c0_6 = arith.constant 0 : index
    %16 = vector.load %arg3[%c0_5, %c0_6] : memref<12x4xbf16, #tpu.memory_space<vmem>>, vector<12x4xbf16>
    %cst = arith.constant dense<0.000000e+00> : vector<16x4xf32>
    %17 = tpu.matmul %15, %16, %cst {dimension_numbers = #tpu.dot_dimension_numbers<[1], [0], [0], [1], [0, 0, 1, 1], [], []>} : vector<16x12xbf16>, vector<12x4xbf16>, vector<16x4xf32> -> vector<16x4xf32>
    %c0_7 = arith.constant 0 : index
    %c0_8 = arith.constant 0 : index
    %18 = vector.load %arg4[%c0_7, %c0_8] : memref<1x4xf32, #tpu.memory_space<vmem>>, vector<1x4xf32>
    %19 = vector.broadcast %18 : vector<1x4xf32> to vector<16x4xf32>
    %20 = arith.addf %17, %19 : vector<16x4xf32>
    %cst_9 = arith.constant 0.000000e+00 : f32
    %21 = vector.broadcast %cst_9 : f32 to vector<16x4xf32>
    %22 = arith.maximumf %20, %21 : vector<16x4xf32>
    %23 = arith.truncf %22 : vector<16x4xf32> to vector<16x4xbf16>
    %c0_10 = arith.constant 0 : index
    %c0_11 = arith.constant 0 : index
    %c0_12 = arith.constant 0 : index
    %24 = vector.load %arg5[%c0_10, %c0_11, %c0_12] : memref<1x16x4xbf16, #tpu.memory_space<vmem>>, vector<1x16x4xbf16>
    %25 = vector.shape_cast %24 : vector<1x16x4xbf16> to vector<16x4xbf16>
    %26 = vector.shape_cast %23 : vector<16x4xbf16> to vector<1x16x4xbf16>
    tpu.vector_store %arg5[%c0_10, %c0_11, %c0_12], %26 {strides = array<i32>} : memref<1x16x4xbf16, #tpu.memory_space<vmem>>, vector<1x16x4xbf16>,
    return
  }
  func.func @transform_0(%arg0: i32, %arg1: i32) -> (i32, i32, i32) {
    %c0_i32 = arith.constant 0 : i32
    %c0_i32_0 = arith.constant 0 : i32
    %c0_i32_1 = arith.constant 0 : i32
    return %arg0, %c0_i32, %c0_i32_0 : i32, i32, i32
  }
  func.func @transform_1(%arg0: i32, %arg1: i32) -> (i32, i32) {
    %c0_i32 = arith.constant 0 : i32
    %c0_i32_0 = arith.constant 0 : i32
    %c0_i32_1 = arith.constant 0 : i32
    return %c0_i32, %c0_i32_0 : i32, i32
  }
  func.func @transform_2(%arg0: i32, %arg1: i32) -> (i32, i32) {
    %c0_i32 = arith.constant 0 : i32
    %c0_i32_0 = arith.constant 0 : i32
    %c0_i32_1 = arith.constant 0 : i32
    return %c0_i32, %c0_i32_0 : i32, i32
  }
  func.func @transform_3(%arg0: i32, %arg1: i32) -> (i32, i32, i32) {
    %c0_i32 = arith.constant 0 : i32
    %c0_i32_0 = arith.constant 0 : i32
    return %arg0, %arg1, %c0_i32 : i32, i32, i32
  }
}

module attributes {stable_mosaic.version = 11 : i64} {
  func.func @_convk_kernel(%arg0: i32, %arg1: i32, %arg2: memref<1x22x4xf32, #tpu.memory_space<vmem>>, %arg3: memref<12x4xbf16, #tpu.memory_space<vmem>>, %arg4: memref<1x4xf32, #tpu.memory_space<vmem>>, %arg5: memref<1x16x4xbf16, #tpu.memory_space<vmem>>) attributes {dimension_semantics = [#tpu.dimension_semantics<parallel>, #tpu.dimension_semantics<parallel>], iteration_bounds = array<i64: 2, 1>, scalar_prefetch = 0 : i64, scratch_operands = 0 : i64, tpu.core_type = #tpu.core_type<tc>, window_params = [{transform_indices = @transform_0, window_bounds = array<i64: 1, 22, 4>}, {pipeline_mode = #tpu.pipeline_mode<synchronous>, transform_indices = @transform_1, window_bounds = array<i64: 12, 4>}, {pipeline_mode = #tpu.pipeline_mode<synchronous>, transform_indices = @transform_2, window_bounds = array<i64: 1, 4>}, {transform_indices = @transform_3, window_bounds = array<i64: 1, 16, 4>}]} {
    %c16_i32 = arith.constant 16 : i32
    %0 = arith.muli %arg1, %c16_i32 : i32
    %1 = tpu.assume_multiple %0, 8 : i32
    %c0_i32 = arith.constant 0 : i32
    %2 = arith.addi %1, %c0_i32 : i32
    %c0 = arith.constant 0 : index
    %3 = arith.index_cast %2 : i32 to index
    %c0_0 = arith.constant 0 : index
    %4 = vector.load %arg2[%c0, %3, %c0_0] : memref<1x22x4xf32, #tpu.memory_space<vmem>>, vector<1x16x4xf32>
    %5 = vector.shape_cast %4 : vector<1x16x4xf32> to vector<16x4xf32>
    %c3_i32 = arith.constant 3 : i32
    %6 = arith.addi %1, %c3_i32 : i32
    %c0_1 = arith.constant 0 : index
    %7 = arith.index_cast %6 : i32 to index
    %c0_2 = arith.constant 0 : index
    %8 = vector.load %arg2[%c0_1, %7, %c0_2] : memref<1x22x4xf32, #tpu.memory_space<vmem>>, vector<1x16x4xf32>
    %9 = vector.shape_cast %8 : vector<1x16x4xf32> to vector<16x4xf32>
    %c6_i32 = arith.constant 6 : i32
    %10 = arith.addi %1, %c6_i32 : i32
    %c0_3 = arith.constant 0 : index
    %11 = arith.index_cast %10 : i32 to index
    %c0_4 = arith.constant 0 : index
    %12 = vector.load %arg2[%c0_3, %11, %c0_4] : memref<1x22x4xf32, #tpu.memory_space<vmem>>, vector<1x16x4xf32>
    %13 = vector.shape_cast %12 : vector<1x16x4xf32> to vector<16x4xf32>
    %14 = tpu.concatenate %5, %9, %13 in 1 : vector<16x4xf32>, vector<16x4xf32>, vector<16x4xf32> -> vector<16x12xf32>
    %15 = arith.truncf %14 : vector<16x12xf32> to vector<16x12xbf16>
    %c0_5 = arith.constant 0 : index
    %c0_6 = arith.constant 0 : index
    %16 = vector.load %arg3[%c0_5, %c0_6] : memref<12x4xbf16, #tpu.memory_space<vmem>>, vector<12x4xbf16>
    %cst = arith.constant dense<0.000000e+00> : vector<16x4xf32>
    %17 = tpu.matmul %15, %16, %cst {dimension_numbers = #tpu.dot_dimension_numbers<[1], [0], [0], [1], [0, 0, 1, 1], [], []>} : vector<16x12xbf16>, vector<12x4xbf16>, vector<16x4xf32> -> vector<16x4xf32>
    %c0_7 = arith.constant 0 : index
    %c0_8 = arith.constant 0 : index
    %18 = vector.load %arg4[%c0_7, %c0_8] : memref<1x4xf32, #tpu.memory_space<vmem>>, vector<1x4xf32>
    %19 = vector.broadcast %18 : vector<1x4xf32> to vector<16x4xf32>
    %20 = arith.addf %17, %19 : vector<16x4xf32>
    %cst_9 = arith.constant 0.000000e+00 : f32
    %21 = vector.broadcast %cst_9 : f32 to vector<16x4xf32>
    %22 = arith.maximumf %20, %21 : vector<16x4xf32>
    %23 = arith.truncf %22 : vector<16x4xf32> to vector<16x4xbf16>
    %c0_10 = arith.constant 0 : index
    %c0_11 = arith.constant 0 : index
    %c0_12 = arith.constant 0 : index
    %24 = vector.load %arg5[%c0_10, %c0_11, %c0_12] : memref<1x16x4xbf16, #tpu.memory_space<vmem>>, vector<1x16x4xbf16>
    %25 = vector.shape_cast %24 : vector<1x16x4xbf16> to vector<16x4xbf16>
    %26 = vector.shape_cast %23 : vector<16x4xbf16> to vector<1x16x4xbf16>
    tpu.vector_store %arg5[%c0_10, %c0_11, %c0_12], %26 {strides = array<i32>} : memref<1x16x4xbf16, #tpu.memory_space<vmem>>, vector<1x16x4xbf16>,
    return
  }
  func.func @transform_0(%arg0: i32, %arg1: i32) -> (i32, i32, i32) {
    %c0_i32 = arith.constant 0 : i32
    %c0_i32_0 = arith.constant 0 : i32
    %c0_i32_1 = arith.constant 0 : i32
    return %arg0, %c0_i32, %c0_i32_0 : i32, i32, i32
  }
  func.func @transform_1(%arg0: i32, %arg1: i32) -> (i32, i32) {
    %c0_i32 = arith.constant 0 : i32
    %c0_i32_0 = arith.constant 0 : i32
    %c0_i32_1 = arith.constant 0 : i32
    return %c0_i32, %c0_i32_0 : i32, i32
  }
  func.func @transform_2(%arg0: i32, %arg1: i32) -> (i32, i32) {
    %c0_i32 = arith.constant 0 : i32
    %c0_i32_0 = arith.constant 0 : i32
    %c0_i32_1 = arith.constant 0 : i32
    return %c0_i32, %c0_i32_0 : i32, i32
  }
  func.func @transform_3(%arg0: i32, %arg1: i32) -> (i32, i32, i32) {
    %c0_i32 = arith.constant 0 : i32
    %c0_i32_0 = arith.constant 0 : i32
    return %arg0, %arg1, %c0_i32 : i32, i32, i32
  }
}

module attributes {stable_mosaic.version = 11 : i64} {
  func.func @_mm_kernel(%arg0: i32, %arg1: memref<32x48xbf16, #tpu.memory_space<vmem>>, %arg2: memref<48x48xbf16, #tpu.memory_space<vmem>>, %arg3: memref<1x48xf32, #tpu.memory_space<vmem>>, %arg4: memref<32x48xbf16, #tpu.memory_space<vmem>>) attributes {dimension_semantics = [#tpu.dimension_semantics<parallel>], iteration_bounds = array<i64: 1>, scalar_prefetch = 0 : i64, scratch_operands = 0 : i64, tpu.core_type = #tpu.core_type<tc>, window_params = [{transform_indices = @transform_0, window_bounds = array<i64: 32, 48>}, {pipeline_mode = #tpu.pipeline_mode<synchronous>, transform_indices = @transform_1, window_bounds = array<i64: 48, 48>}, {pipeline_mode = #tpu.pipeline_mode<synchronous>, transform_indices = @transform_2, window_bounds = array<i64: 1, 48>}, {transform_indices = @transform_3, window_bounds = array<i64: 32, 48>}]} {
    %c0 = arith.constant 0 : index
    %c0_0 = arith.constant 0 : index
    %0 = vector.load %arg1[%c0, %c0_0] : memref<32x48xbf16, #tpu.memory_space<vmem>>, vector<32x48xbf16>
    %c0_1 = arith.constant 0 : index
    %c0_2 = arith.constant 0 : index
    %1 = vector.load %arg2[%c0_1, %c0_2] : memref<48x48xbf16, #tpu.memory_space<vmem>>, vector<48x48xbf16>
    %cst = arith.constant dense<0.000000e+00> : vector<32x48xf32>
    %2 = tpu.matmul %0, %1, %cst {dimension_numbers = #tpu.dot_dimension_numbers<[1], [0], [0], [1], [0, 0, 1, 1], [], []>} : vector<32x48xbf16>, vector<48x48xbf16>, vector<32x48xf32> -> vector<32x48xf32>
    %c0_3 = arith.constant 0 : index
    %c0_4 = arith.constant 0 : index
    %3 = vector.load %arg3[%c0_3, %c0_4] : memref<1x48xf32, #tpu.memory_space<vmem>>, vector<1x48xf32>
    %4 = vector.broadcast %3 : vector<1x48xf32> to vector<32x48xf32>
    %5 = arith.addf %2, %4 : vector<32x48xf32>
    %cst_5 = arith.constant 0.000000e+00 : f32
    %6 = vector.broadcast %cst_5 : f32 to vector<32x48xf32>
    %7 = arith.maximumf %5, %6 : vector<32x48xf32>
    %8 = arith.truncf %7 : vector<32x48xf32> to vector<32x48xbf16>
    %c0_6 = arith.constant 0 : index
    %c0_7 = arith.constant 0 : index
    %9 = vector.load %arg4[%c0_6, %c0_7] : memref<32x48xbf16, #tpu.memory_space<vmem>>, vector<32x48xbf16>
    tpu.vector_store %arg4[%c0_6, %c0_7], %8 {strides = array<i32>} : memref<32x48xbf16, #tpu.memory_space<vmem>>, vector<32x48xbf16>,
    return
  }
  func.func @transform_0(%arg0: i32) -> (i32, i32) {
    %c0_i32 = arith.constant 0 : i32
    %c0_i32_0 = arith.constant 0 : i32
    return %arg0, %c0_i32 : i32, i32
  }
  func.func @transform_1(%arg0: i32) -> (i32, i32) {
    %c0_i32 = arith.constant 0 : i32
    %c0_i32_0 = arith.constant 0 : i32
    %c0_i32_1 = arith.constant 0 : i32
    return %c0_i32, %c0_i32_0 : i32, i32
  }
  func.func @transform_2(%arg0: i32) -> (i32, i32) {
    %c0_i32 = arith.constant 0 : i32
    %c0_i32_0 = arith.constant 0 : i32
    %c0_i32_1 = arith.constant 0 : i32
    return %c0_i32, %c0_i32_0 : i32, i32
  }
  func.func @transform_3(%arg0: i32) -> (i32, i32) {
    %c0_i32 = arith.constant 0 : i32
    %c0_i32_0 = arith.constant 0 : i32
    return %arg0, %c0_i32 : i32, i32
  }
}

module attributes {stable_mosaic.version = 11 : i64} {
  func.func @_convk_kernel(%arg0: i32, %arg1: i32, %arg2: memref<1x24x4xf32, #tpu.memory_space<vmem>>, %arg3: memref<12x4xbf16, #tpu.memory_space<vmem>>, %arg4: memref<1x4xf32, #tpu.memory_space<vmem>>, %arg5: memref<1x16x4xbf16, #tpu.memory_space<vmem>>) attributes {dimension_semantics = [#tpu.dimension_semantics<parallel>, #tpu.dimension_semantics<parallel>], iteration_bounds = array<i64: 2, 1>, scalar_prefetch = 0 : i64, scratch_operands = 0 : i64, tpu.core_type = #tpu.core_type<tc>, window_params = [{transform_indices = @transform_0, window_bounds = array<i64: 1, 24, 4>}, {pipeline_mode = #tpu.pipeline_mode<synchronous>, transform_indices = @transform_1, window_bounds = array<i64: 12, 4>}, {pipeline_mode = #tpu.pipeline_mode<synchronous>, transform_indices = @transform_2, window_bounds = array<i64: 1, 4>}, {transform_indices = @transform_3, window_bounds = array<i64: 1, 16, 4>}]} {
    %c16_i32 = arith.constant 16 : i32
    %0 = arith.muli %arg1, %c16_i32 : i32
    %1 = tpu.assume_multiple %0, 8 : i32
    %c0_i32 = arith.constant 0 : i32
    %2 = arith.addi %1, %c0_i32 : i32
    %c0 = arith.constant 0 : index
    %3 = arith.index_cast %2 : i32 to index
    %c0_0 = arith.constant 0 : index
    %4 = vector.load %arg2[%c0, %3, %c0_0] : memref<1x24x4xf32, #tpu.memory_space<vmem>>, vector<1x16x4xf32>
    %5 = vector.shape_cast %4 : vector<1x16x4xf32> to vector<16x4xf32>
    %c4_i32 = arith.constant 4 : i32
    %6 = arith.addi %1, %c4_i32 : i32
    %c0_1 = arith.constant 0 : index
    %7 = arith.index_cast %6 : i32 to index
    %c0_2 = arith.constant 0 : index
    %8 = vector.load %arg2[%c0_1, %7, %c0_2] : memref<1x24x4xf32, #tpu.memory_space<vmem>>, vector<1x16x4xf32>
    %9 = vector.shape_cast %8 : vector<1x16x4xf32> to vector<16x4xf32>
    %c8_i32 = arith.constant 8 : i32
    %10 = arith.addi %1, %c8_i32 : i32
    %c0_3 = arith.constant 0 : index
    %11 = arith.index_cast %10 : i32 to index
    %c0_4 = arith.constant 0 : index
    %12 = vector.load %arg2[%c0_3, %11, %c0_4] : memref<1x24x4xf32, #tpu.memory_space<vmem>>, vector<1x16x4xf32>
    %13 = vector.shape_cast %12 : vector<1x16x4xf32> to vector<16x4xf32>
    %14 = tpu.concatenate %5, %9, %13 in 1 : vector<16x4xf32>, vector<16x4xf32>, vector<16x4xf32> -> vector<16x12xf32>
    %15 = arith.truncf %14 : vector<16x12xf32> to vector<16x12xbf16>
    %c0_5 = arith.constant 0 : index
    %c0_6 = arith.constant 0 : index
    %16 = vector.load %arg3[%c0_5, %c0_6] : memref<12x4xbf16, #tpu.memory_space<vmem>>, vector<12x4xbf16>
    %cst = arith.constant dense<0.000000e+00> : vector<16x4xf32>
    %17 = tpu.matmul %15, %16, %cst {dimension_numbers = #tpu.dot_dimension_numbers<[1], [0], [0], [1], [0, 0, 1, 1], [], []>} : vector<16x12xbf16>, vector<12x4xbf16>, vector<16x4xf32> -> vector<16x4xf32>
    %c0_7 = arith.constant 0 : index
    %c0_8 = arith.constant 0 : index
    %18 = vector.load %arg4[%c0_7, %c0_8] : memref<1x4xf32, #tpu.memory_space<vmem>>, vector<1x4xf32>
    %19 = vector.broadcast %18 : vector<1x4xf32> to vector<16x4xf32>
    %20 = arith.addf %17, %19 : vector<16x4xf32>
    %cst_9 = arith.constant 0.000000e+00 : f32
    %21 = vector.broadcast %cst_9 : f32 to vector<16x4xf32>
    %22 = arith.maximumf %20, %21 : vector<16x4xf32>
    %23 = arith.truncf %22 : vector<16x4xf32> to vector<16x4xbf16>
    %c0_10 = arith.constant 0 : index
    %c0_11 = arith.constant 0 : index
    %c0_12 = arith.constant 0 : index
    %24 = vector.load %arg5[%c0_10, %c0_11, %c0_12] : memref<1x16x4xbf16, #tpu.memory_space<vmem>>, vector<1x16x4xbf16>
    %25 = vector.shape_cast %24 : vector<1x16x4xbf16> to vector<16x4xbf16>
    %26 = vector.shape_cast %23 : vector<16x4xbf16> to vector<1x16x4xbf16>
    tpu.vector_store %arg5[%c0_10, %c0_11, %c0_12], %26 {strides = array<i32>} : memref<1x16x4xbf16, #tpu.memory_space<vmem>>, vector<1x16x4xbf16>,
    return
  }
  func.func @transform_0(%arg0: i32, %arg1: i32) -> (i32, i32, i32) {
    %c0_i32 = arith.constant 0 : i32
    %c0_i32_0 = arith.constant 0 : i32
    %c0_i32_1 = arith.constant 0 : i32
    return %arg0, %c0_i32, %c0_i32_0 : i32, i32, i32
  }
  func.func @transform_1(%arg0: i32, %arg1: i32) -> (i32, i32) {
    %c0_i32 = arith.constant 0 : i32
    %c0_i32_0 = arith.constant 0 : i32
    %c0_i32_1 = arith.constant 0 : i32
    return %c0_i32, %c0_i32_0 : i32, i32
  }
  func.func @transform_2(%arg0: i32, %arg1: i32) -> (i32, i32) {
    %c0_i32 = arith.constant 0 : i32
    %c0_i32_0 = arith.constant 0 : i32
    %c0_i32_1 = arith.constant 0 : i32
    return %c0_i32, %c0_i32_0 : i32, i32
  }
  func.func @transform_3(%arg0: i32, %arg1: i32) -> (i32, i32, i32) {
    %c0_i32 = arith.constant 0 : i32
    %c0_i32_0 = arith.constant 0 : i32
    return %arg0, %arg1, %c0_i32 : i32, i32, i32
  }
}

module attributes {stable_mosaic.version = 11 : i64} {
  func.func @_mm_pre_kernel(%arg0: i32, %arg1: memref<32x8xbf16, #tpu.memory_space<vmem>>, %arg2: memref<1x8xf32, #tpu.memory_space<vmem>>, %arg3: memref<1x8xf32, #tpu.memory_space<vmem>>, %arg4: memref<8x48xbf16, #tpu.memory_space<vmem>>, %arg5: memref<1x48xf32, #tpu.memory_space<vmem>>, %arg6: memref<32x48xbf16, #tpu.memory_space<vmem>>) attributes {dimension_semantics = [#tpu.dimension_semantics<parallel>], iteration_bounds = array<i64: 1>, scalar_prefetch = 0 : i64, scratch_operands = 0 : i64, tpu.core_type = #tpu.core_type<tc>, window_params = [{transform_indices = @transform_0, window_bounds = array<i64: 32, 8>}, {pipeline_mode = #tpu.pipeline_mode<synchronous>, transform_indices = @transform_1, window_bounds = array<i64: 1, 8>}, {pipeline_mode = #tpu.pipeline_mode<synchronous>, transform_indices = @transform_2, window_bounds = array<i64: 1, 8>}, {pipeline_mode = #tpu.pipeline_mode<synchronous>, transform_indices = @transform_3, window_bounds = array<i64: 8, 48>}, {pipeline_mode = #tpu.pipeline_mode<synchronous>, transform_indices = @transform_4, window_bounds = array<i64: 1, 48>}, {transform_indices = @transform_5, window_bounds = array<i64: 32, 48>}]} {
    %c0 = arith.constant 0 : index
    %c0_0 = arith.constant 0 : index
    %0 = vector.load %arg1[%c0, %c0_0] : memref<32x8xbf16, #tpu.memory_space<vmem>>, vector<32x8xbf16>
    %1 = arith.extf %0 : vector<32x8xbf16> to vector<32x8xf32>
    %c0_1 = arith.constant 0 : index
    %c0_2 = arith.constant 0 : index
    %2 = vector.load %arg2[%c0_1, %c0_2] : memref<1x8xf32, #tpu.memory_space<vmem>>, vector<1x8xf32>
    %3 = vector.broadcast %2 : vector<1x8xf32> to vector<32x8xf32>
    %4 = arith.mulf %1, %3 : vector<32x8xf32>
    %c0_3 = arith.constant 0 : index
    %c0_4 = arith.constant 0 : index
    %5 = vector.load %arg3[%c0_3, %c0_4] : memref<1x8xf32, #tpu.memory_space<vmem>>, vector<1x8xf32>
    %6 = vector.broadcast %5 : vector<1x8xf32> to vector<32x8xf32>
    %7 = arith.addf %4, %6 : vector<32x8xf32>
    %8 = math.tanh %7 : vector<32x8xf32>
    %9 = arith.truncf %8 : vector<32x8xf32> to vector<32x8xbf16>
    %c0_5 = arith.constant 0 : index
    %c0_6 = arith.constant 0 : index
    %10 = vector.load %arg4[%c0_5, %c0_6] : memref<8x48xbf16, #tpu.memory_space<vmem>>, vector<8x48xbf16>
    %cst = arith.constant dense<0.000000e+00> : vector<32x48xf32>
    %11 = tpu.matmul %9, %10, %cst {dimension_numbers = #tpu.dot_dimension_numbers<[1], [0], [0], [1], [0, 0, 1, 1], [], []>} : vector<32x8xbf16>, vector<8x48xbf16>, vector<32x48xf32> -> vector<32x48xf32>
    %c0_7 = arith.constant 0 : index
    %c0_8 = arith.constant 0 : index
    %12 = vector.load %arg5[%c0_7, %c0_8] : memref<1x48xf32, #tpu.memory_space<vmem>>, vector<1x48xf32>
    %13 = vector.broadcast %12 : vector<1x48xf32> to vector<32x48xf32>
    %14 = arith.addf %11, %13 : vector<32x48xf32>
    %15 = arith.truncf %14 : vector<32x48xf32> to vector<32x48xbf16>
    %c0_9 = arith.constant 0 : index
    %c0_10 = arith.constant 0 : index
    %16 = vector.load %arg6[%c0_9, %c0_10] : memref<32x48xbf16, #tpu.memory_space<vmem>>, vector<32x48xbf16>
    tpu.vector_store %arg6[%c0_9, %c0_10], %15 {strides = array<i32>} : memref<32x48xbf16, #tpu.memory_space<vmem>>, vector<32x48xbf16>,
    return
  }
  func.func @transform_0(%arg0: i32) -> (i32, i32) {
    %c0_i32 = arith.constant 0 : i32
    %c0_i32_0 = arith.constant 0 : i32
    return %arg0, %c0_i32 : i32, i32
  }
  func.func @transform_1(%arg0: i32) -> (i32, i32) {
    %c0_i32 = arith.constant 0 : i32
    %c0_i32_0 = arith.constant 0 : i32
    %c0_i32_1 = arith.constant 0 : i32
    return %c0_i32, %c0_i32_0 : i32, i32
  }
  func.func @transform_2(%arg0: i32) -> (i32, i32) {
    %c0_i32 = arith.constant 0 : i32
    %c0_i32_0 = arith.constant 0 : i32
    %c0_i32_1 = arith.constant 0 : i32
    return %c0_i32, %c0_i32_0 : i32, i32
  }
  func.func @transform_3(%arg0: i32) -> (i32, i32) {
    %c0_i32 = arith.constant 0 : i32
    %c0_i32_0 = arith.constant 0 : i32
    %c0_i32_1 = arith.constant 0 : i32
    return %c0_i32, %c0_i32_0 : i32, i32
  }
  func.func @transform_4(%arg0: i32) -> (i32, i32) {
    %c0_i32 = arith.constant 0 : i32
    %c0_i32_0 = arith.constant 0 : i32
    %c0_i32_1 = arith.constant 0 : i32
    return %c0_i32, %c0_i32_0 : i32, i32
  }
  func.func @transform_5(%arg0: i32) -> (i32, i32) {
    %c0_i32 = arith.constant 0 : i32
    %c0_i32_0 = arith.constant 0 : i32
    return %arg0, %c0_i32 : i32, i32
  }
}

module attributes {stable_mosaic.version = 11 : i64} {
  func.func @_mm_kernel(%arg0: i32, %arg1: memref<32x48xbf16, #tpu.memory_space<vmem>>, %arg2: memref<48x8xbf16, #tpu.memory_space<vmem>>, %arg3: memref<1x8xf32, #tpu.memory_space<vmem>>, %arg4: memref<32x8xf32, #tpu.memory_space<vmem>>) attributes {dimension_semantics = [#tpu.dimension_semantics<parallel>], iteration_bounds = array<i64: 1>, scalar_prefetch = 0 : i64, scratch_operands = 0 : i64, tpu.core_type = #tpu.core_type<tc>, window_params = [{transform_indices = @transform_0, window_bounds = array<i64: 32, 48>}, {pipeline_mode = #tpu.pipeline_mode<synchronous>, transform_indices = @transform_1, window_bounds = array<i64: 48, 8>}, {pipeline_mode = #tpu.pipeline_mode<synchronous>, transform_indices = @transform_2, window_bounds = array<i64: 1, 8>}, {transform_indices = @transform_3, window_bounds = array<i64: 32, 8>}]} {
    %c0 = arith.constant 0 : index
    %c0_0 = arith.constant 0 : index
    %0 = vector.load %arg1[%c0, %c0_0] : memref<32x48xbf16, #tpu.memory_space<vmem>>, vector<32x48xbf16>
    %c0_1 = arith.constant 0 : index
    %c0_2 = arith.constant 0 : index
    %1 = vector.load %arg2[%c0_1, %c0_2] : memref<48x8xbf16, #tpu.memory_space<vmem>>, vector<48x8xbf16>
    %cst = arith.constant dense<0.000000e+00> : vector<32x8xf32>
    %2 = tpu.matmul %0, %1, %cst {dimension_numbers = #tpu.dot_dimension_numbers<[1], [0], [0], [1], [0, 0, 1, 1], [], []>} : vector<32x48xbf16>, vector<48x8xbf16>, vector<32x8xf32> -> vector<32x8xf32>
    %c0_3 = arith.constant 0 : index
    %c0_4 = arith.constant 0 : index
    %3 = vector.load %arg3[%c0_3, %c0_4] : memref<1x8xf32, #tpu.memory_space<vmem>>, vector<1x8xf32>
    %4 = vector.broadcast %3 : vector<1x8xf32> to vector<32x8xf32>
    %5 = arith.addf %2, %4 : vector<32x8xf32>
    %c0_5 = arith.constant 0 : index
    %c0_6 = arith.constant 0 : index
    %6 = vector.load %arg4[%c0_5, %c0_6] : memref<32x8xf32, #tpu.memory_space<vmem>>, vector<32x8xf32>
    tpu.vector_store %arg4[%c0_5, %c0_6], %5 {strides = array<i32>} : memref<32x8xf32, #tpu.memory_space<vmem>>, vector<32x8xf32>,
    return
  }
  func.func @transform_0(%arg0: i32) -> (i32, i32) {
    %c0_i32 = arith.constant 0 : i32
    %c0_i32_0 = arith.constant 0 : i32
    return %arg0, %c0_i32 : i32, i32
  }
  func.func @transform_1(%arg0: i32) -> (i32, i32) {
    %c0_i32 = arith.constant 0 : i32
    %c0_i32_0 = arith.constant 0 : i32
    %c0_i32_1 = arith.constant 0 : i32
    return %c0_i32, %c0_i32_0 : i32, i32
  }
  func.func @transform_2(%arg0: i32) -> (i32, i32) {
    %c0_i32 = arith.constant 0 : i32
    %c0_i32_0 = arith.constant 0 : i32
    %c0_i32_1 = arith.constant 0 : i32
    return %c0_i32, %c0_i32_0 : i32, i32
  }
  func.func @transform_3(%arg0: i32) -> (i32, i32) {
    %c0_i32 = arith.constant 0 : i32
    %c0_i32_0 = arith.constant 0 : i32
    return %arg0, %c0_i32 : i32, i32
  }
}

module attributes {stable_mosaic.version = 11 : i64} {
  func.func @_asp_kernel(%arg0: i32, %arg1: i32, %arg2: memref<1x16x48xbf16, #tpu.memory_space<vmem>>, %arg3: memref<1x1x48xf32, #tpu.memory_space<vmem>>, %arg4: memref<1x1x48xf32, #tpu.memory_space<vmem>>, %arg5: memref<1x16x48xbf16, #tpu.memory_space<vmem>>, %arg6: memref<1x2x48xf32, #tpu.memory_space<vmem>>) attributes {dimension_semantics = [#tpu.dimension_semantics<parallel>, #tpu.dimension_semantics<parallel>], iteration_bounds = array<i64: 2, 1>, scalar_prefetch = 0 : i64, scratch_operands = 0 : i64, tpu.core_type = #tpu.core_type<tc>, window_params = [{transform_indices = @transform_0, window_bounds = array<i64: 1, 16, 48>}, {transform_indices = @transform_1, window_bounds = array<i64: 1, 1, 48>}, {transform_indices = @transform_2, window_bounds = array<i64: 1, 1, 48>}, {transform_indices = @transform_3, window_bounds = array<i64: 1, 16, 48>}, {transform_indices = @transform_4, window_bounds = array<i64: 1, 2, 48>}]} {
    %c0 = arith.constant 0 : index
    %c0_0 = arith.constant 0 : index
    %c0_1 = arith.constant 0 : index
    %0 = vector.load %arg2[%c0, %c0_0, %c0_1] : memref<1x16x48xbf16, #tpu.memory_space<vmem>>, vector<1x16x48xbf16>
    %1 = vector.shape_cast %0 : vector<1x16x48xbf16> to vector<16x48xbf16>
    %2 = arith.extf %1 : vector<16x48xbf16> to vector<16x48xf32>
    %c0_2 = arith.constant 0 : index
    %c0_3 = arith.constant 0 : index
    %c0_4 = arith.constant 0 : index
    %3 = vector.load %arg3[%c0_2, %c0_3, %c0_4] : memref<1x1x48xf32, #tpu.memory_space<vmem>>, vector<1x1x48xf32>
    %4 = vector.shape_cast %3 : vector<1x1x48xf32> to vector<1x48xf32>
    %5 = vector.broadcast %4 : vector<1x48xf32> to vector<16x48xf32>
    %6 = arith.mulf %2, %5 : vector<16x48xf32>
    %c0_5 = arith.constant 0 : index
    %c0_6 = arith.constant 0 : index
    %c0_7 = arith.constant 0 : index
    %7 = vector.load %arg4[%c0_5, %c0_6, %c0_7] : memref<1x1x48xf32, #tpu.memory_space<vmem>>, vector<1x1x48xf32>
    %8 = vector.shape_cast %7 : vector<1x1x48xf32> to vector<1x48xf32>
    %9 = vector.broadcast %8 : vector<1x48xf32> to vector<16x48xf32>
    %10 = arith.addf %6, %9 : vector<16x48xf32>
    %c0_8 = arith.constant 0 : index
    %c0_9 = arith.constant 0 : index
    %c0_10 = arith.constant 0 : index
    %11 = vector.load %arg5[%c0_8, %c0_9, %c0_10] : memref<1x16x48xbf16, #tpu.memory_space<vmem>>, vector<1x16x48xbf16>
    %12 = vector.shape_cast %11 : vector<1x16x48xbf16> to vector<16x48xbf16>
    %13 = arith.extf %12 : vector<16x48xbf16> to vector<16x48xf32>
    %cst = arith.constant dense<0xFF800000> : vector<48xf32>
    %14 = vector.multi_reduction <maximumf>, %13, %cst [0] : vector<16x48xf32> to vector<48xf32>
    %15 = vector.shape_cast %14 : vector<48xf32> to vector<1x48xf32>
    %16 = vector.broadcast %15 : vector<1x48xf32> to vector<16x48xf32>
    %17 = arith.subf %13, %16 : vector<16x48xf32>
    %18 = math.exp %17 : vector<16x48xf32>
    %cst_11 = arith.constant dense<0.000000e+00> : vector<48xf32>
    %19 = vector.multi_reduction <add>, %18, %cst_11 [0] : vector<16x48xf32> to vector<48xf32>
    %20 = vector.shape_cast %19 : vector<48xf32> to vector<1x48xf32>
    %21 = vector.broadcast %20 : vector<1x48xf32> to vector<16x48xf32>
    %22 = arith.divf %18, %21 : vector<16x48xf32>
    %23 = arith.mulf %22, %10 : vector<16x48xf32>
    %cst_12 = arith.constant dense<0.000000e+00> : vector<48xf32>
    %24 = vector.multi_reduction <add>, %23, %cst_12 [0] : vector<16x48xf32> to vector<48xf32>
    %25 = vector.shape_cast %24 : vector<48xf32> to vector<1x48xf32>
    %26 = vector.broadcast %25 : vector<1x48xf32> to vector<16x48xf32>
    %27 = arith.subf %10, %26 : vector<16x48xf32>
    %28 = arith.mulf %27, %27 : vector<16x48xf32>
    %29 = arith.mulf %22, %28 : vector<16x48xf32>
    %cst_13 = arith.constant dense<0.000000e+00> : vector<48xf32>
    %30 = vector.multi_reduction <add>, %29, %cst_13 [0] : vector<16x48xf32> to vector<48xf32>
    %31 = vector.shape_cast %30 : vector<48xf32> to vector<1x48xf32>
    %cst_14 = arith.constant 9.99999996E-13 : f32
    %32 = vector.broadcast %cst_14 : f32 to vector<1x48xf32>
    %33 = arith.maximumf %31, %32 : vector<1x48xf32>
    %34 = math.sqrt %33 : vector<1x48xf32>
    %c0_15 = arith.constant 0 : index
    %c0_16 = arith.constant 0 : index
    %c0_17 = arith.constant 0 : index
    %35 = vector.load %arg6[%c0_15, %c0_16, %c0_17] : memref<1x2x48xf32, #tpu.memory_space<vmem>>, vector<1x1x48xf32>
    %36 = vector.shape_cast %35 : vector<1x1x48xf32> to vector<1x48xf32>
    %37 = vector.shape_cast %25 : vector<1x48xf32> to vector<1x1x48xf32>
    tpu.vector_store %arg6[%c0_15, %c0_16, %c0_17], %37 {strides = array<i32>} : memref<1x2x48xf32, #tpu.memory_space<vmem>>, vector<1x1x48xf32>,
    %c0_18 = arith.constant 0 : index
    %c1 = arith.constant 1 : index
    %c0_19 = arith.constant 0 : index
    %38 = vector.load %arg6[%c0_18, %c1, %c0_19] : memref<1x2x48xf32, #tpu.memory_space<vmem>>, vector<1x1x48xf32>
    %39 = vector.shape_cast %38 : vector<1x1x48xf32> to vector<1x48xf32>
    %40 = vector.shape_cast %34 : vector<1x48xf32> to vector<1x1x48xf32>
    tpu.vector_store %arg6[%c0_18, %c1, %c0_19], %40 {strides = array<i32>} : memref<1x2x48xf32, #tpu.memory_space<vmem>>, vector<1x1x48xf32>,
    return
  }
  func.func @transform_0(%arg0: i32, %arg1: i32) -> (i32, i32, i32) {
    %c0_i32 = arith.constant 0 : i32
    %c0_i32_0 = arith.constant 0 : i32
    return %arg0, %c0_i32, %arg1 : i32, i32, i32
  }
  func.func @transform_1(%arg0: i32, %arg1: i32) -> (i32, i32, i32) {
    %c0_i32 = arith.constant 0 : i32
    %c0_i32_0 = arith.constant 0 : i32
    %c0_i32_1 = arith.constant 0 : i32
    return %c0_i32, %c0_i32_0, %arg1 : i32, i32, i32
  }
  func.func @transform_2(%arg0: i32, %arg1: i32) -> (i32, i32, i32) {
    %c0_i32 = arith.constant 0 : i32
    %c0_i32_0 = arith.constant 0 : i32
    %c0_i32_1 = arith.constant 0 : i32
    return %c0_i32, %c0_i32_0, %arg1 : i32, i32, i32
  }
  func.func @transform_3(%arg0: i32, %arg1: i32) -> (i32, i32, i32) {
    %c0_i32 = arith.constant 0 : i32
    %c0_i32_0 = arith.constant 0 : i32
    return %arg0, %c0_i32, %arg1 : i32, i32, i32
  }
  func.func @transform_4(%arg0: i32, %arg1: i32) -> (i32, i32, i32) {
    %c0_i32 = arith.constant 0 : i32
    %c0_i32_0 = arith.constant 0 : i32
    return %arg0, %c0_i32, %arg1 : i32, i32, i32
  }
}

</mosaic_0001>

<llo_original>
// kernel: ecapa_forward.20
$region0: #{ecapa_forward.20}
  #allocation0 [shape = 'u32[]', space=smem, size = 0x4, offset = 0x4, fixed_abs, tag = 'smem constant byte address 0x4 - core index']
  #allocation1 [shape = 'u32[144,128]{1,0:T(1,128)}', space=vmem, size = 0x12000, scoped, tag = 'internal scratch']
  %s0 = inlined_call_operand.vmem [shape: f32[2,20,8], index: 0, kind: input, shape index: {}]
  %s1 = inlined_call_operand.vmem [shape: bf16[40,16], index: 1, kind: input, shape index: {}]
  %s2 = inlined_call_operand.vmem [shape: f32[1,16], index: 2, kind: input, shape index: {}]
  %s3 = inlined_call_operand.vmem [shape: bf16[2,16,16], index: 3, kind: output, shape index: {}]
  %s4 = sld [smem:[#allocation0]]
  $region45: #{ecapa_forward.20} parent=0
    _
  %s6 = ssub.s32 1, %s4
  %s7 = scalar_select 0, %s6, %s4
  loop: start=0, step=1, limit=4
  $region2: #{ecapa_forward.20} parent=0 // loop_pre_header
    _
  $region3: #{ecapa_forward.20} parent=0 // loop_header
    %s9 = sphi 0, %s13
    %p10 = scmp.ge.s32.totalorder %s9, 4
    %s16 = sphi 0, %s28
    %s17 = sphi 0, %s24
    %s18 = sphi 0, %s16
    %s19 = sphi 0, %s17
    %s20 = sphi 0, %s18
    %s21 = sphi 0, %s19
    %s31 = sphi 0, %s33
    %s34 = sphi 0, %s31
    %s35 = sphi 0, %s34
    %s51 = sphi 0, %s35
    %s55 = sphi 0, %s55
    %s57 = sphi 0, %s55
    %s58 = sphi 0, %s57
    %s72 = sphi 0, %s58
    %s76 = sphi 0, %s76
    %s78 = sphi 0, %s76
    %s79 = sphi 0, %s78
    %s93 = sphi 0, %s79
    %s101 = sphi 0, %s103
    %s104 = sphi 0, %s101
    %s105 = sphi 0, %s104
    %s121 = sphi 0, %s105
  $region4: #{ecapa_forward.20} parent=0 // loop_header_branch
    %12 = sbr.rel (%p10) target = $region8
  $region5: #{ecapa_forward.20} parent=0 // loop_body
    %s14 = ssub.s32 %s9, 1
    %s15 = ssub.s32 %s9, 2
    %s22 = sadd.s32 1, %s17
    %p23 = scmp.ge.s32.totalorder %s22, 1
    %s24 = scalar_select %p23, 0, %s22
    %s25 = sadd.s32 1, %s16
    %s26 = scalar_select %p23, %s25, %s16
    %p27 = scmp.ge.s32.totalorder %s26, 2
    %s28 = scalar_select %p27, 0, %s26
    %s29 = ssub.s32 %s16, %s28
    %p30 = scmp.eq.s32.totalorder %s29, 0
    %s32 = sadd.s32 %s31, 1
    %s33 = scalar_select %p30, %s31, %s32
    %p36 = pneg %p30
    %p37 = scmp.eq.s32.totalorder %s9, 1
    %p38 = por %p36, %p37
    %p39 = scmp.ne.s32.totalorder %s31, %s34
    %p40 = scmp.eq.s32.totalorder %s9, 0
    %p41 = por %p39, %p40
    %p42 = scmp.ne.s32.totalorder %s31, %s34
    %p43 = scmp.eq.s32.totalorder %s14, 1
    %p44 = por %p42, %p43
    %p45 = scmp.ne.s32.totalorder %s34, %s35
    %p46 = scmp.eq.s32.totalorder %s14, 0
    %p47 = por %p45, %p46
    %p48 = scmp.ne.s32.totalorder %s34, %s35
    %p49 = scmp.eq.s32.totalorder %s15, 1
    %p50 = por %p48, %p49
    %p52 = scmp.ne.s32.totalorder %s35, %s51
    %p53 = scmp.eq.s32.totalorder %s15, 0
    %p54 = por %p52, %p53
    %s56 = sadd.s32 %s55, 1
    %p59 = scmp.eq.s32.totalorder %s9, 1
    %p60 = scmp.ne.s32.totalorder %s55, %s57
    %p61 = scmp.eq.s32.totalorder %s9, 0
    %p62 = por %p60, %p61
    %p63 = scmp.ne.s32.totalorder %s55, %s57
    %p64 = scmp.eq.s32.totalorder %s14, 1
    %p65 = por %p63, %p64
    %p66 = scmp.ne.s32.totalorder %s57, %s58
    %p67 = scmp.eq.s32.totalorder %s14, 0
    %p68 = por %p66, %p67
    %p69 = scmp.ne.s32.totalorder %s57, %s58
    %p70 = scmp.eq.s32.totalorder %s15, 1
    %p71 = por %p69, %p70
    %p73 = scmp.ne.s32.totalorder %s58, %s72
    %p74 = scmp.eq.s32.totalorder %s15, 0
    %p75 = por %p73, %p74
    %s77 = sadd.s32 %s76, 1
    %p80 = scmp.eq.s32.totalorder %s9, 1
    %p81 = scmp.ne.s32.totalorder %s76, %s78
    %p82 = scmp.eq.s32.totalorder %s9, 0
    %p83 = por %p81, %p82
    %p84 = scmp.ne.s32.totalorder %s76, %s78
    %p85 = scmp.eq.s32.totalorder %s14, 1
    %p86 = por %p84, %p85
    %p87 = scmp.ne.s32.totalorder %s78, %s79
    %p88 = scmp.eq.s32.totalorder %s14, 0
    %p89 = por %p87, %p88
    %p90 = scmp.ne.s32.totalorder %s78, %s79
    %p91 = scmp.eq.s32.totalorder %s15, 1
    %p92 = por %p90, %p91
    %p94 = scmp.ne.s32.totalorder %s79, %s93
    %p95 = scmp.eq.s32.totalorder %s15, 0
    %p96 = por %p94, %p95
    %s97 = ssub.s32 %s16, %s28
    %s98 = ssub.s32 %s17, %s24
    %s99 = sor.u32 %s97, %s98
    %p100 = scmp.eq.s32.totalorder %s99, 0
    %s102 = sadd.s32 %s101, 1
    %s103 = scalar_select %p100, %s101, %s102
    %p106 = pneg %p100
    %p107 = scmp.eq.s32.totalorder %s9, 1
    %p108 = por %p106, %p107
    %p109 = scmp.ne.s32.totalorder %s101, %s104
    %p110 = scmp.eq.s32.totalorder %s9, 0
    %p111 = por %p109, %p110
    %p112 = scmp.ne.s32.totalorder %s101, %s104
    %p113 = scmp.eq.s32.totalorder %s14, 1
    %p114 = por %p112, %p113
    %p115 = scmp.ne.s32.totalorder %s104, %s105
    %p116 = scmp.eq.s32.totalorder %s14, 0
    %p117 = por %p115, %p116
    %p118 = scmp.ne.s32.totalorder %s104, %s105
    %p119 = scmp.eq.s32.totalorder %s15, 1
    %p120 = por %p118, %p119
    %p122 = scmp.ne.s32.totalorder %s105, %s121
    %p123 = scmp.eq.s32.totalorder %s15, 0
    %p124 = por %p122, %p123
    %p125 = scmp.le.s32.totalorder 1, %s9
    %p126 = scmp.lt.s32.totalorder %s9, 3
    %p127 = pnand %p125, %p126
    %p128 = pneg %p127
    // Predicated region
    $region9: #{ecapa_forward.20} parent=5 // pred_check
      _
    $region10: #{ecapa_forward.20} parent=5 // pred_check_branch
      %130 = sbr.rel (%p127) target = $region12
    $region11: #{ecapa_forward.20} parent=5 // pred_region
      %s131 = ssub.s32 %s9, 1
      // Predicated region
      $region13: #{ecapa_forward.20} parent=11 // pred_check
        %p132 = pneg %p68
      $region14: #{ecapa_forward.20} parent=11 // pred_check_branch
        %134 = sbr.rel (%p132) target = $region16
      $region15: #{ecapa_forward.20} parent=11 // pred_region
        _
      $region16: #{ecapa_forward.20} parent=11 // pred_fallthru
        _
      // Predicated region
      $region17: #{ecapa_forward.20} parent=11 // pred_check
        %p135 = pneg %p89
      $region18: #{ecapa_forward.20} parent=11 // pred_check_branch
        %137 = sbr.rel (%p135) target = $region20
      $region19: #{ecapa_forward.20} parent=11 // pred_region
        _
      $region20: #{ecapa_forward.20} parent=11 // pred_fallthru
        _
    $region12: #{ecapa_forward.20} parent=5 // pred_fallthru
      _
    %p138 = scmp.lt.s32.totalorder %s9, 2
    // Predicated region
    $region21: #{ecapa_forward.20} parent=5 // pred_check
      %p139 = pneg %p138
    $region22: #{ecapa_forward.20} parent=5 // pred_check_branch
      %141 = sbr.rel (%p139) target = $region24
    $region23: #{ecapa_forward.20} parent=5 // pred_region
      // Predicated region
      $region25: #{ecapa_forward.20} parent=23 // pred_check
        %p142 = pneg %p41
      $region26: #{ecapa_forward.20} parent=23 // pred_check_branch
        %144 = sbr.rel (%p142) target = $region28
      $region27: #{ecapa_forward.20} parent=23 // pred_region
        %p145 = scmp.lt.s32.totalorder %s16, 1
        %s146 = scalar_select %p145, %s16, 1
        %s147 = smul.addr %s146, 3
        %s148 = smul.addr %s147, 8
        %s149 = scalar_lea.vmem %s0, %s148
      $region28: #{ecapa_forward.20} parent=23 // pred_fallthru
        _
    $region24: #{ecapa_forward.20} parent=5 // pred_fallthru
      _
    %p150 = scmp.le.s32.totalorder 1, %s9
    %p151 = scmp.lt.s32.totalorder %s9, 3
    %p152 = pnand %p150, %p151
    %p153 = pneg %p152
    // Predicated region
    $region29: #{ecapa_forward.20} parent=5 // pred_check
      _
    $region30: #{ecapa_forward.20} parent=5 // pred_check_branch
      %155 = sbr.rel (%p152) target = $region32
    $region31: #{ecapa_forward.20} parent=5 // pred_region
      %s156 = ssub.s32 %s9, 1
      %p157 = scmp.lt.s32.totalorder %s18, 1
      %s158 = scalar_select %p157, %s18, 1
      %s159 = smul.addr %s158, 3
      %s160 = smul.addr %s159, 8
      %s161 = scalar_lea.vmem %s0, %s160
      %p162 = pneg %p47
      %p163 = pneg %p44
      %p164 = pneg %p68
      %p165 = pneg %p65
      %p166 = pneg %p89
      %p167 = pneg %p86
      %p168 = pneg %p117
      %p169 = pneg %p114
      %s170 = smul.u32 2, %s19
      %p171 = scmp.lt.s32.totalorder %s18, 1
      %s172 = scalar_select %p171, %s18, 1
      %p173 = scmp.lt.s32.totalorder %s170, 1
      %s174 = scalar_select %p173, %s170, 1
      %s175 = smul.addr %s172, 2
      %s176 = sadd.s32 %s174, %s175
      %s177 = smul.addr %s176, 4
      %s178 = scalar_lea.vmem %s3, %s177
      %p179 = scmp.lt.s32.totalorder %s18, 1
      %s180 = scalar_select %p179, %s18, 1
      %s181 = smul.addr %s180, 3
      %s182 = smul.addr %s181, 8
      %s183 = scalar_lea.vmem %s0, %s182
      %s184 = smul.u32 2, %s19
      %p185 = scmp.lt.s32.totalorder %s18, 1
      %s186 = scalar_select %p185, %s18, 1
      %p187 = scmp.lt.s32.totalorder %s184, 1
      %s188 = scalar_select %p187, %s184, 1
      %s189 = smul.addr %s186, 2
      %s190 = sadd.s32 %s188, %s189
      %s191 = smul.addr %s190, 4
      %s192 = scalar_lea.vmem %s3, %s191
      %s193 = smul.u32 2, %s19
      %s195 = smul.u32 %s19, 16
      %s196 = scalar_lea.vmem %s183, %s195
      %v197 = vld [vmem:[%s196] sm:$0xff]
      %v198 = vld [vmem:[%s196 + $0x8] sm:$0xff]
      %s199 = sadd.s32 %s195, 1
      %s200 = scalar_lea.vmem %s183, %s199
      %v201 = vld [vmem:[%s200] sm:$0xff]
      %v202 = vld [vmem:[%s200 + $0x8] sm:$0xff]
      %s203 = sadd.s32 %s195, 2
      %s204 = scalar_lea.vmem %s183, %s203
      %v205 = vld [vmem:[%s204] sm:$0xff]
      %v206 = vld [vmem:[%s204 + $0x8] sm:$0xff]
      %s207 = sadd.s32 %s195, 3
      %s208 = scalar_lea.vmem %s183, %s207
      %v209 = vld [vmem:[%s208] sm:$0xff]
      %v210 = vld [vmem:[%s208 + $0x8] sm:$0xff]
      %s211 = sadd.s32 %s195, 4
      %s212 = scalar_lea.vmem %s183, %s211
      %v213 = vld [vmem:[%s212] sm:$0xff]
      %v214 = vld [vmem:[%s212 + $0x8] sm:$0xff]
      %217 = vrot.lane.b32.xlu0 %v201, 8
      %v218 = vpop.permute.xlu0 %217
      %219 = vrot.lane.b32.xlu0 %v202, 8
      %v220 = vpop.permute.xlu0 %219
      %225 = vrot.lane.b32.xlu0 %v205, 16
      %v226 = vpop.permute.xlu0 %225
      %227 = vrot.lane.b32.xlu0 %v206, 16
      %v228 = vpop.permute.xlu0 %227
      %233 = vrot.lane.b32.xlu0 %v209, 24
      %v234 = vpop.permute.xlu0 %233
      %235 = vrot.lane.b32.xlu0 %v210, 24
      %v236 = vpop.permute.xlu0 %235
      %241 = vrot.lane.b32.xlu0 %v213, 32
      %v242 = vpop.permute.xlu0 %241
      %243 = vrot.lane.b32.xlu0 %v214, 32
      %v244 = vpop.permute.xlu0 %243
      %vm247 = vcmask 64512
      %v248 = vsel %vm247, %v197, %v218
      %v249 = vsel %vm247, %v198, %v220
      %vm250 = vcmask 130048
      %v251 = vsel %vm250, %v248, %v226
      %v252 = vsel %vm250, %v249, %v228
      %vm253 = vcmask 195584
      %v254 = vsel %vm253, %v251, %v234
      %v255 = vsel %vm253, %v252, %v236
      %vm256 = vcmask 261120
      %v257 = vsel %vm256, %v254, %v242
      %v258 = vsel %vm256, %v255, %v244
      %v259 = vpack.c.bf16 %v258, %v257
      %v260 = vld [vmem:[%s1] sm:$0xf]
      %v261 = vld [vmem:[%s1 + $0x4] sm:$0xf]
      %v262 = vld [vmem:[%s1 + $0x8] sm:$0xf]
      %v263 = vld [vmem:[%s1 + $0xc] sm:$0xf]
      %v264 = vld [vmem:[%s1 + $0x10] sm:$0xf]
      %v265 = vld [vmem:[%s2] sm:$0x1]
      %v267 = vlaneseq
      %v268 = vshrl.u32 %v267, 7
      %v269 = vsub.s32 0, %v268
      %v270 = vrot.slane %v265, %v269
      %v277 = vunpack.c.l.b16 %v260
      %v278 = vunpack.c.l.b16 %v261
      %v279 = vunpack.c.l.b16 %v262
      %v280 = vunpack.c.l.b16 %v263
      %v281 = vunpack.c.l.b16 %v264
      %v282 = vpack.c.b16 %v278, %v277
      %v283 = vpack.c.b16 %v280, %v279
      %v284 = vpack.c.b16 %v281, %v281
      %vm287 = vcmask 326656
      %v289 = vsel %vm287, %v259, 0
      %vm291 = vcmask 1043456
      %v293 = vsel %vm291, %v284, 0
      %295 = vmatprep.subr.bf16.mxu0 0
      %296 = vmatpush1.bf16.msra.mxu0 0
      %297 = vmatprep.subr.bf16.mxu0 0
      %298 = vmatpush1.bf16.msra.mxu0 0
      %299 = vmatprep.subr.bf16.mxu0 0
      %300 = vmatpush1.bf16.msra.mxu0 0
      %301 = vmatprep.subr.bf16.mxu0 0
      %302 = vmatpush1.bf16.msra.mxu0 0
      %303 = vmatprep.subr.bf16.mxu0 0
      %304 = vmatpush1.bf16.msra.mxu0 0
      %305 = vmatprep.subr.bf16.mxu0 0
      %306 = vmatpush1.bf16.msra.mxu0 %v293
      %307 = vmatprep.subr.bf16.mxu0 0
      %308 = vmatpush1.bf16.msra.mxu0 %v283
      %309 = vmatprep.subr.bf16.mxu0 0
      %310 = vmatpush1.bf16.msra.mxu0 %v282
      %311 = vmatprep.subr.bf16.mxu0 0
      %312 = vmatpush2.bf16.msra.mxu0 0
      %313 = vmatprep.subr.bf16.mxu0 0
      %314 = vmatpush2.bf16.msra.mxu0 0
      %315 = vmatprep.subr.bf16.mxu0 0
      %316 = vmatpush2.bf16.msra.mxu0 0
      %317 = vmatprep.subr.bf16.mxu0 0
      %318 = vmatpush2.bf16.msra.mxu0 0
      %319 = vmatprep.subr.bf16.mxu0 0
      %320 = vmatpush2.bf16.msra.mxu0 0
      %321 = vmatprep.subr.bf16.mxu0 0
      %322 = vmatpush2.bf16.msra.mxu0 0
      %323 = vmatprep.subr.bf16.mxu0 0
      %324 = vmatpush2.bf16.msra.mxu0 0
      %325 = vmatprep.subr.bf16.mxu0 0
      %326 = vmatpush2.bf16.msra.mxu0 0
      %327 = vmatprep.mubr.bf16.mxu0 0
      %328 = vmatmul.mubr.bf16.gmra.mxu0 %v289
      %v329 = vpop.f32.mrf.mxu0
      %v330 = vadd.f32 %v270, %v329
      %v331 = vpop.f32.mrf.mxu0
      %v332 = vpop.f32.mrf.mxu0
      %v333 = vadd.f32 %v270, %v332
      %v334 = vpop.f32.mrf.mxu0
      %335 = vdwg.mxu0
      %v336 = vmax.f32 %v330, 0.0
      %v337 = vmax.f32 %v333, 0.0
      %v338 = vpack.c.bf16 %v337, %v336
      %v340 = vunpack.c.l.b16 %v338
      %v341 = vunpack.c.h.b16 %v338
      %v342 = vpack.c.b16 %v340, %v340
      %v343 = vpack.c.b16 %v341, %v341
      %vm346 = vcmask 125952
      %347 = vst.msk [vmem:[%s192] sm:$0xf] %vm346, %v342
      %348 = vst.msk [vmem:[%s192 + $0x4] sm:$0xf] %vm346, %v343
      %s349 = smul.u32 2, %s19
      %p350 = scmp.lt.s32.totalorder %s18, 1
      %s351 = scalar_select %p350, %s18, 1
      %p352 = scmp.lt.s32.totalorder %s349, 1
      %s353 = scalar_select %p352, %s349, 1
      %s354 = smul.addr %s351, 2
      %s355 = sadd.s32 %s353, %s354
      %s356 = smul.addr %s355, 4
      %s357 = scalar_lea.vmem %s3, %s356
      // Predicated region
      $region33: #{ecapa_forward.20} parent=31 // pred_check
        %p358 = pneg %p114
      $region34: #{ecapa_forward.20} parent=31 // pred_check_branch
        %360 = sbr.rel (%p358) target = $region36
      $region35: #{ecapa_forward.20} parent=31 // pred_region
        %s361 = smul.u32 2, %s19
      $region36: #{ecapa_forward.20} parent=31 // pred_fallthru
        _
    $region32: #{ecapa_forward.20} parent=5 // pred_fallthru
      _
    %p362 = scmp.le.s32.totalorder 2, %s9
    // Predicated region
    $region37: #{ecapa_forward.20} parent=5 // pred_check
      %p363 = pneg %p362
    $region38: #{ecapa_forward.20} parent=5 // pred_check_branch
      %365 = sbr.rel (%p363) target = $region40
    $region39: #{ecapa_forward.20} parent=5 // pred_region
      %s366 = ssub.s32 %s9, 2
      // Predicated region
      $region41: #{ecapa_forward.20} parent=39 // pred_check
        %p367 = pneg %p120
      $region42: #{ecapa_forward.20} parent=39 // pred_check_branch
        %369 = sbr.rel (%p367) target = $region44
      $region43: #{ecapa_forward.20} parent=39 // pred_region
        %s370 = smul.u32 2, %s21
        %p371 = scmp.lt.s32.totalorder %s20, 1
        %s372 = scalar_select %p371, %s20, 1
        %p373 = scmp.lt.s32.totalorder %s370, 1
        %s374 = scalar_select %p373, %s370, 1
        %s375 = smul.addr %s372, 2
        %s376 = sadd.s32 %s374, %s375
        %s377 = smul.addr %s376, 4
        %s378 = scalar_lea.vmem %s3, %s377
      $region44: #{ecapa_forward.20} parent=39 // pred_fallthru
        _
    $region40: #{ecapa_forward.20} parent=5 // pred_fallthru
      _
  $region6: #{ecapa_forward.20} parent=0 // loop_footer
    %s13 = sadd.s32 1, %s9
  $region7: #{ecapa_forward.20} parent=0 // loop_footer_branch
    %8 = sbr.rel target = $region3
  $region8: #{ecapa_forward.20} parent=0 // loop_exit
    _

// kernel: ecapa_forward.21
$region0: #{ecapa_forward.21}
  #allocation0 [shape = 'u32[]', space=smem, size = 0x4, offset = 0x4, fixed_abs, tag = 'smem constant byte address 0x4 - core index']
  #allocation1 [shape = 'u32[144,128]{1,0:T(1,128)}', space=vmem, size = 0x12000, scoped, tag = 'internal scratch']
  %s0 = inlined_call_operand.vmem [shape: bf16[32,16], index: 0, kind: input, shape index: {}]
  %s1 = inlined_call_operand.vmem [shape: bf16[16,16], index: 1, kind: input, shape index: {}]
  %s2 = inlined_call_operand.vmem [shape: f32[1,16], index: 2, kind: input, shape index: {}]
  %s3 = inlined_call_operand.vmem [shape: bf16[32,16], index: 3, kind: output, shape index: {}]
  %s4 = sld [smem:[#allocation0]]
  $region22: #{ecapa_forward.21} parent=0
    _
  %s6 = ssub.s32 1, %s4
  %s7 = scalar_select 0, %s6, %s4
  // Predicated region
  $region2: #{ecapa_forward.21} parent=0 // pred_check
    _
  $region3: #{ecapa_forward.21} parent=0 // pred_check_branch
    %9 = sbr.rel (0) target = $region5
  $region4: #{ecapa_forward.21} parent=0 // pred_region
    _
  $region5: #{ecapa_forward.21} parent=0 // pred_fallthru
    _
  // Predicated region
  $region6: #{ecapa_forward.21} parent=0 // pred_check
    _
  $region7: #{ecapa_forward.21} parent=0 // pred_check_branch
    %11 = sbr.rel (0) target = $region9
  $region8: #{ecapa_forward.21} parent=0 // pred_region
    _
  $region9: #{ecapa_forward.21} parent=0 // pred_fallthru
    _
  // Predicated region
  $region10: #{ecapa_forward.21} parent=0 // pred_check
    _
  $region11: #{ecapa_forward.21} parent=0 // pred_check_branch
    %13 = sbr.rel (0) target = $region13
  $region12: #{ecapa_forward.21} parent=0 // pred_region
    _
  $region13: #{ecapa_forward.21} parent=0 // pred_fallthru
    _
  %v15 = vld [vmem:[%s0] sm:$0xf]
  %v16 = vld [vmem:[%s0 + $0x4] sm:$0xf]
  %v17 = vld [vmem:[%s0 + $0x8] sm:$0xf]
  %v18 = vld [vmem:[%s0 + $0xc] sm:$0xf]
  %v19 = vld [vmem:[%s1] sm:$0xf]
  %v20 = vld [vmem:[%s1 + $0x4] sm:$0xf]
  %v21 = vld [vmem:[%s2] sm:$0x1]
  %v23 = vlaneseq
  %v24 = vshrl.u32 %v23, 7
  %v25 = vsub.s32 0, %v24
  %v26 = vrot.slane %v21, %v25
  %v32 = vunpack.c.l.b16 %v15
  %v33 = vunpack.c.l.b16 %v16
  %v34 = vunpack.c.l.b16 %v17
  %v35 = vunpack.c.l.b16 %v18
  %v36 = vpack.c.b16 %v33, %v32
  %v37 = vpack.c.b16 %v35, %v34
  %v40 = vunpack.c.l.b16 %v19
  %v41 = vunpack.c.l.b16 %v20
  %v42 = vpack.c.b16 %v41, %v40
  %vm44 = vcmask 130048
  %v46 = vsel %vm44, %v36, 0
  %v49 = vsel %vm44, %v37, 0
  %51 = vmatprep.subr.bf16.mxu0 0
  %52 = vmatpush1.bf16.msra.mxu0 0
  %53 = vmatprep.subr.bf16.mxu0 0
  %54 = vmatpush1.bf16.msra.mxu0 0
  %55 = vmatprep.subr.bf16.mxu0 0
  %56 = vmatpush1.bf16.msra.mxu0 0
  %57 = vmatprep.subr.bf16.mxu0 0
  %58 = vmatpush1.bf16.msra.mxu0 0
  %59 = vmatprep.subr.bf16.mxu0 0
  %60 = vmatpush1.bf16.msra.mxu0 0
  %61 = vmatprep.subr.bf16.mxu0 0
  %62 = vmatpush1.bf16.msra.mxu0 0
  %63 = vmatprep.subr.bf16.mxu0 0
  %64 = vmatpush1.bf16.msra.mxu0 0
  %65 = vmatprep.subr.bf16.mxu0 0
  %66 = vmatpush1.bf16.msra.mxu0 %v42
  %67 = vmatprep.subr.bf16.mxu0 0
  %68 = vmatpush2.bf16.msra.mxu0 0
  %69 = vmatprep.subr.bf16.mxu0 0
  %70 = vmatpush2.bf16.msra.mxu0 0
  %71 = vmatprep.subr.bf16.mxu0 0
  %72 = vmatpush2.bf16.msra.mxu0 0
  %73 = vmatprep.subr.bf16.mxu0 0
  %74 = vmatpush2.bf16.msra.mxu0 0
  %75 = vmatprep.subr.bf16.mxu0 0
  %76 = vmatpush2.bf16.msra.mxu0 0
  %77 = vmatprep.subr.bf16.mxu0 0
  %78 = vmatpush2.bf16.msra.mxu0 0
  %79 = vmatprep.subr.bf16.mxu0 0
  %80 = vmatpush2.bf16.msra.mxu0 0
  %81 = vmatprep.subr.bf16.mxu0 0
  %82 = vmatpush2.bf16.msra.mxu0 0
  %83 = vmatprep.mubr.bf16.mxu0 0
  %84 = vmatmul.mubr.bf16.gmra.mxu0 %v46
  %v85 = vpop.f32.mrf.mxu0
  %v86 = vadd.f32 %v26, %v85
  %v87 = vpop.f32.mrf.mxu0
  %v88 = vpop.f32.mrf.mxu0
  %v89 = vadd.f32 %v26, %v88
  %v90 = vpop.f32.mrf.mxu0
  %91 = vmatprep.mubr.bf16.mxu0 0
  %92 = vmatmul.mubr.bf16.gmra.mxu0 %v49
  %v93 = vpop.f32.mrf.mxu0
  %v94 = vadd.f32 %v26, %v93
  %v95 = vpop.f32.mrf.mxu0
  %v96 = vpop.f32.mrf.mxu0
  %v97 = vadd.f32 %v26, %v96
  %v98 = vpop.f32.mrf.mxu0
  %99 = vdwg.mxu0
  %v100 = vmax.f32 %v86, 0.0
  %v101 = vmax.f32 %v89, 0.0
  %v102 = vmax.f32 %v94, 0.0
  %v103 = vmax.f32 %v97, 0.0
  %v104 = vpack.c.bf16 %v101, %v100
  %v105 = vpack.c.bf16 %v103, %v102
  %v108 = vunpack.c.l.b16 %v104
  %v109 = vunpack.c.h.b16 %v104
  %v110 = vunpack.c.l.b16 %v105
  %v111 = vunpack.c.h.b16 %v105
  %v112 = vpack.c.b16 %v108, %v108
  %v113 = vpack.c.b16 %v109, %v109
  %v114 = vpack.c.b16 %v110, %v110
  %v115 = vpack.c.b16 %v111, %v111
  %vm120 = vcmask 125952
  %121 = vst.msk [vmem:[%s3] sm:$0xf] %vm120, %v112
  %122 = vst.msk [vmem:[%s3 + $0x4] sm:$0xf] %vm120, %v113
  %123 = vst.msk [vmem:[%s3 + $0x8] sm:$0xf] %vm120, %v114
  %124 = vst.msk [vmem:[%s3 + $0xc] sm:$0xf] %vm120, %v115
  // Predicated region
  $region14: #{ecapa_forward.21} parent=0 // pred_check
    _
  $region15: #{ecapa_forward.21} parent=0 // pred_check_branch
    %126 = sbr.rel (0) target = $region17
  $region16: #{ecapa_forward.21} parent=0 // pred_region
    _
  $region17: #{ecapa_forward.21} parent=0 // pred_fallthru
    _
  // Predicated region
  $region18: #{ecapa_forward.21} parent=0 // pred_check
    _
  $region19: #{ecapa_forward.21} parent=0 // pred_check_branch
    %128 = sbr.rel (0) target = $region21
  $region20: #{ecapa_forward.21} parent=0 // pred_region
    _
  $region21: #{ecapa_forward.21} parent=0 // pred_fallthru
    _

// kernel: ecapa_forward.22
$region0: #{ecapa_forward.22}
  #allocation0 [shape = 'u32[]', space=smem, size = 0x4, offset = 0x4, fixed_abs, tag = 'smem constant byte address 0x4 - core index']
  #allocation1 [shape = 'u32[144,128]{1,0:T(1,128)}', space=vmem, size = 0x12000, scoped, tag = 'internal scratch']
  %s0 = inlined_call_operand.vmem [shape: f32[2,20,4], index: 0, kind: input, shape index: {}]
  %s1 = inlined_call_operand.vmem [shape: bf16[12,4], index: 1, kind: input, shape index: {}]
  %s2 = inlined_call_operand.vmem [shape: f32[1,4], index: 2, kind: input, shape index: {}]
  %s3 = inlined_call_operand.vmem [shape: bf16[2,16,4], index: 3, kind: output, shape index: {}]
  %s4 = sld [smem:[#allocation0]]
  $region45: #{ecapa_forward.22} parent=0
    _
  %s6 = ssub.s32 1, %s4
  %s7 = scalar_select 0, %s6, %s4
  loop: start=0, step=1, limit=4
  $region2: #{ecapa_forward.22} parent=0 // loop_pre_header
    _
  $region3: #{ecapa_forward.22} parent=0 // loop_header
    %s9 = sphi 0, %s13
    %p10 = scmp.ge.s32.totalorder %s9, 4
    %s16 = sphi 0, %s28
    %s17 = sphi 0, %s24
    %s18 = sphi 0, %s16
    %s19 = sphi 0, %s17
    %s20 = sphi 0, %s18
    %s21 = sphi 0, %s19
    %s31 = sphi 0, %s33
    %s34 = sphi 0, %s31
    %s35 = sphi 0, %s34
    %s51 = sphi 0, %s35
    %s55 = sphi 0, %s55
    %s57 = sphi 0, %s55
    %s58 = sphi 0, %s57
    %s72 = sphi 0, %s58
    %s76 = sphi 0, %s76
    %s78 = sphi 0, %s76
    %s79 = sphi 0, %s78
    %s93 = sphi 0, %s79
    %s101 = sphi 0, %s103
    %s104 = sphi 0, %s101
    %s105 = sphi 0, %s104
    %s121 = sphi 0, %s105
  $region4: #{ecapa_forward.22} parent=0 // loop_header_branch
    %12 = sbr.rel (%p10) target = $region8
  $region5: #{ecapa_forward.22} parent=0 // loop_body
    %s14 = ssub.s32 %s9, 1
    %s15 = ssub.s32 %s9, 2
    %s22 = sadd.s32 1, %s17
    %p23 = scmp.ge.s32.totalorder %s22, 1
    %s24 = scalar_select %p23, 0, %s22
    %s25 = sadd.s32 1, %s16
    %s26 = scalar_select %p23, %s25, %s16
    %p27 = scmp.ge.s32.totalorder %s26, 2
    %s28 = scalar_select %p27, 0, %s26
    %s29 = ssub.s32 %s16, %s28
    %p30 = scmp.eq.s32.totalorder %s29, 0
    %s32 = sadd.s32 %s31, 1
    %s33 = scalar_select %p30, %s31, %s32
    %p36 = pneg %p30
    %p37 = scmp.eq.s32.totalorder %s9, 1
    %p38 = por %p36, %p37
    %p39 = scmp.ne.s32.totalorder %s31, %s34
    %p40 = scmp.eq.s32.totalorder %s9, 0
    %p41 = por %p39, %p40
    %p42 = scmp.ne.s32.totalorder %s31, %s34
    %p43 = scmp.eq.s32.totalorder %s14, 1
    %p44 = por %p42, %p43
    %p45 = scmp.ne.s32.totalorder %s34, %s35
    %p46 = scmp.eq.s32.totalorder %s14, 0
    %p47 = por %p45, %p46
    %p48 = scmp.ne.s32.totalorder %s34, %s35
    %p49 = scmp.eq.s32.totalorder %s15, 1
    %p50 = por %p48, %p49
    %p52 = scmp.ne.s32.totalorder %s35, %s51
    %p53 = scmp.eq.s32.totalorder %s15, 0
    %p54 = por %p52, %p53
    %s56 = sadd.s32 %s55, 1
    %p59 = scmp.eq.s32.totalorder %s9, 1
    %p60 = scmp.ne.s32.totalorder %s55, %s57
    %p61 = scmp.eq.s32.totalorder %s9, 0
    %p62 = por %p60, %p61
    %p63 = scmp.ne.s32.totalorder %s55, %s57
    %p64 = scmp.eq.s32.totalorder %s14, 1
    %p65 = por %p63, %p64
    %p66 = scmp.ne.s32.totalorder %s57, %s58
    %p67 = scmp.eq.s32.totalorder %s14, 0
    %p68 = por %p66, %p67
    %p69 = scmp.ne.s32.totalorder %s57, %s58
    %p70 = scmp.eq.s32.totalorder %s15, 1
    %p71 = por %p69, %p70
    %p73 = scmp.ne.s32.totalorder %s58, %s72
    %p74 = scmp.eq.s32.totalorder %s15, 0
    %p75 = por %p73, %p74
    %s77 = sadd.s32 %s76, 1
    %p80 = scmp.eq.s32.totalorder %s9, 1
    %p81 = scmp.ne.s32.totalorder %s76, %s78
    %p82 = scmp.eq.s32.totalorder %s9, 0
    %p83 = por %p81, %p82
    %p84 = scmp.ne.s32.totalorder %s76, %s78
    %p85 = scmp.eq.s32.totalorder %s14, 1
    %p86 = por %p84, %p85
    %p87 = scmp.ne.s32.totalorder %s78, %s79
    %p88 = scmp.eq.s32.totalorder %s14, 0
    %p89 = por %p87, %p88
    %p90 = scmp.ne.s32.totalorder %s78, %s79
    %p91 = scmp.eq.s32.totalorder %s15, 1
    %p92 = por %p90, %p91
    %p94 = scmp.ne.s32.totalorder %s79, %s93
    %p95 = scmp.eq.s32.totalorder %s15, 0
    %p96 = por %p94, %p95
    %s97 = ssub.s32 %s16, %s28
    %s98 = ssub.s32 %s17, %s24
    %s99 = sor.u32 %s97, %s98
    %p100 = scmp.eq.s32.totalorder %s99, 0
    %s102 = sadd.s32 %s101, 1
    %s103 = scalar_select %p100, %s101, %s102
    %p106 = pneg %p100
    %p107 = scmp.eq.s32.totalorder %s9, 1
    %p108 = por %p106, %p107
    %p109 = scmp.ne.s32.totalorder %s101, %s104
    %p110 = scmp.eq.s32.totalorder %s9, 0
    %p111 = por %p109, %p110
    %p112 = scmp.ne.s32.totalorder %s101, %s104
    %p113 = scmp.eq.s32.totalorder %s14, 1
    %p114 = por %p112, %p113
    %p115 = scmp.ne.s32.totalorder %s104, %s105
    %p116 = scmp.eq.s32.totalorder %s14, 0
    %p117 = por %p115, %p116
    %p118 = scmp.ne.s32.totalorder %s104, %s105
    %p119 = scmp.eq.s32.totalorder %s15, 1
    %p120 = por %p118, %p119
    %p122 = scmp.ne.s32.totalorder %s105, %s121
    %p123 = scmp.eq.s32.totalorder %s15, 0
    %p124 = por %p122, %p123
    %p125 = scmp.le.s32.totalorder 1, %s9
    %p126 = scmp.lt.s32.totalorder %s9, 3
    %p127 = pnand %p125, %p126
    %p128 = pneg %p127
    // Predicated region
    $region9: #{ecapa_forward.22} parent=5 // pred_check
      _
    $region10: #{ecapa_forward.22} parent=5 // pred_check_branch
      %130 = sbr.rel (%p127) target = $region12
    $region11: #{ecapa_forward.22} parent=5 // pred_region
      %s131 = ssub.s32 %s9, 1
      // Predicated region
      $region13: #{ecapa_forward.22} parent=11 // pred_check
        %p132 = pneg %p68
      $region14: #{ecapa_forward.22} parent=11 // pred_check_branch
        %134 = sbr.rel (%p132) target = $region16
      $region15: #{ecapa_forward.22} parent=11 // pred_region
        _
      $region16: #{ecapa_forward.22} parent=11 // pred_fallthru
        _
      // Predicated region
      $region17: #{ecapa_forward.22} parent=11 // pred_check
        %p135 = pneg %p89
      $region18: #{ecapa_forward.22} parent=11 // pred_check_branch
        %137 = sbr.rel (%p135) target = $region20
      $region19: #{ecapa_forward.22} parent=11 // pred_region
        _
      $region20: #{ecapa_forward.22} parent=11 // pred_fallthru
        _
    $region12: #{ecapa_forward.22} parent=5 // pred_fallthru
      _
    %p138 = scmp.lt.s32.totalorder %s9, 2
    // Predicated region
    $region21: #{ecapa_forward.22} parent=5 // pred_check
      %p139 = pneg %p138
    $region22: #{ecapa_forward.22} parent=5 // pred_check_branch
      %141 = sbr.rel (%p139) target = $region24
    $region23: #{ecapa_forward.22} parent=5 // pred_region
      // Predicated region
      $region25: #{ecapa_forward.22} parent=23 // pred_check
        %p142 = pneg %p41
      $region26: #{ecapa_forward.22} parent=23 // pred_check_branch
        %144 = sbr.rel (%p142) target = $region28
      $region27: #{ecapa_forward.22} parent=23 // pred_region
        %p145 = scmp.lt.s32.totalorder %s16, 1
        %s146 = scalar_select %p145, %s16, 1
        %s147 = smul.addr %s146, 3
        %s148 = smul.addr %s147, 8
        %s149 = scalar_lea.vmem %s0, %s148
      $region28: #{ecapa_forward.22} parent=23 // pred_fallthru
        _
    $region24: #{ecapa_forward.22} parent=5 // pred_fallthru
      _
    %p150 = scmp.le.s32.totalorder 1, %s9
    %p151 = scmp.lt.s32.totalorder %s9, 3
    %p152 = pnand %p150, %p151
    %p153 = pneg %p152
    // Predicated region
    $region29: #{ecapa_forward.22} parent=5 // pred_check
      _
    $region30: #{ecapa_forward.22} parent=5 // pred_check_branch
      %155 = sbr.rel (%p152) target = $region32
    $region31: #{ecapa_forward.22} parent=5 // pred_region
      %s156 = ssub.s32 %s9, 1
      %p157 = scmp.lt.s32.totalorder %s18, 1
      %s158 = scalar_select %p157, %s18, 1
      %s159 = smul.addr %s158, 3
      %s160 = smul.addr %s159, 8
      %s161 = scalar_lea.vmem %s0, %s160
      %p162 = pneg %p47
      %p163 = pneg %p44
      %p164 = pneg %p68
      %p165 = pneg %p65
      %p166 = pneg %p89
      %p167 = pneg %p86
      %p168 = pneg %p117
      %p169 = pneg %p114
      %s170 = smul.u32 2, %s19
      %p171 = scmp.lt.s32.totalorder %s18, 1
      %s172 = scalar_select %p171, %s18, 1
      %p173 = scmp.lt.s32.totalorder %s170, 1
      %s174 = scalar_select %p173, %s170, 1
      %s175 = smul.addr %s172, 2
      %s176 = sadd.s32 %s174, %s175
      %s177 = smul.addr %s176, 4
      %s178 = scalar_lea.vmem %s3, %s177
      %p179 = scmp.lt.s32.totalorder %s18, 1
      %s180 = scalar_select %p179, %s18, 1
      %s181 = smul.addr %s180, 3
      %s182 = smul.addr %s181, 8
      %s183 = scalar_lea.vmem %s0, %s182
      %s184 = smul.u32 2, %s19
      %p185 = scmp.lt.s32.totalorder %s18, 1
      %s186 = scalar_select %p185, %s18, 1
      %p187 = scmp.lt.s32.totalorder %s184, 1
      %s188 = scalar_select %p187, %s184, 1
      %s189 = smul.addr %s186, 2
      %s190 = sadd.s32 %s188, %s189
      %s191 = smul.addr %s190, 4
      %s192 = scalar_lea.vmem %s3, %s191
      %s193 = smul.u32 2, %s19
      %s195 = smul.u32 %s19, 16
      %s196 = scalar_lea.vmem %s183, %s195
      %v197 = vld [vmem:[%s196] sm:$0xff]
      %v198 = vld [vmem:[%s196 + $0x8] sm:$0xff]
      %s199 = sadd.s32 %s195, 2
      %s200 = scalar_lea.vmem %s183, %s199
      %v201 = vld [vmem:[%s200] sm:$0xff]
      %v202 = vld [vmem:[%s200 + $0x8] sm:$0xff]
      %s203 = sadd.s32 %s195, 4
      %s204 = scalar_lea.vmem %s183, %s203
      %v205 = vld [vmem:[%s204] sm:$0xff]
      %v206 = vld [vmem:[%s204 + $0x8] sm:$0xff]
      %209 = vrot.lane.b32.xlu0 %v201, 4
      %v210 = vpop.permute.xlu0 %209
      %211 = vrot.lane.b32.xlu0 %v202, 4
      %v212 = vpop.permute.xlu0 %211
      %217 = vrot.lane.b32.xlu0 %v205, 8
      %v218 = vpop.permute.xlu0 %217
      %219 = vrot.lane.b32.xlu0 %v206, 8
      %v220 = vpop.permute.xlu0 %219
      %vm223 = vcmask 31744
      %v224 = vsel %vm223, %v197, %v210
      %v225 = vsel %vm223, %v198, %v212
      %vm226 = vcmask 64512
      %v227 = vsel %vm226, %v224, %v218
      %v228 = vsel %vm226, %v225, %v220
      %v229 = vpack.c.bf16 %v228, %v227
      %v230 = vld [vmem:[%s1] sm:$0xf]
      %v231 = vld [vmem:[%s1 + $0x4] sm:$0x3]
      %v232 = vld [vmem:[%s2] sm:$0x1]
      %v234 = vlaneseq
      %v235 = vshrl.u32 %v234, 7
      %v236 = vsub.s32 0, %v235
      %v237 = vrot.slane %v232, %v236
      %v241 = vunpack.c.l.b16 %v230
      %v242 = vunpack.c.l.b16 %v231
      %v243 = vpack.c.b16 %v242, %v241
      %vm244 = vcmask 97280
      %v246 = vsel %vm244, %v229, 0
      %vm248 = vcmask 1045504
      %v250 = vsel %vm248, %v243, 0
      %252 = vmatprep.subr.bf16.mxu0 0
      %253 = vmatpush1.bf16.msra.mxu0 0
      %254 = vmatprep.subr.bf16.mxu0 0
      %255 = vmatpush1.bf16.msra.mxu0 0
      %256 = vmatprep.subr.bf16.mxu0 0
      %257 = vmatpush1.bf16.msra.mxu0 0
      %258 = vmatprep.subr.bf16.mxu0 0
      %259 = vmatpush1.bf16.msra.mxu0 0
      %260 = vmatprep.subr.bf16.mxu0 0
      %261 = vmatpush1.bf16.msra.mxu0 0
      %262 = vmatprep.subr.bf16.mxu0 0
      %263 = vmatpush1.bf16.msra.mxu0 0
      %264 = vmatprep.subr.bf16.mxu0 0
      %265 = vmatpush1.bf16.msra.mxu0 0
      %266 = vmatprep.subr.bf16.mxu0 0
      %267 = vmatpush1.bf16.msra.mxu0 %v250
      %268 = vmatprep.subr.bf16.mxu0 0
      %269 = vmatpush2.bf16.msra.mxu0 0
      %270 = vmatprep.subr.bf16.mxu0 0
      %271 = vmatpush2.bf16.msra.mxu0 0
      %272 = vmatprep.subr.bf16.mxu0 0
      %273 = vmatpush2.bf16.msra.mxu0 0
      %274 = vmatprep.subr.bf16.mxu0 0
      %275 = vmatpush2.bf16.msra.mxu0 0
      %276 = vmatprep.subr.bf16.mxu0 0
      %277 = vmatpush2.bf16.msra.mxu0 0
      %278 = vmatprep.subr.bf16.mxu0 0
      %279 = vmatpush2.bf16.msra.mxu0 0
      %280 = vmatprep.subr.bf16.mxu0 0
      %281 = vmatpush2.bf16.msra.mxu0 0
      %282 = vmatprep.subr.bf16.mxu0 0
      %283 = vmatpush2.bf16.msra.mxu0 0
      %284 = vmatprep.mubr.bf16.mxu0 0
      %285 = vmatmul.mubr.bf16.gmra.mxu0 %v246
      %v286 = vpop.f32.mrf.mxu0
      %v287 = vadd.f32 %v237, %v286
      %v288 = vpop.f32.mrf.mxu0
      %v289 = vpop.f32.mrf.mxu0
      %v290 = vadd.f32 %v237, %v289
      %v291 = vpop.f32.mrf.mxu0
      %292 = vdwg.mxu0
      %v293 = vmax.f32 %v287, 0.0
      %v294 = vmax.f32 %v290, 0.0
      %v295 = vpack.c.bf16 %v294, %v293
      %v297 = vunpack.c.l.b16 %v295
      %v298 = vunpack.c.h.b16 %v295
      %v299 = vpack.c.b16 %v297, %v297
      %v300 = vpack.c.b16 %v298, %v298
      %vm303 = vcmask 27648
      %304 = vst.msk [vmem:[%s192] sm:$0xf] %vm303, %v299
      %305 = vst.msk [vmem:[%s192 + $0x4] sm:$0xf] %vm303, %v300
      %s306 = smul.u32 2, %s19
      %p307 = scmp.lt.s32.totalorder %s18, 1
      %s308 = scalar_select %p307, %s18, 1
      %p309 = scmp.lt.s32.totalorder %s306, 1
      %s310 = scalar_select %p309, %s306, 1
      %s311 = smul.addr %s308, 2
      %s312 = sadd.s32 %s310, %s311
      %s313 = smul.addr %s312, 4
      %s314 = scalar_lea.vmem %s3, %s313
      // Predicated region
      $region33: #{ecapa_forward.22} parent=31 // pred_check
        %p315 = pneg %p114
      $region34: #{ecapa_forward.22} parent=31 // pred_check_branch
        %317 = sbr.rel (%p315) target = $region36
      $region35: #{ecapa_forward.22} parent=31 // pred_region
        %s318 = smul.u32 2, %s19
      $region36: #{ecapa_forward.22} parent=31 // pred_fallthru
        _
    $region32: #{ecapa_forward.22} parent=5 // pred_fallthru
      _
    %p319 = scmp.le.s32.totalorder 2, %s9
    // Predicated region
    $region37: #{ecapa_forward.22} parent=5 // pred_check
      %p320 = pneg %p319
    $region38: #{ecapa_forward.22} parent=5 // pred_check_branch
      %322 = sbr.rel (%p320) target = $region40
    $region39: #{ecapa_forward.22} parent=5 // pred_region
      %s323 = ssub.s32 %s9, 2
      // Predicated region
      $region41: #{ecapa_forward.22} parent=39 // pred_check
        %p324 = pneg %p120
      $region42: #{ecapa_forward.22} parent=39 // pred_check_branch
        %326 = sbr.rel (%p324) target = $region44
      $region43: #{ecapa_forward.22} parent=39 // pred_region
        %s327 = smul.u32 2, %s21
        %p328 = scmp.lt.s32.totalorder %s20, 1
        %s329 = scalar_select %p328, %s20, 1
        %p330 = scmp.lt.s32.totalorder %s327, 1
        %s331 = scalar_select %p330, %s327, 1
        %s332 = smul.addr %s329, 2
        %s333 = sadd.s32 %s331, %s332
        %s334 = smul.addr %s333, 4
        %s335 = scalar_lea.vmem %s3, %s334
      $region44: #{ecapa_forward.22} parent=39 // pred_fallthru
        _
    $region40: #{ecapa_forward.22} parent=5 // pred_fallthru
      _
  $region6: #{ecapa_forward.22} parent=0 // loop_footer
    %s13 = sadd.s32 1, %s9
  $region7: #{ecapa_forward.22} parent=0 // loop_footer_branch
    %8 = sbr.rel target = $region3
  $region8: #{ecapa_forward.22} parent=0 // loop_exit
    _

// kernel: ecapa_forward.27
$region0: #{ecapa_forward.27}
  #allocation0 [shape = 'u32[]', space=smem, size = 0x4, offset = 0x4, fixed_abs, tag = 'smem constant byte address 0x4 - core index']
  #allocation1 [shape = 'u32[144,128]{1,0:T(1,128)}', space=vmem, size = 0x12000, scoped, tag = 'internal scratch']
  %s0 = inlined_call_operand.vmem [shape: f32[2,22,4], index: 0, kind: input, shape index: {}]
  %s1 = inlined_call_operand.vmem [shape: bf16[12,4], index: 1, kind: input, shape index: {}]
  %s2 = inlined_call_operand.vmem [shape: f32[1,4], index: 2, kind: input, shape index: {}]
  %s3 = inlined_call_operand.vmem [shape: bf16[2,16,4], index: 3, kind: output, shape index: {}]
  %s4 = sld [smem:[#allocation0]]
  $region45: #{ecapa_forward.27} parent=0
    _
  %s6 = ssub.s32 1, %s4
  %s7 = scalar_select 0, %s6, %s4
  loop: start=0, step=1, limit=4
  $region2: #{ecapa_forward.27} parent=0 // loop_pre_header
    _
  $region3: #{ecapa_forward.27} parent=0 // loop_header
    %s9 = sphi 0, %s13
    %p10 = scmp.ge.s32.totalorder %s9, 4
    %s16 = sphi 0, %s28
    %s17 = sphi 0, %s24
    %s18 = sphi 0, %s16
    %s19 = sphi 0, %s17
    %s20 = sphi 0, %s18
    %s21 = sphi 0, %s19
    %s31 = sphi 0, %s33
    %s34 = sphi 0, %s31
    %s35 = sphi 0, %s34
    %s51 = sphi 0, %s35
    %s55 = sphi 0, %s55
    %s57 = sphi 0, %s55
    %s58 = sphi 0, %s57
    %s72 = sphi 0, %s58
    %s76 = sphi 0, %s76
    %s78 = sphi 0, %s76
    %s79 = sphi 0, %s78
    %s93 = sphi 0, %s79
    %s101 = sphi 0, %s103
    %s104 = sphi 0, %s101
    %s105 = sphi 0, %s104
    %s121 = sphi 0, %s105
  $region4: #{ecapa_forward.27} parent=0 // loop_header_branch
    %12 = sbr.rel (%p10) target = $region8
  $region5: #{ecapa_forward.27} parent=0 // loop_body
    %s14 = ssub.s32 %s9, 1
    %s15 = ssub.s32 %s9, 2
    %s22 = sadd.s32 1, %s17
    %p23 = scmp.ge.s32.totalorder %s22, 1
    %s24 = scalar_select %p23, 0, %s22
    %s25 = sadd.s32 1, %s16
    %s26 = scalar_select %p23, %s25, %s16
    %p27 = scmp.ge.s32.totalorder %s26, 2
    %s28 = scalar_select %p27, 0, %s26
    %s29 = ssub.s32 %s16, %s28
    %p30 = scmp.eq.s32.totalorder %s29, 0
    %s32 = sadd.s32 %s31, 1
    %s33 = scalar_select %p30, %s31, %s32
    %p36 = pneg %p30
    %p37 = scmp.eq.s32.totalorder %s9, 1
    %p38 = por %p36, %p37
    %p39 = scmp.ne.s32.totalorder %s31, %s34
    %p40 = scmp.eq.s32.totalorder %s9, 0
    %p41 = por %p39, %p40
    %p42 = scmp.ne.s32.totalorder %s31, %s34
    %p43 = scmp.eq.s32.totalorder %s14, 1
    %p44 = por %p42, %p43
    %p45 = scmp.ne.s32.totalorder %s34, %s35
    %p46 = scmp.eq.s32.totalorder %s14, 0
    %p47 = por %p45, %p46
    %p48 = scmp.ne.s32.totalorder %s34, %s35
    %p49 = scmp.eq.s32.totalorder %s15, 1
    %p50 = por %p48, %p49
    %p52 = scmp.ne.s32.totalorder %s35, %s51
    %p53 = scmp.eq.s32.totalorder %s15, 0
    %p54 = por %p52, %p53
    %s56 = sadd.s32 %s55, 1
    %p59 = scmp.eq.s32.totalorder %s9, 1
    %p60 = scmp.ne.s32.totalorder %s55, %s57
    %p61 = scmp.eq.s32.totalorder %s9, 0
    %p62 = por %p60, %p61
    %p63 = scmp.ne.s32.totalorder %s55, %s57
    %p64 = scmp.eq.s32.totalorder %s14, 1
    %p65 = por %p63, %p64
    %p66 = scmp.ne.s32.totalorder %s57, %s58
    %p67 = scmp.eq.s32.totalorder %s14, 0
    %p68 = por %p66, %p67
    %p69 = scmp.ne.s32.totalorder %s57, %s58
    %p70 = scmp.eq.s32.totalorder %s15, 1
    %p71 = por %p69, %p70
    %p73 = scmp.ne.s32.totalorder %s58, %s72
    %p74 = scmp.eq.s32.totalorder %s15, 0
    %p75 = por %p73, %p74
    %s77 = sadd.s32 %s76, 1
    %p80 = scmp.eq.s32.totalorder %s9, 1
    %p81 = scmp.ne.s32.totalorder %s76, %s78
    %p82 = scmp.eq.s32.totalorder %s9, 0
    %p83 = por %p81, %p82
    %p84 = scmp.ne.s32.totalorder %s76, %s78
    %p85 = scmp.eq.s32.totalorder %s14, 1
    %p86 = por %p84, %p85
    %p87 = scmp.ne.s32.totalorder %s78, %s79
    %p88 = scmp.eq.s32.totalorder %s14, 0
    %p89 = por %p87, %p88
    %p90 = scmp.ne.s32.totalorder %s78, %s79
    %p91 = scmp.eq.s32.totalorder %s15, 1
    %p92 = por %p90, %p91
    %p94 = scmp.ne.s32.totalorder %s79, %s93
    %p95 = scmp.eq.s32.totalorder %s15, 0
    %p96 = por %p94, %p95
    %s97 = ssub.s32 %s16, %s28
    %s98 = ssub.s32 %s17, %s24
    %s99 = sor.u32 %s97, %s98
    %p100 = scmp.eq.s32.totalorder %s99, 0
    %s102 = sadd.s32 %s101, 1
    %s103 = scalar_select %p100, %s101, %s102
    %p106 = pneg %p100
    %p107 = scmp.eq.s32.totalorder %s9, 1
    %p108 = por %p106, %p107
    %p109 = scmp.ne.s32.totalorder %s101, %s104
    %p110 = scmp.eq.s32.totalorder %s9, 0
    %p111 = por %p109, %p110
    %p112 = scmp.ne.s32.totalorder %s101, %s104
    %p113 = scmp.eq.s32.totalorder %s14, 1
    %p114 = por %p112, %p113
    %p115 = scmp.ne.s32.totalorder %s104, %s105
    %p116 = scmp.eq.s32.totalorder %s14, 0
    %p117 = por %p115, %p116
    %p118 = scmp.ne.s32.totalorder %s104, %s105
    %p119 = scmp.eq.s32.totalorder %s15, 1
    %p120 = por %p118, %p119
    %p122 = scmp.ne.s32.totalorder %s105, %s121
    %p123 = scmp.eq.s32.totalorder %s15, 0
    %p124 = por %p122, %p123
    %p125 = scmp.le.s32.totalorder 1, %s9
    %p126 = scmp.lt.s32.totalorder %s9, 3
    %p127 = pnand %p125, %p126
    %p128 = pneg %p127
    // Predicated region
    $region9: #{ecapa_forward.27} parent=5 // pred_check
      _
    $region10: #{ecapa_forward.27} parent=5 // pred_check_branch
      %130 = sbr.rel (%p127) target = $region12
    $region11: #{ecapa_forward.27} parent=5 // pred_region
      %s131 = ssub.s32 %s9, 1
      // Predicated region
      $region13: #{ecapa_forward.27} parent=11 // pred_check
        %p132 = pneg %p68
      $region14: #{ecapa_forward.27} parent=11 // pred_check_branch
        %134 = sbr.rel (%p132) target = $region16
      $region15: #{ecapa_forward.27} parent=11 // pred_region
        _
      $region16: #{ecapa_forward.27} parent=11 // pred_fallthru
        _
      // Predicated region
      $region17: #{ecapa_forward.27} parent=11 // pred_check
        %p135 = pneg %p89
      $region18: #{ecapa_forward.27} parent=11 // pred_check_branch
        %137 = sbr.rel (%p135) target = $region20
      $region19: #{ecapa_forward.27} parent=11 // pred_region
        _
      $region20: #{ecapa_forward.27} parent=11 // pred_fallthru
        _
    $region12: #{ecapa_forward.27} parent=5 // pred_fallthru
      _
    %p138 = scmp.lt.s32.totalorder %s9, 2
    // Predicated region
    $region21: #{ecapa_forward.27} parent=5 // pred_check
      %p139 = pneg %p138
    $region22: #{ecapa_forward.27} parent=5 // pred_check_branch
      %141 = sbr.rel (%p139) target = $region24
    $region23: #{ecapa_forward.27} parent=5 // pred_region
      // Predicated region
      $region25: #{ecapa_forward.27} parent=23 // pred_check
        %p142 = pneg %p41
      $region26: #{ecapa_forward.27} parent=23 // pred_check_branch
        %144 = sbr.rel (%p142) target = $region28
      $region27: #{ecapa_forward.27} parent=23 // pred_region
        %p145 = scmp.lt.s32.totalorder %s16, 1
        %s146 = scalar_select %p145, %s16, 1
        %s147 = smul.addr %s146, 3
        %s148 = smul.addr %s147, 8
        %s149 = scalar_lea.vmem %s0, %s148
      $region28: #{ecapa_forward.27} parent=23 // pred_fallthru
        _
    $region24: #{ecapa_forward.27} parent=5 // pred_fallthru
      _
    %p150 = scmp.le.s32.totalorder 1, %s9
    %p151 = scmp.lt.s32.totalorder %s9, 3
    %p152 = pnand %p150, %p151
    %p153 = pneg %p152
    // Predicated region
    $region29: #{ecapa_forward.27} parent=5 // pred_check
      _
    $region30: #{ecapa_forward.27} parent=5 // pred_check_branch
      %155 = sbr.rel (%p152) target = $region32
    $region31: #{ecapa_forward.27} parent=5 // pred_region
      %s156 = ssub.s32 %s9, 1
      %p157 = scmp.lt.s32.totalorder %s18, 1
      %s158 = scalar_select %p157, %s18, 1
      %s159 = smul.addr %s158, 3
      %s160 = smul.addr %s159, 8
      %s161 = scalar_lea.vmem %s0, %s160
      %p162 = pneg %p47
      %p163 = pneg %p44
      %p164 = pneg %p68
      %p165 = pneg %p65
      %p166 = pneg %p89
      %p167 = pneg %p86
      %p168 = pneg %p117
      %p169 = pneg %p114
      %s170 = smul.u32 2, %s19
      %p171 = scmp.lt.s32.totalorder %s18, 1
      %s172 = scalar_select %p171, %s18, 1
      %p173 = scmp.lt.s32.totalorder %s170, 1
      %s174 = scalar_select %p173, %s170, 1
      %s175 = smul.addr %s172, 2
      %s176 = sadd.s32 %s174, %s175
      %s177 = smul.addr %s176, 4
      %s178 = scalar_lea.vmem %s3, %s177
      %p179 = scmp.lt.s32.totalorder %s18, 1
      %s180 = scalar_select %p179, %s18, 1
      %s181 = smul.addr %s180, 3
      %s182 = smul.addr %s181, 8
      %s183 = scalar_lea.vmem %s0, %s182
      %s184 = smul.u32 2, %s19
      %p185 = scmp.lt.s32.totalorder %s18, 1
      %s186 = scalar_select %p185, %s18, 1
      %p187 = scmp.lt.s32.totalorder %s184, 1
      %s188 = scalar_select %p187, %s184, 1
      %s189 = smul.addr %s186, 2
      %s190 = sadd.s32 %s188, %s189
      %s191 = smul.addr %s190, 4
      %s192 = scalar_lea.vmem %s3, %s191
      %s193 = smul.u32 2, %s19
      %s195 = smul.u32 %s19, 16
      %s196 = scalar_lea.vmem %s183, %s195
      %v197 = vld [vmem:[%s196] sm:$0xff]
      %v198 = vld [vmem:[%s196 + $0x8] sm:$0xff]
      %s199 = sadd.s32 %s195, 3
      %s200 = scalar_lea.vmem %s183, %s199
      %v201 = vld [vmem:[%s200] sm:$0xff]
      %v202 = vld [vmem:[%s200 + $0x8] sm:$0xff]
      %s203 = sadd.s32 %s195, 6
      %s204 = scalar_lea.vmem %s183, %s203
      %v205 = vld [vmem:[%s204] sm:$0xff]
      %v206 = vld [vmem:[%s204 + $0x8] sm:$0xff]
      %209 = vrot.lane.b32.xlu0 %v201, 4
      %v210 = vpop.permute.xlu0 %209
      %211 = vrot.lane.b32.xlu0 %v202, 4
      %v212 = vpop.permute.xlu0 %211
      %217 = vrot.lane.b32.xlu0 %v205, 8
      %v218 = vpop.permute.xlu0 %217
      %219 = vrot.lane.b32.xlu0 %v206, 8
      %v220 = vpop.permute.xlu0 %219
      %vm223 = vcmask 31744
      %v224 = vsel %vm223, %v197, %v210
      %v225 = vsel %vm223, %v198, %v212
      %vm226 = vcmask 64512
      %v227 = vsel %vm226, %v224, %v218
      %v228 = vsel %vm226, %v225, %v220
      %v229 = vpack.c.bf16 %v228, %v227
      %v230 = vld [vmem:[%s1] sm:$0xf]
      %v231 = vld [vmem:[%s1 + $0x4] sm:$0x3]
      %v232 = vld [vmem:[%s2] sm:$0x1]
      %v234 = vlaneseq
      %v235 = vshrl.u32 %v234, 7
      %v236 = vsub.s32 0, %v235
      %v237 = vrot.slane %v232, %v236
      %v241 = vunpack.c.l.b16 %v230
      %v242 = vunpack.c.l.b16 %v231
      %v243 = vpack.c.b16 %v242, %v241
      %vm244 = vcmask 97280
      %v246 = vsel %vm244, %v229, 0
      %vm248 = vcmask 1045504
      %v250 = vsel %vm248, %v243, 0
      %252 = vmatprep.subr.bf16.mxu0 0
      %253 = vmatpush1.bf16.msra.mxu0 0
      %254 = vmatprep.subr.bf16.mxu0 0
      %255 = vmatpush1.bf16.msra.mxu0 0
      %256 = vmatprep.subr.bf16.mxu0 0
      %257 = vmatpush1.bf16.msra.mxu0 0
      %258 = vmatprep.subr.bf16.mxu0 0
      %259 = vmatpush1.bf16.msra.mxu0 0
      %260 = vmatprep.subr.bf16.mxu0 0
      %261 = vmatpush1.bf16.msra.mxu0 0
      %262 = vmatprep.subr.bf16.mxu0 0
      %263 = vmatpush1.bf16.msra.mxu0 0
      %264 = vmatprep.subr.bf16.mxu0 0
      %265 = vmatpush1.bf16.msra.mxu0 0
      %266 = vmatprep.subr.bf16.mxu0 0
      %267 = vmatpush1.bf16.msra.mxu0 %v250
      %268 = vmatprep.subr.bf16.mxu0 0
      %269 = vmatpush2.bf16.msra.mxu0 0
      %270 = vmatprep.subr.bf16.mxu0 0
      %271 = vmatpush2.bf16.msra.mxu0 0
      %272 = vmatprep.subr.bf16.mxu0 0
      %273 = vmatpush2.bf16.msra.mxu0 0
      %274 = vmatprep.subr.bf16.mxu0 0
      %275 = vmatpush2.bf16.msra.mxu0 0
      %276 = vmatprep.subr.bf16.mxu0 0
      %277 = vmatpush2.bf16.msra.mxu0 0
      %278 = vmatprep.subr.bf16.mxu0 0
      %279 = vmatpush2.bf16.msra.mxu0 0
      %280 = vmatprep.subr.bf16.mxu0 0
      %281 = vmatpush2.bf16.msra.mxu0 0
      %282 = vmatprep.subr.bf16.mxu0 0
      %283 = vmatpush2.bf16.msra.mxu0 0
      %284 = vmatprep.mubr.bf16.mxu0 0
      %285 = vmatmul.mubr.bf16.gmra.mxu0 %v246
      %v286 = vpop.f32.mrf.mxu0
      %v287 = vadd.f32 %v237, %v286
      %v288 = vpop.f32.mrf.mxu0
      %v289 = vpop.f32.mrf.mxu0
      %v290 = vadd.f32 %v237, %v289
      %v291 = vpop.f32.mrf.mxu0
      %292 = vdwg.mxu0
      %v293 = vmax.f32 %v287, 0.0
      %v294 = vmax.f32 %v290, 0.0
      %v295 = vpack.c.bf16 %v294, %v293
      %v297 = vunpack.c.l.b16 %v295
      %v298 = vunpack.c.h.b16 %v295
      %v299 = vpack.c.b16 %v297, %v297
      %v300 = vpack.c.b16 %v298, %v298
      %vm303 = vcmask 27648
      %304 = vst.msk [vmem:[%s192] sm:$0xf] %vm303, %v299
      %305 = vst.msk [vmem:[%s192 + $0x4] sm:$0xf] %vm303, %v300
      %s306 = smul.u32 2, %s19
      %p307 = scmp.lt.s32.totalorder %s18, 1
      %s308 = scalar_select %p307, %s18, 1
      %p309 = scmp.lt.s32.totalorder %s306, 1
      %s310 = scalar_select %p309, %s306, 1
      %s311 = smul.addr %s308, 2
      %s312 = sadd.s32 %s310, %s311
      %s313 = smul.addr %s312, 4
      %s314 = scalar_lea.vmem %s3, %s313
      // Predicated region
      $region33: #{ecapa_forward.27} parent=31 // pred_check
        %p315 = pneg %p114
      $region34: #{ecapa_forward.27} parent=31 // pred_check_branch
        %317 = sbr.rel (%p315) target = $region36
      $region35: #{ecapa_forward.27} parent=31 // pred_region
        %s318 = smul.u32 2, %s19
      $region36: #{ecapa_forward.27} parent=31 // pred_fallthru
        _
    $region32: #{ecapa_forward.27} parent=5 // pred_fallthru
      _
    %p319 = scmp.le.s32.totalorder 2, %s9
    // Predicated region
    $region37: #{ecapa_forward.27} parent=5 // pred_check
      %p320 = pneg %p319
    $region38: #{ecapa_forward.27} parent=5 // pred_check_branch
      %322 = sbr.rel (%p320) target = $region40
    $region39: #{ecapa_forward.27} parent=5 // pred_region
      %s323 = ssub.s32 %s9, 2
      // Predicated region
      $region41: #{ecapa_forward.27} parent=39 // pred_check
        %p324 = pneg %p120
      $region42: #{ecapa_forward.27} parent=39 // pred_check_branch
        %326 = sbr.rel (%p324) target = $region44
      $region43: #{ecapa_forward.27} parent=39 // pred_region
        %s327 = smul.u32 2, %s21
        %p328 = scmp.lt.s32.totalorder %s20, 1
        %s329 = scalar_select %p328, %s20, 1
        %p330 = scmp.lt.s32.totalorder %s327, 1
        %s331 = scalar_select %p330, %s327, 1
        %s332 = smul.addr %s329, 2
        %s333 = sadd.s32 %s331, %s332
        %s334 = smul.addr %s333, 4
        %s335 = scalar_lea.vmem %s3, %s334
      $region44: #{ecapa_forward.27} parent=39 // pred_fallthru
        _
    $region40: #{ecapa_forward.27} parent=5 // pred_fallthru
      _
  $region6: #{ecapa_forward.27} parent=0 // loop_footer
    %s13 = sadd.s32 1, %s9
  $region7: #{ecapa_forward.27} parent=0 // loop_footer_branch
    %8 = sbr.rel target = $region3
  $region8: #{ecapa_forward.27} parent=0 // loop_exit
    _

// kernel: ecapa_forward.36
$region0: #{ecapa_forward.36}
  #allocation0 [shape = 'u32[]', space=smem, size = 0x4, offset = 0x4, fixed_abs, tag = 'smem constant byte address 0x4 - core index']
  #allocation1 [shape = 'u32[144,128]{1,0:T(1,128)}', space=vmem, size = 0x12000, scoped, tag = 'internal scratch']
  %s0 = inlined_call_operand.vmem [shape: bf16[32,48], index: 0, kind: input, shape index: {}]
  %s1 = inlined_call_operand.vmem [shape: bf16[48,48], index: 1, kind: input, shape index: {}]
  %s2 = inlined_call_operand.vmem [shape: f32[1,48], index: 2, kind: input, shape index: {}]
  %s3 = inlined_call_operand.vmem [shape: bf16[32,48], index: 3, kind: output, shape index: {}]
  %s4 = sld [smem:[#allocation0]]
  $region22: #{ecapa_forward.36} parent=0
    _
  %s6 = ssub.s32 1, %s4
  %s7 = scalar_select 0, %s6, %s4
  // Predicated region
  $region2: #{ecapa_forward.36} parent=0 // pred_check
    _
  $region3: #{ecapa_forward.36} parent=0 // pred_check_branch
    %9 = sbr.rel (0) target = $region5
  $region4: #{ecapa_forward.36} parent=0 // pred_region
    _
  $region5: #{ecapa_forward.36} parent=0 // pred_fallthru
    _
  // Predicated region
  $region6: #{ecapa_forward.36} parent=0 // pred_check
    _
  $region7: #{ecapa_forward.36} parent=0 // pred_check_branch
    %11 = sbr.rel (0) target = $region9
  $region8: #{ecapa_forward.36} parent=0 // pred_region
    _
  $region9: #{ecapa_forward.36} parent=0 // pred_fallthru
    _
  // Predicated region
  $region10: #{ecapa_forward.36} parent=0 // pred_check
    _
  $region11: #{ecapa_forward.36} parent=0 // pred_check_branch
    %13 = sbr.rel (0) target = $region13
  $region12: #{ecapa_forward.36} parent=0 // pred_region
    _
  $region13: #{ecapa_forward.36} parent=0 // pred_fallthru
    _
  %v15 = vld [vmem:[%s0] sm:$0xf]
  %v16 = vld [vmem:[%s0 + $0x4] sm:$0xf]
  %v17 = vld [vmem:[%s0 + $0x8] sm:$0xf]
  %v18 = vld [vmem:[%s0 + $0xc] sm:$0xf]
  %v19 = vld [vmem:[%s1] sm:$0xf]
  %v20 = vld [vmem:[%s1 + $0x4] sm:$0xf]
  %v21 = vld [vmem:[%s1 + $0x8] sm:$0xf]
  %v22 = vld [vmem:[%s1 + $0xc] sm:$0xf]
  %v23 = vld [vmem:[%s1 + $0x10] sm:$0xf]
  %v24 = vld [vmem:[%s1 + $0x14] sm:$0xf]
  %v25 = vld [vmem:[%s2] sm:$0x1]
  %v27 = vlaneseq
  %v28 = vshrl.u32 %v27, 7
  %v29 = vsub.s32 0, %v28
  %v30 = vrot.slane %v25, %v29
  %v36 = vunpack.c.l.b16 %v15
  %v37 = vunpack.c.l.b16 %v16
  %v38 = vunpack.c.l.b16 %v17
  %v39 = vunpack.c.l.b16 %v18
  %v40 = vpack.c.b16 %v37, %v36
  %v41 = vpack.c.b16 %v39, %v38
  %v48 = vunpack.c.l.b16 %v19
  %v49 = vunpack.c.l.b16 %v20
  %v50 = vunpack.c.l.b16 %v21
  %v51 = vunpack.c.l.b16 %v22
  %v52 = vunpack.c.l.b16 %v23
  %v53 = vunpack.c.l.b16 %v24
  %v54 = vpack.c.b16 %v49, %v48
  %v55 = vpack.c.b16 %v51, %v50
  %v56 = vpack.c.b16 %v53, %v52
  %vm60 = vcmask 392192
  %v62 = vsel %vm60, %v40, 0
  %v65 = vsel %vm60, %v41, 0
  %67 = vmatprep.subr.bf16.mxu0 0
  %68 = vmatpush1.bf16.msra.mxu0 0
  %69 = vmatprep.subr.bf16.mxu0 0
  %70 = vmatpush1.bf16.msra.mxu0 0
  %71 = vmatprep.subr.bf16.mxu0 0
  %72 = vmatpush1.bf16.msra.mxu0 0
  %73 = vmatprep.subr.bf16.mxu0 0
  %74 = vmatpush1.bf16.msra.mxu0 0
  %75 = vmatprep.subr.bf16.mxu0 0
  %76 = vmatpush1.bf16.msra.mxu0 0
  %77 = vmatprep.subr.bf16.mxu0 0
  %78 = vmatpush1.bf16.msra.mxu0 %v56
  %79 = vmatprep.subr.bf16.mxu0 0
  %80 = vmatpush1.bf16.msra.mxu0 %v55
  %81 = vmatprep.subr.bf16.mxu0 0
  %82 = vmatpush1.bf16.msra.mxu0 %v54
  %83 = vmatprep.subr.bf16.mxu0 0
  %84 = vmatpush2.bf16.msra.mxu0 0
  %85 = vmatprep.subr.bf16.mxu0 0
  %86 = vmatpush2.bf16.msra.mxu0 0
  %87 = vmatprep.subr.bf16.mxu0 0
  %88 = vmatpush2.bf16.msra.mxu0 0
  %89 = vmatprep.subr.bf16.mxu0 0
  %90 = vmatpush2.bf16.msra.mxu0 0
  %91 = vmatprep.subr.bf16.mxu0 0
  %92 = vmatpush2.bf16.msra.mxu0 0
  %93 = vmatprep.subr.bf16.mxu0 0
  %94 = vmatpush2.bf16.msra.mxu0 0
  %95 = vmatprep.subr.bf16.mxu0 0
  %96 = vmatpush2.bf16.msra.mxu0 0
  %97 = vmatprep.subr.bf16.mxu0 0
  %98 = vmatpush2.bf16.msra.mxu0 0
  %99 = vmatprep.mubr.bf16.mxu0 0
  %100 = vmatmul.mubr.bf16.gmra.mxu0 %v62
  %v101 = vpop.f32.mrf.mxu0
  %v102 = vadd.f32 %v30, %v101
  %v103 = vpop.f32.mrf.mxu0
  %v104 = vpop.f32.mrf.mxu0
  %v105 = vadd.f32 %v30, %v104
  %v106 = vpop.f32.mrf.mxu0
  %107 = vmatprep.mubr.bf16.mxu0 0
  %108 = vmatmul.mubr.bf16.gmra.mxu0 %v65
  %v109 = vpop.f32.mrf.mxu0
  %v110 = vadd.f32 %v30, %v109
  %v111 = vpop.f32.mrf.mxu0
  %v112 = vpop.f32.mrf.mxu0
  %v113 = vadd.f32 %v30, %v112
  %v114 = vpop.f32.mrf.mxu0
  %115 = vdwg.mxu0
  %v116 = vmax.f32 %v102, 0.0
  %v117 = vmax.f32 %v105, 0.0
  %v118 = vmax.f32 %v110, 0.0
  %v119 = vmax.f32 %v113, 0.0
  %v120 = vpack.c.bf16 %v117, %v116
  %v121 = vpack.c.bf16 %v119, %v118
  %v124 = vunpack.c.l.b16 %v120
  %v125 = vunpack.c.h.b16 %v120
  %v126 = vunpack.c.l.b16 %v121
  %v127 = vunpack.c.h.b16 %v121
  %v128 = vpack.c.b16 %v124, %v124
  %v129 = vpack.c.b16 %v125, %v125
  %v130 = vpack.c.b16 %v126, %v126
  %v131 = vpack.c.b16 %v127, %v127
  %vm136 = vcmask 388096
  %137 = vst.msk [vmem:[%s3] sm:$0xf] %vm136, %v128
  %138 = vst.msk [vmem:[%s3 + $0x4] sm:$0xf] %vm136, %v129
  %139 = vst.msk [vmem:[%s3 + $0x8] sm:$0xf] %vm136, %v130
  %140 = vst.msk [vmem:[%s3 + $0xc] sm:$0xf] %vm136, %v131
  // Predicated region
  $region14: #{ecapa_forward.36} parent=0 // pred_check
    _
  $region15: #{ecapa_forward.36} parent=0 // pred_check_branch
    %142 = sbr.rel (0) target = $region17
  $region16: #{ecapa_forward.36} parent=0 // pred_region
    _
  $region17: #{ecapa_forward.36} parent=0 // pred_fallthru
    _
  // Predicated region
  $region18: #{ecapa_forward.36} parent=0 // pred_check
    _
  $region19: #{ecapa_forward.36} parent=0 // pred_check_branch
    %144 = sbr.rel (0) target = $region21
  $region20: #{ecapa_forward.36} parent=0 // pred_region
    _
  $region21: #{ecapa_forward.36} parent=0 // pred_fallthru
    _

// kernel: ecapa_forward.32
$region0: #{ecapa_forward.32}
  #allocation0 [shape = 'u32[]', space=smem, size = 0x4, offset = 0x4, fixed_abs, tag = 'smem constant byte address 0x4 - core index']
  #allocation1 [shape = 'u32[144,128]{1,0:T(1,128)}', space=vmem, size = 0x12000, scoped, tag = 'internal scratch']
  %s0 = inlined_call_operand.vmem [shape: f32[2,24,4], index: 0, kind: input, shape index: {}]
  %s1 = inlined_call_operand.vmem [shape: bf16[12,4], index: 1, kind: input, shape index: {}]
  %s2 = inlined_call_operand.vmem [shape: f32[1,4], index: 2, kind: input, shape index: {}]
  %s3 = inlined_call_operand.vmem [shape: bf16[2,16,4], index: 3, kind: output, shape index: {}]
  %s4 = sld [smem:[#allocation0]]
  $region45: #{ecapa_forward.32} parent=0
    _
  %s6 = ssub.s32 1, %s4
  %s7 = scalar_select 0, %s6, %s4
  loop: start=0, step=1, limit=4
  $region2: #{ecapa_forward.32} parent=0 // loop_pre_header
    _
  $region3: #{ecapa_forward.32} parent=0 // loop_header
    %s9 = sphi 0, %s13
    %p10 = scmp.ge.s32.totalorder %s9, 4
    %s16 = sphi 0, %s28
    %s17 = sphi 0, %s24
    %s18 = sphi 0, %s16
    %s19 = sphi 0, %s17
    %s20 = sphi 0, %s18
    %s21 = sphi 0, %s19
    %s31 = sphi 0, %s33
    %s34 = sphi 0, %s31
    %s35 = sphi 0, %s34
    %s51 = sphi 0, %s35
    %s55 = sphi 0, %s55
    %s57 = sphi 0, %s55
    %s58 = sphi 0, %s57
    %s72 = sphi 0, %s58
    %s76 = sphi 0, %s76
    %s78 = sphi 0, %s76
    %s79 = sphi 0, %s78
    %s93 = sphi 0, %s79
    %s101 = sphi 0, %s103
    %s104 = sphi 0, %s101
    %s105 = sphi 0, %s104
    %s121 = sphi 0, %s105
  $region4: #{ecapa_forward.32} parent=0 // loop_header_branch
    %12 = sbr.rel (%p10) target = $region8
  $region5: #{ecapa_forward.32} parent=0 // loop_body
    %s14 = ssub.s32 %s9, 1
    %s15 = ssub.s32 %s9, 2
    %s22 = sadd.s32 1, %s17
    %p23 = scmp.ge.s32.totalorder %s22, 1
    %s24 = scalar_select %p23, 0, %s22
    %s25 = sadd.s32 1, %s16
    %s26 = scalar_select %p23, %s25, %s16
    %p27 = scmp.ge.s32.totalorder %s26, 2
    %s28 = scalar_select %p27, 0, %s26
    %s29 = ssub.s32 %s16, %s28
    %p30 = scmp.eq.s32.totalorder %s29, 0
    %s32 = sadd.s32 %s31, 1
    %s33 = scalar_select %p30, %s31, %s32
    %p36 = pneg %p30
    %p37 = scmp.eq.s32.totalorder %s9, 1
    %p38 = por %p36, %p37
    %p39 = scmp.ne.s32.totalorder %s31, %s34
    %p40 = scmp.eq.s32.totalorder %s9, 0
    %p41 = por %p39, %p40
    %p42 = scmp.ne.s32.totalorder %s31, %s34
    %p43 = scmp.eq.s32.totalorder %s14, 1
    %p44 = por %p42, %p43
    %p45 = scmp.ne.s32.totalorder %s34, %s35
    %p46 = scmp.eq.s32.totalorder %s14, 0
    %p47 = por %p45, %p46
    %p48 = scmp.ne.s32.totalorder %s34, %s35
    %p49 = scmp.eq.s32.totalorder %s15, 1
    %p50 = por %p48, %p49
    %p52 = scmp.ne.s32.totalorder %s35, %s51
    %p53 = scmp.eq.s32.totalorder %s15, 0
    %p54 = por %p52, %p53
    %s56 = sadd.s32 %s55, 1
    %p59 = scmp.eq.s32.totalorder %s9, 1
    %p60 = scmp.ne.s32.totalorder %s55, %s57
    %p61 = scmp.eq.s32.totalorder %s9, 0
    %p62 = por %p60, %p61
    %p63 = scmp.ne.s32.totalorder %s55, %s57
    %p64 = scmp.eq.s32.totalorder %s14, 1
    %p65 = por %p63, %p64
    %p66 = scmp.ne.s32.totalorder %s57, %s58
    %p67 = scmp.eq.s32.totalorder %s14, 0
    %p68 = por %p66, %p67
    %p69 = scmp.ne.s32.totalorder %s57, %s58
    %p70 = scmp.eq.s32.totalorder %s15, 1
    %p71 = por %p69, %p70
    %p73 = scmp.ne.s32.totalorder %s58, %s72
    %p74 = scmp.eq.s32.totalorder %s15, 0
    %p75 = por %p73, %p74
    %s77 = sadd.s32 %s76, 1
    %p80 = scmp.eq.s32.totalorder %s9, 1
    %p81 = scmp.ne.s32.totalorder %s76, %s78
    %p82 = scmp.eq.s32.totalorder %s9, 0
    %p83 = por %p81, %p82
    %p84 = scmp.ne.s32.totalorder %s76, %s78
    %p85 = scmp.eq.s32.totalorder %s14, 1
    %p86 = por %p84, %p85
    %p87 = scmp.ne.s32.totalorder %s78, %s79
    %p88 = scmp.eq.s32.totalorder %s14, 0
    %p89 = por %p87, %p88
    %p90 = scmp.ne.s32.totalorder %s78, %s79
    %p91 = scmp.eq.s32.totalorder %s15, 1
    %p92 = por %p90, %p91
    %p94 = scmp.ne.s32.totalorder %s79, %s93
    %p95 = scmp.eq.s32.totalorder %s15, 0
    %p96 = por %p94, %p95
    %s97 = ssub.s32 %s16, %s28
    %s98 = ssub.s32 %s17, %s24
    %s99 = sor.u32 %s97, %s98
    %p100 = scmp.eq.s32.totalorder %s99, 0
    %s102 = sadd.s32 %s101, 1
    %s103 = scalar_select %p100, %s101, %s102
    %p106 = pneg %p100
    %p107 = scmp.eq.s32.totalorder %s9, 1
    %p108 = por %p106, %p107
    %p109 = scmp.ne.s32.totalorder %s101, %s104
    %p110 = scmp.eq.s32.totalorder %s9, 0
    %p111 = por %p109, %p110
    %p112 = scmp.ne.s32.totalorder %s101, %s104
    %p113 = scmp.eq.s32.totalorder %s14, 1
    %p114 = por %p112, %p113
    %p115 = scmp.ne.s32.totalorder %s104, %s105
    %p116 = scmp.eq.s32.totalorder %s14, 0
    %p117 = por %p115, %p116
    %p118 = scmp.ne.s32.totalorder %s104, %s105
    %p119 = scmp.eq.s32.totalorder %s15, 1
    %p120 = por %p118, %p119
    %p122 = scmp.ne.s32.totalorder %s105, %s121
    %p123 = scmp.eq.s32.totalorder %s15, 0
    %p124 = por %p122, %p123
    %p125 = scmp.le.s32.totalorder 1, %s9
    %p126 = scmp.lt.s32.totalorder %s9, 3
    %p127 = pnand %p125, %p126
    %p128 = pneg %p127
    // Predicated region
    $region9: #{ecapa_forward.32} parent=5 // pred_check
      _
    $region10: #{ecapa_forward.32} parent=5 // pred_check_branch
      %130 = sbr.rel (%p127) target = $region12
    $region11: #{ecapa_forward.32} parent=5 // pred_region
      %s131 = ssub.s32 %s9, 1
      // Predicated region
      $region13: #{ecapa_forward.32} parent=11 // pred_check
        %p132 = pneg %p68
      $region14: #{ecapa_forward.32} parent=11 // pred_check_branch
        %134 = sbr.rel (%p132) target = $region16
      $region15: #{ecapa_forward.32} parent=11 // pred_region
        _
      $region16: #{ecapa_forward.32} parent=11 // pred_fallthru
        _
      // Predicated region
      $region17: #{ecapa_forward.32} parent=11 // pred_check
        %p135 = pneg %p89
      $region18: #{ecapa_forward.32} parent=11 // pred_check_branch
        %137 = sbr.rel (%p135) target = $region20
      $region19: #{ecapa_forward.32} parent=11 // pred_region
        _
      $region20: #{ecapa_forward.32} parent=11 // pred_fallthru
        _
    $region12: #{ecapa_forward.32} parent=5 // pred_fallthru
      _
    %p138 = scmp.lt.s32.totalorder %s9, 2
    // Predicated region
    $region21: #{ecapa_forward.32} parent=5 // pred_check
      %p139 = pneg %p138
    $region22: #{ecapa_forward.32} parent=5 // pred_check_branch
      %141 = sbr.rel (%p139) target = $region24
    $region23: #{ecapa_forward.32} parent=5 // pred_region
      // Predicated region
      $region25: #{ecapa_forward.32} parent=23 // pred_check
        %p142 = pneg %p41
      $region26: #{ecapa_forward.32} parent=23 // pred_check_branch
        %144 = sbr.rel (%p142) target = $region28
      $region27: #{ecapa_forward.32} parent=23 // pred_region
        %p145 = scmp.lt.s32.totalorder %s16, 1
        %s146 = scalar_select %p145, %s16, 1
        %s147 = smul.addr %s146, 3
        %s148 = smul.addr %s147, 8
        %s149 = scalar_lea.vmem %s0, %s148
      $region28: #{ecapa_forward.32} parent=23 // pred_fallthru
        _
    $region24: #{ecapa_forward.32} parent=5 // pred_fallthru
      _
    %p150 = scmp.le.s32.totalorder 1, %s9
    %p151 = scmp.lt.s32.totalorder %s9, 3
    %p152 = pnand %p150, %p151
    %p153 = pneg %p152
    // Predicated region
    $region29: #{ecapa_forward.32} parent=5 // pred_check
      _
    $region30: #{ecapa_forward.32} parent=5 // pred_check_branch
      %155 = sbr.rel (%p152) target = $region32
    $region31: #{ecapa_forward.32} parent=5 // pred_region
      %s156 = ssub.s32 %s9, 1
      %p157 = scmp.lt.s32.totalorder %s18, 1
      %s158 = scalar_select %p157, %s18, 1
      %s159 = smul.addr %s158, 3
      %s160 = smul.addr %s159, 8
      %s161 = scalar_lea.vmem %s0, %s160
      %p162 = pneg %p47
      %p163 = pneg %p44
      %p164 = pneg %p68
      %p165 = pneg %p65
      %p166 = pneg %p89
      %p167 = pneg %p86
      %p168 = pneg %p117
      %p169 = pneg %p114
      %s170 = smul.u32 2, %s19
      %p171 = scmp.lt.s32.totalorder %s18, 1
      %s172 = scalar_select %p171, %s18, 1
      %p173 = scmp.lt.s32.totalorder %s170, 1
      %s174 = scalar_select %p173, %s170, 1
      %s175 = smul.addr %s172, 2
      %s176 = sadd.s32 %s174, %s175
      %s177 = smul.addr %s176, 4
      %s178 = scalar_lea.vmem %s3, %s177
      %p179 = scmp.lt.s32.totalorder %s18, 1
      %s180 = scalar_select %p179, %s18, 1
      %s181 = smul.addr %s180, 3
      %s182 = smul.addr %s181, 8
      %s183 = scalar_lea.vmem %s0, %s182
      %s184 = smul.u32 2, %s19
      %p185 = scmp.lt.s32.totalorder %s18, 1
      %s186 = scalar_select %p185, %s18, 1
      %p187 = scmp.lt.s32.totalorder %s184, 1
      %s188 = scalar_select %p187, %s184, 1
      %s189 = smul.addr %s186, 2
      %s190 = sadd.s32 %s188, %s189
      %s191 = smul.addr %s190, 4
      %s192 = scalar_lea.vmem %s3, %s191
      %s193 = smul.u32 2, %s19
      %s195 = smul.u32 %s19, 16
      %s196 = scalar_lea.vmem %s183, %s195
      %v197 = vld [vmem:[%s196] sm:$0xff]
      %v198 = vld [vmem:[%s196 + $0x8] sm:$0xff]
      %s199 = sadd.s32 %s195, 4
      %s200 = scalar_lea.vmem %s183, %s199
      %v201 = vld [vmem:[%s200] sm:$0xff]
      %v202 = vld [vmem:[%s200 + $0x8] sm:$0xff]
      %s203 = sadd.s32 %s195, 8
      %s204 = scalar_lea.vmem %s183, %s203
      %v205 = vld [vmem:[%s204] sm:$0xff]
      %v206 = vld [vmem:[%s204 + $0x8] sm:$0xff]
      %209 = vrot.lane.b32.xlu0 %v201, 4
      %v210 = vpop.permute.xlu0 %209
      %211 = vrot.lane.b32.xlu0 %v202, 4
      %v212 = vpop.permute.xlu0 %211
      %217 = vrot.lane.b32.xlu0 %v205, 8
      %v218 = vpop.permute.xlu0 %217
      %219 = vrot.lane.b32.xlu0 %v206, 8
      %v220 = vpop.permute.xlu0 %219
      %vm223 = vcmask 31744
      %v224 = vsel %vm223, %v197, %v210
      %v225 = vsel %vm223, %v198, %v212
      %vm226 = vcmask 64512
      %v227 = vsel %vm226, %v224, %v218
      %v228 = vsel %vm226, %v225, %v220
      %v229 = vpack.c.bf16 %v228, %v227
      %v230 = vld [vmem:[%s1] sm:$0xf]
      %v231 = vld [vmem:[%s1 + $0x4] sm:$0x3]
      %v232 = vld [vmem:[%s2] sm:$0x1]
      %v234 = vlaneseq
      %v235 = vshrl.u32 %v234, 7
      %v236 = vsub.s32 0, %v235
      %v237 = vrot.slane %v232, %v236
      %v241 = vunpack.c.l.b16 %v230
      %v242 = vunpack.c.l.b16 %v231
      %v243 = vpack.c.b16 %v242, %v241
      %vm244 = vcmask 97280
      %v246 = vsel %vm244, %v229, 0
      %vm248 = vcmask 1045504
      %v250 = vsel %vm248, %v243, 0
      %252 = vmatprep.subr.bf16.mxu0 0
      %253 = vmatpush1.bf16.msra.mxu0 0
      %254 = vmatprep.subr.bf16.mxu0 0
      %255 = vmatpush1.bf16.msra.mxu0 0
      %256 = vmatprep.subr.bf16.mxu0 0
      %257 = vmatpush1.bf16.msra.mxu0 0
      %258 = vmatprep.subr.bf16.mxu0 0
      %259 = vmatpush1.bf16.msra.mxu0 0
      %260 = vmatprep.subr.bf16.mxu0 0
      %261 = vmatpush1.bf16.msra.mxu0 0
      %262 = vmatprep.subr.bf16.mxu0 0
      %263 = vmatpush1.bf16.msra.mxu0 0
      %264 = vmatprep.subr.bf16.mxu0 0
      %265 = vmatpush1.bf16.msra.mxu0 0
      %266 = vmatprep.subr.bf16.mxu0 0
      %267 = vmatpush1.bf16.msra.mxu0 %v250
      %268 = vmatprep.subr.bf16.mxu0 0
      %269 = vmatpush2.bf16.msra.mxu0 0
      %270 = vmatprep.subr.bf16.mxu0 0
      %271 = vmatpush2.bf16.msra.mxu0 0
      %272 = vmatprep.subr.bf16.mxu0 0
      %273 = vmatpush2.bf16.msra.mxu0 0
      %274 = vmatprep.subr.bf16.mxu0 0
      %275 = vmatpush2.bf16.msra.mxu0 0
      %276 = vmatprep.subr.bf16.mxu0 0
      %277 = vmatpush2.bf16.msra.mxu0 0
      %278 = vmatprep.subr.bf16.mxu0 0
      %279 = vmatpush2.bf16.msra.mxu0 0
      %280 = vmatprep.subr.bf16.mxu0 0
      %281 = vmatpush2.bf16.msra.mxu0 0
      %282 = vmatprep.subr.bf16.mxu0 0
      %283 = vmatpush2.bf16.msra.mxu0 0
      %284 = vmatprep.mubr.bf16.mxu0 0
      %285 = vmatmul.mubr.bf16.gmra.mxu0 %v246
      %v286 = vpop.f32.mrf.mxu0
      %v287 = vadd.f32 %v237, %v286
      %v288 = vpop.f32.mrf.mxu0
      %v289 = vpop.f32.mrf.mxu0
      %v290 = vadd.f32 %v237, %v289
      %v291 = vpop.f32.mrf.mxu0
      %292 = vdwg.mxu0
      %v293 = vmax.f32 %v287, 0.0
      %v294 = vmax.f32 %v290, 0.0
      %v295 = vpack.c.bf16 %v294, %v293
      %v297 = vunpack.c.l.b16 %v295
      %v298 = vunpack.c.h.b16 %v295
      %v299 = vpack.c.b16 %v297, %v297
      %v300 = vpack.c.b16 %v298, %v298
      %vm303 = vcmask 27648
      %304 = vst.msk [vmem:[%s192] sm:$0xf] %vm303, %v299
      %305 = vst.msk [vmem:[%s192 + $0x4] sm:$0xf] %vm303, %v300
      %s306 = smul.u32 2, %s19
      %p307 = scmp.lt.s32.totalorder %s18, 1
      %s308 = scalar_select %p307, %s18, 1
      %p309 = scmp.lt.s32.totalorder %s306, 1
      %s310 = scalar_select %p309, %s306, 1
      %s311 = smul.addr %s308, 2
      %s312 = sadd.s32 %s310, %s311
      %s313 = smul.addr %s312, 4
      %s314 = scalar_lea.vmem %s3, %s313
      // Predicated region
      $region33: #{ecapa_forward.32} parent=31 // pred_check
        %p315 = pneg %p114
      $region34: #{ecapa_forward.32} parent=31 // pred_check_branch
        %317 = sbr.rel (%p315) target = $region36
      $region35: #{ecapa_forward.32} parent=31 // pred_region
        %s318 = smul.u32 2, %s19
      $region36: #{ecapa_forward.32} parent=31 // pred_fallthru
        _
    $region32: #{ecapa_forward.32} parent=5 // pred_fallthru
      _
    %p319 = scmp.le.s32.totalorder 2, %s9
    // Predicated region
    $region37: #{ecapa_forward.32} parent=5 // pred_check
      %p320 = pneg %p319
    $region38: #{ecapa_forward.32} parent=5 // pred_check_branch
      %322 = sbr.rel (%p320) target = $region40
    $region39: #{ecapa_forward.32} parent=5 // pred_region
      %s323 = ssub.s32 %s9, 2
      // Predicated region
      $region41: #{ecapa_forward.32} parent=39 // pred_check
        %p324 = pneg %p120
      $region42: #{ecapa_forward.32} parent=39 // pred_check_branch
        %326 = sbr.rel (%p324) target = $region44
      $region43: #{ecapa_forward.32} parent=39 // pred_region
        %s327 = smul.u32 2, %s21
        %p328 = scmp.lt.s32.totalorder %s20, 1
        %s329 = scalar_select %p328, %s20, 1
        %p330 = scmp.lt.s32.totalorder %s327, 1
        %s331 = scalar_select %p330, %s327, 1
        %s332 = smul.addr %s329, 2
        %s333 = sadd.s32 %s331, %s332
        %s334 = smul.addr %s333, 4
        %s335 = scalar_lea.vmem %s3, %s334
      $region44: #{ecapa_forward.32} parent=39 // pred_fallthru
        _
    $region40: #{ecapa_forward.32} parent=5 // pred_fallthru
      _
  $region6: #{ecapa_forward.32} parent=0 // loop_footer
    %s13 = sadd.s32 1, %s9
  $region7: #{ecapa_forward.32} parent=0 // loop_footer_branch
    %8 = sbr.rel target = $region3
  $region8: #{ecapa_forward.32} parent=0 // loop_exit
    _

// kernel: mul.18
$region0: #{mul.18}
  #allocation0 [shape = 's32[1]{0}', space=sflag, size = 0x4, scoped, tag = 'scoped memory for mul.18']
  %s0 = inlined_call_operand.vmem [shape: f32[96], index: 0, kind: input, shape index: {}]
  %s1 = inlined_call_operand.vmem [shape: f32[96], index: 1, kind: input, shape index: {}]
  %s2 = inlined_call_operand.vmem [shape: f32[96], index: 2, kind: output, shape index: {}]
  %v3 = vld [vmem:[%s0] sm:$0x1]
  %v4 = vld [vmem:[%s1] sm:$0x1]
  %5 = xla_tuple %v3, %v4
  %6 = xla_tuple %5
  %v7 = vmul.f32 %v3, %v4
  %8 = xla_tuple %v7
  %9 = vst [vmem:[%s2] sm:$0x1] %v7

// kernel: ecapa_forward.37
$region0: #{ecapa_forward.37}
  #allocation0 [shape = 'u32[]', space=smem, size = 0x4, offset = 0x4, fixed_abs, tag = 'smem constant byte address 0x4 - core index']
  #allocation1 [shape = 'u32[144,128]{1,0:T(1,128)}', space=vmem, size = 0x12000, scoped, tag = 'internal scratch']
  %s0 = inlined_call_operand.vmem [shape: bf16[32,48], index: 0, kind: input, shape index: {}]
  %s1 = inlined_call_operand.vmem [shape: bf16[48,8], index: 1, kind: input, shape index: {}]
  %s2 = inlined_call_operand.vmem [shape: f32[1,8], index: 2, kind: input, shape index: {}]
  %s3 = inlined_call_operand.vmem [shape: f32[32,8], index: 3, kind: output, shape index: {}]
  %s4 = sld [smem:[#allocation0]]
  $region22: #{ecapa_forward.37} parent=0
    _
  %s6 = ssub.s32 1, %s4
  %s7 = scalar_select 0, %s6, %s4
  // Predicated region
  $region2: #{ecapa_forward.37} parent=0 // pred_check
    _
  $region3: #{ecapa_forward.37} parent=0 // pred_check_branch
    %9 = sbr.rel (0) target = $region5
  $region4: #{ecapa_forward.37} parent=0 // pred_region
    _
  $region5: #{ecapa_forward.37} parent=0 // pred_fallthru
    _
  // Predicated region
  $region6: #{ecapa_forward.37} parent=0 // pred_check
    _
  $region7: #{ecapa_forward.37} parent=0 // pred_check_branch
    %11 = sbr.rel (0) target = $region9
  $region8: #{ecapa_forward.37} parent=0 // pred_region
    _
  $region9: #{ecapa_forward.37} parent=0 // pred_fallthru
    _
  // Predicated region
  $region10: #{ecapa_forward.37} parent=0 // pred_check
    _
  $region11: #{ecapa_forward.37} parent=0 // pred_check_branch
    %13 = sbr.rel (0) target = $region13
  $region12: #{ecapa_forward.37} parent=0 // pred_region
    _
  $region13: #{ecapa_forward.37} parent=0 // pred_fallthru
    _
  %v15 = vld [vmem:[%s0] sm:$0xf]
  %v16 = vld [vmem:[%s0 + $0x4] sm:$0xf]
  %v17 = vld [vmem:[%s0 + $0x8] sm:$0xf]
  %v18 = vld [vmem:[%s0 + $0xc] sm:$0xf]
  %v19 = vld [vmem:[%s1] sm:$0xf]
  %v20 = vld [vmem:[%s1 + $0x4] sm:$0xf]
  %v21 = vld [vmem:[%s1 + $0x8] sm:$0xf]
  %v22 = vld [vmem:[%s1 + $0xc] sm:$0xf]
  %v23 = vld [vmem:[%s1 + $0x10] sm:$0xf]
  %v24 = vld [vmem:[%s1 + $0x14] sm:$0xf]
  %v25 = vld [vmem:[%s2] sm:$0x1]
  %v27 = vlaneseq
  %v28 = vshrl.u32 %v27, 7
  %v29 = vsub.s32 0, %v28
  %v30 = vrot.slane %v25, %v29
  %v36 = vunpack.c.l.b16 %v15
  %v37 = vunpack.c.l.b16 %v16
  %v38 = vunpack.c.l.b16 %v17
  %v39 = vunpack.c.l.b16 %v18
  %v40 = vpack.c.b16 %v37, %v36
  %v41 = vpack.c.b16 %v39, %v38
  %v48 = vunpack.c.l.b16 %v19
  %v49 = vunpack.c.l.b16 %v20
  %v50 = vunpack.c.l.b16 %v21
  %v51 = vunpack.c.l.b16 %v22
  %v52 = vunpack.c.l.b16 %v23
  %v53 = vunpack.c.l.b16 %v24
  %v54 = vpack.c.b16 %v49, %v48
  %v55 = vpack.c.b16 %v51, %v50
  %v56 = vpack.c.b16 %v53, %v52
  %vm60 = vcmask 392192
  %v62 = vsel %vm60, %v40, 0
  %v65 = vsel %vm60, %v41, 0
  %67 = vmatprep.subr.bf16.mxu0 0
  %68 = vmatpush1.bf16.msra.mxu0 0
  %69 = vmatprep.subr.bf16.mxu0 0
  %70 = vmatpush1.bf16.msra.mxu0 0
  %71 = vmatprep.subr.bf16.mxu0 0
  %72 = vmatpush1.bf16.msra.mxu0 0
  %73 = vmatprep.subr.bf16.mxu0 0
  %74 = vmatpush1.bf16.msra.mxu0 0
  %75 = vmatprep.subr.bf16.mxu0 0
  %76 = vmatpush1.bf16.msra.mxu0 0
  %77 = vmatprep.subr.bf16.mxu0 0
  %78 = vmatpush1.bf16.msra.mxu0 %v56
  %79 = vmatprep.subr.bf16.mxu0 0
  %80 = vmatpush1.bf16.msra.mxu0 %v55
  %81 = vmatprep.subr.bf16.mxu0 0
  %82 = vmatpush1.bf16.msra.mxu0 %v54
  %83 = vmatprep.subr.bf16.mxu0 0
  %84 = vmatpush2.bf16.msra.mxu0 0
  %85 = vmatprep.subr.bf16.mxu0 0
  %86 = vmatpush2.bf16.msra.mxu0 0
  %87 = vmatprep.subr.bf16.mxu0 0
  %88 = vmatpush2.bf16.msra.mxu0 0
  %89 = vmatprep.subr.bf16.mxu0 0
  %90 = vmatpush2.bf16.msra.mxu0 0
  %91 = vmatprep.subr.bf16.mxu0 0
  %92 = vmatpush2.bf16.msra.mxu0 0
  %93 = vmatprep.subr.bf16.mxu0 0
  %94 = vmatpush2.bf16.msra.mxu0 0
  %95 = vmatprep.subr.bf16.mxu0 0
  %96 = vmatpush2.bf16.msra.mxu0 0
  %97 = vmatprep.subr.bf16.mxu0 0
  %98 = vmatpush2.bf16.msra.mxu0 0
  %99 = vmatprep.mubr.bf16.mxu0 0
  %100 = vmatmul.mubr.bf16.gmra.mxu0 %v62
  %v101 = vpop.f32.mrf.mxu0
  %v102 = vadd.f32 %v30, %v101
  %v103 = vpop.f32.mrf.mxu0
  %v104 = vpop.f32.mrf.mxu0
  %v105 = vadd.f32 %v30, %v104
  %v106 = vpop.f32.mrf.mxu0
  %107 = vmatprep.mubr.bf16.mxu0 0
  %108 = vmatmul.mubr.bf16.gmra.mxu0 %v65
  %v109 = vpop.f32.mrf.mxu0
  %v110 = vadd.f32 %v30, %v109
  %v111 = vpop.f32.mrf.mxu0
  %v112 = vpop.f32.mrf.mxu0
  %v113 = vadd.f32 %v30, %v112
  %v114 = vpop.f32.mrf.mxu0
  %115 = vdwg.mxu0
  %vm116 = vcmask 64512
  %117 = vst.msk [vmem:[%s3] sm:$0xff] %vm116, %v102
  %118 = vst.msk [vmem:[%s3 + $0x8] sm:$0xff] %vm116, %v105
  %119 = vst.msk [vmem:[%s3 + $0x10] sm:$0xff] %vm116, %v110
  %120 = vst.msk [vmem:[%s3 + $0x18] sm:$0xff] %vm116, %v113
  // Predicated region
  $region14: #{ecapa_forward.37} parent=0 // pred_check
    _
  $region15: #{ecapa_forward.37} parent=0 // pred_check_branch
    %122 = sbr.rel (0) target = $region17
  $region16: #{ecapa_forward.37} parent=0 // pred_region
    _
  $region17: #{ecapa_forward.37} parent=0 // pred_fallthru
    _
  // Predicated region
  $region18: #{ecapa_forward.37} parent=0 // pred_check
    _
  $region19: #{ecapa_forward.37} parent=0 // pred_check_branch
    %124 = sbr.rel (0) target = $region21
  $region20: #{ecapa_forward.37} parent=0 // pred_region
    _
  $region21: #{ecapa_forward.37} parent=0 // pred_fallthru
    _

// kernel: ecapa_forward.38
$region0: #{ecapa_forward.38}
  #allocation0 [shape = 'u32[]', space=smem, size = 0x4, offset = 0x4, fixed_abs, tag = 'smem constant byte address 0x4 - core index']
  #allocation1 [shape = 'u32[144,128]{1,0:T(1,128)}', space=vmem, size = 0x12000, scoped, tag = 'internal scratch']
  %s0 = inlined_call_operand.vmem [shape: bf16[32,8], index: 0, kind: input, shape index: {}]
  %s1 = inlined_call_operand.vmem [shape: f32[1,8], index: 1, kind: input, shape index: {}]
  %s2 = inlined_call_operand.vmem [shape: f32[1,8], index: 2, kind: input, shape index: {}]
  %s3 = inlined_call_operand.vmem [shape: bf16[8,48], index: 3, kind: input, shape index: {}]
  %s4 = inlined_call_operand.vmem [shape: f32[1,48], index: 4, kind: input, shape index: {}]
  %s5 = inlined_call_operand.vmem [shape: bf16[32,48], index: 5, kind: output, shape index: {}]
  %s6 = sld [smem:[#allocation0]]
  $region30: #{ecapa_forward.38} parent=0
    _
  %s8 = ssub.s32 1, %s6
  %s9 = scalar_select 0, %s8, %s6
  // Predicated region
  $region2: #{ecapa_forward.38} parent=0 // pred_check
    _
  $region3: #{ecapa_forward.38} parent=0 // pred_check_branch
    %11 = sbr.rel (0) target = $region5
  $region4: #{ecapa_forward.38} parent=0 // pred_region
    _
  $region5: #{ecapa_forward.38} parent=0 // pred_fallthru
    _
  // Predicated region
  $region6: #{ecapa_forward.38} parent=0 // pred_check
    _
  $region7: #{ecapa_forward.38} parent=0 // pred_check_branch
    %13 = sbr.rel (0) target = $region9
  $region8: #{ecapa_forward.38} parent=0 // pred_region
    _
  $region9: #{ecapa_forward.38} parent=0 // pred_fallthru
    _
  // Predicated region
  $region10: #{ecapa_forward.38} parent=0 // pred_check
    _
  $region11: #{ecapa_forward.38} parent=0 // pred_check_branch
    %15 = sbr.rel (0) target = $region13
  $region12: #{ecapa_forward.38} parent=0 // pred_region
    _
  $region13: #{ecapa_forward.38} parent=0 // pred_fallthru
    _
  // Predicated region
  $region14: #{ecapa_forward.38} parent=0 // pred_check
    _
  $region15: #{ecapa_forward.38} parent=0 // pred_check_branch
    %17 = sbr.rel (0) target = $region17
  $region16: #{ecapa_forward.38} parent=0 // pred_region
    _
  $region17: #{ecapa_forward.38} parent=0 // pred_fallthru
    _
  // Predicated region
  $region18: #{ecapa_forward.38} parent=0 // pred_check
    _
  $region19: #{ecapa_forward.38} parent=0 // pred_check_branch
    %19 = sbr.rel (0) target = $region21
  $region20: #{ecapa_forward.38} parent=0 // pred_region
    _
  $region21: #{ecapa_forward.38} parent=0 // pred_fallthru
    _
  %v21 = vld [vmem:[%s0] sm:$0xf]
  %v22 = vld [vmem:[%s0 + $0x4] sm:$0xf]
  %v23 = vld [vmem:[%s0 + $0x8] sm:$0xf]
  %v24 = vld [vmem:[%s0 + $0xc] sm:$0xf]
  %v25 = vunpack.c.l.bf16 %v21
  %v26 = vunpack.c.l.bf16 %v22
  %v27 = vunpack.c.l.bf16 %v23
  %v28 = vunpack.c.l.bf16 %v24
  %v29 = vld [vmem:[%s1] sm:$0x1]
  %v31 = vlaneseq
  %v32 = vshrl.u32 %v31, 7
  %v33 = vsub.s32 0, %v32
  %v34 = vrot.slane %v29, %v33
  %v36 = vmul.f32 %v25, %v34
  %v37 = vmul.f32 %v26, %v34
  %v38 = vmul.f32 %v27, %v34
  %v39 = vmul.f32 %v28, %v34
  %v40 = vld [vmem:[%s2] sm:$0x1]
  %v42 = vlaneseq
  %v43 = vshrl.u32 %v42, 7
  %v44 = vsub.s32 0, %v43
  %v45 = vrot.slane %v40, %v44
  %v47 = vadd.f32 %v36, %v45
  %v48 = vadd.f32 %v37, %v45
  %v49 = vadd.f32 %v38, %v45
  %v50 = vadd.f32 %v39, %v45
  %v51 = vtanh.pop %v47
  %v52 = vtanh.pop %v48
  %v53 = vtanh.pop %v49
  %v54 = vtanh.pop %v50
  %v55 = vpack.c.bf16 %v52, %v51
  %v56 = vpack.c.bf16 %v54, %v53
  %v57 = vld [vmem:[%s3] sm:$0xf]
  %v58 = vld [vmem:[%s4] sm:$0x1]
  %v60 = vlaneseq
  %v61 = vshrl.u32 %v60, 7
  %v62 = vsub.s32 0, %v61
  %v63 = vrot.slane %v58, %v62
  %vm65 = vcmask 64512
  %v67 = vsel %vm65, %v55, 0
  %v70 = vsel %vm65, %v56, 0
  %vm72 = vcmask 1043456
  %v74 = vsel %vm72, %v57, 0
  %76 = vmatprep.subr.bf16.mxu0 0
  %77 = vmatpush1.bf16.msra.mxu0 0
  %78 = vmatprep.subr.bf16.mxu0 0
  %79 = vmatpush1.bf16.msra.mxu0 0
  %80 = vmatprep.subr.bf16.mxu0 0
  %81 = vmatpush1.bf16.msra.mxu0 0
  %82 = vmatprep.subr.bf16.mxu0 0
  %83 = vmatpush1.bf16.msra.mxu0 0
  %84 = vmatprep.subr.bf16.mxu0 0
  %85 = vmatpush1.bf16.msra.mxu0 0
  %86 = vmatprep.subr.bf16.mxu0 0
  %87 = vmatpush1.bf16.msra.mxu0 0
  %88 = vmatprep.subr.bf16.mxu0 0
  %89 = vmatpush1.bf16.msra.mxu0 0
  %90 = vmatprep.subr.bf16.mxu0 0
  %91 = vmatpush1.bf16.msra.mxu0 %v74
  %92 = vmatprep.subr.bf16.mxu0 0
  %93 = vmatpush2.bf16.msra.mxu0 0
  %94 = vmatprep.subr.bf16.mxu0 0
  %95 = vmatpush2.bf16.msra.mxu0 0
  %96 = vmatprep.subr.bf16.mxu0 0
  %97 = vmatpush2.bf16.msra.mxu0 0
  %98 = vmatprep.subr.bf16.mxu0 0
  %99 = vmatpush2.bf16.msra.mxu0 0
  %100 = vmatprep.subr.bf16.mxu0 0
  %101 = vmatpush2.bf16.msra.mxu0 0
  %102 = vmatprep.subr.bf16.mxu0 0
  %103 = vmatpush2.bf16.msra.mxu0 0
  %104 = vmatprep.subr.bf16.mxu0 0
  %105 = vmatpush2.bf16.msra.mxu0 0
  %106 = vmatprep.subr.bf16.mxu0 0
  %107 = vmatpush2.bf16.msra.mxu0 0
  %108 = vmatprep.mubr.bf16.mxu0 0
  %109 = vmatmul.mubr.bf16.gmra.mxu0 %v67
  %v110 = vpop.f32.mrf.mxu0
  %v111 = vadd.f32 %v63, %v110
  %v112 = vpop.f32.mrf.mxu0
  %v113 = vpop.f32.mrf.mxu0
  %v114 = vadd.f32 %v63, %v113
  %v115 = vpop.f32.mrf.mxu0
  %116 = vmatprep.mubr.bf16.mxu0 0
  %117 = vmatmul.mubr.bf16.gmra.mxu0 %v70
  %v118 = vpop.f32.mrf.mxu0
  %v119 = vadd.f32 %v63, %v118
  %v120 = vpop.f32.mrf.mxu0
  %v121 = vpop.f32.mrf.mxu0
  %v122 = vadd.f32 %v63, %v121
  %v123 = vpop.f32.mrf.mxu0
  %124 = vdwg.mxu0
  %v125 = vpack.c.bf16 %v114, %v111
  %v126 = vpack.c.bf16 %v122, %v119
  %v129 = vunpack.c.l.b16 %v125
  %v130 = vunpack.c.h.b16 %v125
  %v131 = vunpack.c.l.b16 %v126
  %v132 = vunpack.c.h.b16 %v126
  %v133 = vpack.c.b16 %v129, %v129
  %v134 = vpack.c.b16 %v130, %v130
  %v135 = vpack.c.b16 %v131, %v131
  %v136 = vpack.c.b16 %v132, %v132
  %vm141 = vcmask 388096
  %142 = vst.msk [vmem:[%s5] sm:$0xf] %vm141, %v133
  %143 = vst.msk [vmem:[%s5 + $0x4] sm:$0xf] %vm141, %v134
  %144 = vst.msk [vmem:[%s5 + $0x8] sm:$0xf] %vm141, %v135
  %145 = vst.msk [vmem:[%s5 + $0xc] sm:$0xf] %vm141, %v136
  // Predicated region
  $region22: #{ecapa_forward.38} parent=0 // pred_check
    _
  $region23: #{ecapa_forward.38} parent=0 // pred_check_branch
    %147 = sbr.rel (0) target = $region25
  $region24: #{ecapa_forward.38} parent=0 // pred_region
    _
  $region25: #{ecapa_forward.38} parent=0 // pred_fallthru
    _
  // Predicated region
  $region26: #{ecapa_forward.38} parent=0 // pred_check
    _
  $region27: #{ecapa_forward.38} parent=0 // pred_check_branch
    %149 = sbr.rel (0) target = $region29
  $region28: #{ecapa_forward.38} parent=0 // pred_region
    _
  $region29: #{ecapa_forward.38} parent=0 // pred_fallthru
    _

// kernel: ecapa_forward.39
$region0: #{ecapa_forward.39}
  #allocation0 [shape = 'u32[]', space=smem, size = 0x4, offset = 0x4, fixed_abs, tag = 'smem constant byte address 0x4 - core index']
  #allocation1 [shape = 'u32[144,128]{1,0:T(1,128)}', space=vmem, size = 0x12000, scoped, tag = 'internal scratch']
  %s0 = inlined_call_operand.vmem [shape: bf16[2,16,48], index: 0, kind: input, shape index: {}]
  %s1 = inlined_call_operand.vmem [shape: f32[1,1,48], index: 1, kind: input, shape index: {}]
  %s2 = inlined_call_operand.vmem [shape: f32[1,1,48], index: 2, kind: input, shape index: {}]
  %s3 = inlined_call_operand.vmem [shape: bf16[2,16,48], index: 3, kind: input, shape index: {}]
  %s4 = inlined_call_operand.vmem [shape: f32[2,2,48], index: 4, kind: output, shape index: {}]
  %s5 = sld [smem:[#allocation0]]
  $region49: #{ecapa_forward.39} parent=0
    _
  %s7 = ssub.s32 1, %s5
  %s8 = scalar_select 0, %s7, %s5
  loop: start=0, step=1, limit=4
  $region2: #{ecapa_forward.39} parent=0 // loop_pre_header
    _
  $region3: #{ecapa_forward.39} parent=0 // loop_header
    %s10 = sphi 0, %s14
    %p11 = scmp.ge.s32.totalorder %s10, 4
    %s17 = sphi 0, %s29
    %s18 = sphi 0, %s25
    %s19 = sphi 0, %s17
    %s20 = sphi 0, %s18
    %s21 = sphi 0, %s19
    %s22 = sphi 0, %s20
    %s34 = sphi 0, %s36
    %s37 = sphi 0, %s34
    %s38 = sphi 0, %s37
    %s54 = sphi 0, %s38
    %s60 = sphi 0, %s62
    %s63 = sphi 0, %s60
    %s64 = sphi 0, %s63
    %s80 = sphi 0, %s64
    %s86 = sphi 0, %s88
    %s89 = sphi 0, %s86
    %s90 = sphi 0, %s89
    %s106 = sphi 0, %s90
    %s114 = sphi 0, %s116
    %s117 = sphi 0, %s114
    %s118 = sphi 0, %s117
    %s134 = sphi 0, %s118
    %s142 = sphi 0, %s144
    %s145 = sphi 0, %s142
    %s146 = sphi 0, %s145
    %s162 = sphi 0, %s146
  $region4: #{ecapa_forward.39} parent=0 // loop_header_branch
    %13 = sbr.rel (%p11) target = $region8
  $region5: #{ecapa_forward.39} parent=0 // loop_body
    %s15 = ssub.s32 %s10, 1
    %s16 = ssub.s32 %s10, 2
    %s23 = sadd.s32 1, %s18
    %p24 = scmp.ge.s32.totalorder %s23, 1
    %s25 = scalar_select %p24, 0, %s23
    %s26 = sadd.s32 1, %s17
    %s27 = scalar_select %p24, %s26, %s17
    %p28 = scmp.ge.s32.totalorder %s27, 2
    %s29 = scalar_select %p28, 0, %s27
    %s30 = ssub.s32 %s17, %s29
    %s31 = ssub.s32 %s18, %s25
    %s32 = sor.u32 %s30, %s31
    %p33 = scmp.eq.s32.totalorder %s32, 0
    %s35 = sadd.s32 %s34, 1
    %s36 = scalar_select %p33, %s34, %s35
    %p39 = pneg %p33
    %p40 = scmp.eq.s32.totalorder %s10, 1
    %p41 = por %p39, %p40
    %p42 = scmp.ne.s32.totalorder %s34, %s37
    %p43 = scmp.eq.s32.totalorder %s10, 0
    %p44 = por %p42, %p43
    %p45 = scmp.ne.s32.totalorder %s34, %s37
    %p46 = scmp.eq.s32.totalorder %s15, 1
    %p47 = por %p45, %p46
    %p48 = scmp.ne.s32.totalorder %s37, %s38
    %p49 = scmp.eq.s32.totalorder %s15, 0
    %p50 = por %p48, %p49
    %p51 = scmp.ne.s32.totalorder %s37, %s38
    %p52 = scmp.eq.s32.totalorder %s16, 1
    %p53 = por %p51, %p52
    %p55 = scmp.ne.s32.totalorder %s38, %s54
    %p56 = scmp.eq.s32.totalorder %s16, 0
    %p57 = por %p55, %p56
    %s58 = ssub.s32 %s18, %s25
    %p59 = scmp.eq.s32.totalorder %s58, 0
    %s61 = sadd.s32 %s60, 1
    %s62 = scalar_select %p59, %s60, %s61
    %p65 = pneg %p59
    %p66 = scmp.eq.s32.totalorder %s10, 1
    %p67 = por %p65, %p66
    %p68 = scmp.ne.s32.totalorder %s60, %s63
    %p69 = scmp.eq.s32.totalorder %s10, 0
    %p70 = por %p68, %p69
    %p71 = scmp.ne.s32.totalorder %s60, %s63
    %p72 = scmp.eq.s32.totalorder %s15, 1
    %p73 = por %p71, %p72
    %p74 = scmp.ne.s32.totalorder %s63, %s64
    %p75 = scmp.eq.s32.totalorder %s15, 0
    %p76 = por %p74, %p75
    %p77 = scmp.ne.s32.totalorder %s63, %s64
    %p78 = scmp.eq.s32.totalorder %s16, 1
    %p79 = por %p77, %p78
    %p81 = scmp.ne.s32.totalorder %s64, %s80
    %p82 = scmp.eq.s32.totalorder %s16, 0
    %p83 = por %p81, %p82
    %s84 = ssub.s32 %s18, %s25
    %p85 = scmp.eq.s32.totalorder %s84, 0
    %s87 = sadd.s32 %s86, 1
    %s88 = scalar_select %p85, %s86, %s87
    %p91 = pneg %p85
    %p92 = scmp.eq.s32.totalorder %s10, 1
    %p93 = por %p91, %p92
    %p94 = scmp.ne.s32.totalorder %s86, %s89
    %p95 = scmp.eq.s32.totalorder %s10, 0
    %p96 = por %p94, %p95
    %p97 = scmp.ne.s32.totalorder %s86, %s89
    %p98 = scmp.eq.s32.totalorder %s15, 1
    %p99 = por %p97, %p98
    %p100 = scmp.ne.s32.totalorder %s89, %s90
    %p101 = scmp.eq.s32.totalorder %s15, 0
    %p102 = por %p100, %p101
    %p103 = scmp.ne.s32.totalorder %s89, %s90
    %p104 = scmp.eq.s32.totalorder %s16, 1
    %p105 = por %p103, %p104
    %p107 = scmp.ne.s32.totalorder %s90, %s106
    %p108 = scmp.eq.s32.totalorder %s16, 0
    %p109 = por %p107, %p108
    %s110 = ssub.s32 %s17, %s29
    %s111 = ssub.s32 %s18, %s25
    %s112 = sor.u32 %s110, %s111
    %p113 = scmp.eq.s32.totalorder %s112, 0
    %s115 = sadd.s32 %s114, 1
    %s116 = scalar_select %p113, %s114, %s115
    %p119 = pneg %p113
    %p120 = scmp.eq.s32.totalorder %s10, 1
    %p121 = por %p119, %p120
    %p122 = scmp.ne.s32.totalorder %s114, %s117
    %p123 = scmp.eq.s32.totalorder %s10, 0
    %p124 = por %p122, %p123
    %p125 = scmp.ne.s32.totalorder %s114, %s117
    %p126 = scmp.eq.s32.totalorder %s15, 1
    %p127 = por %p125, %p126
    %p128 = scmp.ne.s32.totalorder %s117, %s118
    %p129 = scmp.eq.s32.totalorder %s15, 0
    %p130 = por %p128, %p129
    %p131 = scmp.ne.s32.totalorder %s117, %s118
    %p132 = scmp.eq.s32.totalorder %s16, 1
    %p133 = por %p131, %p132
    %p135 = scmp.ne.s32.totalorder %s118, %s134
    %p136 = scmp.eq.s32.totalorder %s16, 0
    %p137 = por %p135, %p136
    %s138 = ssub.s32 %s17, %s29
    %s139 = ssub.s32 %s18, %s25
    %s140 = sor.u32 %s138, %s139
    %p141 = scmp.eq.s32.totalorder %s140, 0
    %s143 = sadd.s32 %s142, 1
    %s144 = scalar_select %p141, %s142, %s143
    %p147 = pneg %p141
    %p148 = scmp.eq.s32.totalorder %s10, 1
    %p149 = por %p147, %p148
    %p150 = scmp.ne.s32.totalorder %s142, %s145
    %p151 = scmp.eq.s32.totalorder %s10, 0
    %p152 = por %p150, %p151
    %p153 = scmp.ne.s32.totalorder %s142, %s145
    %p154 = scmp.eq.s32.totalorder %s15, 1
    %p155 = por %p153, %p154
    %p156 = scmp.ne.s32.totalorder %s145, %s146
    %p157 = scmp.eq.s32.totalorder %s15, 0
    %p158 = por %p156, %p157
    %p159 = scmp.ne.s32.totalorder %s145, %s146
    %p160 = scmp.eq.s32.totalorder %s16, 1
    %p161 = por %p159, %p160
    %p163 = scmp.ne.s32.totalorder %s146, %s162
    %p164 = scmp.eq.s32.totalorder %s16, 0
    %p165 = por %p163, %p164
    %p166 = scmp.le.s32.totalorder 1, %s10
    %p167 = scmp.lt.s32.totalorder %s10, 3
    %p168 = pnand %p166, %p167
    %p169 = pneg %p168
    // Predicated region
    $region9: #{ecapa_forward.39} parent=5 // pred_check
      _
    $region10: #{ecapa_forward.39} parent=5 // pred_check_branch
      %171 = sbr.rel (%p168) target = $region12
    $region11: #{ecapa_forward.39} parent=5 // pred_region
      %s172 = ssub.s32 %s10, 1
      // Predicated region
      $region13: #{ecapa_forward.39} parent=11 // pred_check
        %p173 = pneg %p76
      $region14: #{ecapa_forward.39} parent=11 // pred_check_branch
        %175 = sbr.rel (%p173) target = $region16
      $region15: #{ecapa_forward.39} parent=11 // pred_region
        %p176 = scmp.lt.s32.totalorder %s20, 0
        %s177 = scalar_select %p176, %s20, 0
        %s178 = scalar_lea.vmem %s1, %s177
      $region16: #{ecapa_forward.39} parent=11 // pred_fallthru
        _
      // Predicated region
      $region17: #{ecapa_forward.39} parent=11 // pred_check
        %p179 = pneg %p102
      $region18: #{ecapa_forward.39} parent=11 // pred_check_branch
        %181 = sbr.rel (%p179) target = $region20
      $region19: #{ecapa_forward.39} parent=11 // pred_region
        %p182 = scmp.lt.s32.totalorder %s20, 0
        %s183 = scalar_select %p182, %s20, 0
        %s184 = scalar_lea.vmem %s2, %s183
      $region20: #{ecapa_forward.39} parent=11 // pred_fallthru
        _
    $region12: #{ecapa_forward.39} parent=5 // pred_fallthru
      _
    %p185 = scmp.lt.s32.totalorder %s10, 2
    // Predicated region
    $region21: #{ecapa_forward.39} parent=5 // pred_check
      %p186 = pneg %p185
    $region22: #{ecapa_forward.39} parent=5 // pred_check_branch
      %188 = sbr.rel (%p186) target = $region24
    $region23: #{ecapa_forward.39} parent=5 // pred_region
      // Predicated region
      $region25: #{ecapa_forward.39} parent=23 // pred_check
        %p189 = pneg %p44
      $region26: #{ecapa_forward.39} parent=23 // pred_check_branch
        %191 = sbr.rel (%p189) target = $region28
      $region27: #{ecapa_forward.39} parent=23 // pred_region
        %p192 = scmp.lt.s32.totalorder %s17, 1
        %s193 = scalar_select %p192, %s17, 1
        %p194 = scmp.lt.s32.totalorder %s18, 0
        %s195 = scalar_select %p194, %s18, 0
        %s196 = smul.addr %s193, 2
        %s197 = sadd.s32 %s195, %s196
        %s198 = smul.addr %s197, 4
        %s199 = scalar_lea.vmem %s0, %s198
      $region28: #{ecapa_forward.39} parent=23 // pred_fallthru
        _
      // Predicated region
      $region29: #{ecapa_forward.39} parent=23 // pred_check
        %p200 = pneg %p124
      $region30: #{ecapa_forward.39} parent=23 // pred_check_branch
        %202 = sbr.rel (%p200) target = $region32
      $region31: #{ecapa_forward.39} parent=23 // pred_region
        %p203 = scmp.lt.s32.totalorder %s17, 1
        %s204 = scalar_select %p203, %s17, 1
        %p205 = scmp.lt.s32.totalorder %s18, 0
        %s206 = scalar_select %p205, %s18, 0
        %s207 = smul.addr %s204, 2
        %s208 = sadd.s32 %s206, %s207
        %s209 = smul.addr %s208, 4
        %s210 = scalar_lea.vmem %s3, %s209
      $region32: #{ecapa_forward.39} parent=23 // pred_fallthru
        _
    $region24: #{ecapa_forward.39} parent=5 // pred_fallthru
      _
    %p211 = scmp.le.s32.totalorder 1, %s10
    %p212 = scmp.lt.s32.totalorder %s10, 3
    %p213 = pnand %p211, %p212
    %p214 = pneg %p213
    // Predicated region
    $region33: #{ecapa_forward.39} parent=5 // pred_check
      _
    $region34: #{ecapa_forward.39} parent=5 // pred_check_branch
      %216 = sbr.rel (%p213) target = $region36
    $region35: #{ecapa_forward.39} parent=5 // pred_region
      %s217 = ssub.s32 %s10, 1
      %p218 = scmp.lt.s32.totalorder %s19, 1
      %s219 = scalar_select %p218, %s19, 1
      %p220 = scmp.lt.s32.totalorder %s20, 0
      %s221 = scalar_select %p220, %s20, 0
      %s222 = smul.addr %s219, 2
      %s223 = sadd.s32 %s221, %s222
      %s224 = smul.addr %s223, 4
      %s225 = scalar_lea.vmem %s0, %s224
      %p226 = pneg %p50
      %p227 = pneg %p47
      %p228 = scmp.lt.s32.totalorder %s20, 0
      %s229 = scalar_select %p228, %s20, 0
      %s230 = scalar_lea.vmem %s1, %s229
      %p231 = pneg %p76
      %p232 = pneg %p73
      %p233 = scmp.lt.s32.totalorder %s20, 0
      %s234 = scalar_select %p233, %s20, 0
      %s235 = scalar_lea.vmem %s2, %s234
      %p236 = pneg %p102
      %p237 = pneg %p99
      %p238 = scmp.lt.s32.totalorder %s19, 1
      %s239 = scalar_select %p238, %s19, 1
      %p240 = scmp.lt.s32.totalorder %s20, 0
      %s241 = scalar_select %p240, %s20, 0
      %s242 = smul.addr %s239, 2
      %s243 = sadd.s32 %s241, %s242
      %s244 = smul.addr %s243, 4
      %s245 = scalar_lea.vmem %s3, %s244
      %p246 = pneg %p130
      %p247 = pneg %p127
      %p248 = pneg %p158
      %p249 = pneg %p155
      %p250 = scmp.lt.s32.totalorder %s19, 1
      %s251 = scalar_select %p250, %s19, 1
      %p252 = scmp.lt.s32.totalorder %s20, 0
      %s253 = scalar_select %p252, %s20, 0
      %s254 = sadd.s32 %s253, %s251
      %s255 = smul.addr %s254, 2
      %s256 = scalar_lea.vmem %s4, %s255
      %p257 = scmp.lt.s32.totalorder %s19, 1
      %s258 = scalar_select %p257, %s19, 1
      %p259 = scmp.lt.s32.totalorder %s20, 0
      %s260 = scalar_select %p259, %s20, 0
      %s261 = smul.addr %s258, 2
      %s262 = sadd.s32 %s260, %s261
      %s263 = smul.addr %s262, 4
      %s264 = scalar_lea.vmem %s0, %s263
      %p265 = scmp.lt.s32.totalorder %s20, 0
      %s266 = scalar_select %p265, %s20, 0
      %s267 = scalar_lea.vmem %s1, %s266
      %p268 = scmp.lt.s32.totalorder %s20, 0
      %s269 = scalar_select %p268, %s20, 0
      %s270 = scalar_lea.vmem %s2, %s269
      %p271 = scmp.lt.s32.totalorder %s19, 1
      %s272 = scalar_select %p271, %s19, 1
      %p273 = scmp.lt.s32.totalorder %s20, 0
      %s274 = scalar_select %p273, %s20, 0
      %s275 = smul.addr %s272, 2
      %s276 = sadd.s32 %s274, %s275
      %s277 = smul.addr %s276, 4
      %s278 = scalar_lea.vmem %s3, %s277
      %p279 = scmp.lt.s32.totalorder %s19, 1
      %s280 = scalar_select %p279, %s19, 1
      %p281 = scmp.lt.s32.totalorder %s20, 0
      %s282 = scalar_select %p281, %s20, 0
      %s283 = sadd.s32 %s282, %s280
      %s284 = smul.addr %s283, 2
      %s285 = scalar_lea.vmem %s4, %s284
      %v286 = vld [vmem:[%s264] sm:$0xf]
      %v287 = vld [vmem:[%s264 + $0x4] sm:$0xf]
      %v288 = vunpack.c.l.bf16 %v286
      %v289 = vunpack.c.l.bf16 %v287
      %v290 = vld [vmem:[%s267] sm:$0x1]
      %v292 = vlaneseq
      %v293 = vshrl.u32 %v292, 7
      %v294 = vsub.s32 0, %v293
      %v295 = vrot.slane %v290, %v294
      %v297 = vmul.f32 %v288, %v295
      %v298 = vmul.f32 %v289, %v295
      %v299 = vld [vmem:[%s270] sm:$0x1]
      %v301 = vlaneseq
      %v302 = vshrl.u32 %v301, 7
      %v303 = vsub.s32 0, %v302
      %v304 = vrot.slane %v299, %v303
      %v306 = vadd.f32 %v297, %v304
      %v307 = vadd.f32 %v298, %v304
      %v308 = vld [vmem:[%s278] sm:$0xf]
      %v309 = vld [vmem:[%s278 + $0x4] sm:$0xf]
      %v310 = vunpack.c.l.bf16 %v308
      %v311 = vunpack.c.l.bf16 %v309
      %vm312 = vcmask 392192
      %v313 = vsel %vm312, %v310, -inf
      %v314 = vsel %vm312, %v311, -inf
      %v315 = vmax.f32 %v313, %v314
      %v316 = vrot.slane %v315, 4
      %v317 = vmax.f32 %v315, %v316
      %v318 = vrot.slane %v317, 2
      %v319 = vmax.f32 %v317, %v318
      %v320 = vrot.slane %v319, 1
      %v321 = vmax.f32 %v319, %v320
      %v322 = vsub.f32 %v310, %v321
      %v323 = vsub.f32 %v311, %v321
      %v324 = vmul.f32 %v322, 1.442695
      %v325 = vpow.pop %v324
      %v326 = vmul.f32 %v323, 1.442695
      %v327 = vpow.pop %v326
      %v328 = vsel %vm312, %v325, 0.0
      %v329 = vsel %vm312, %v327, 0.0
      %v330 = vadd.f32 %v328, %v329
      %v331 = vrot.slane %v330, 4
      %v332 = vadd.f32 %v330, %v331
      %v333 = vrot.slane %v332, 2
      %v334 = vadd.f32 %v332, %v333
      %v335 = vrot.slane %v334, 1
      %v336 = vadd.f32 %v334, %v335
      %v337 = vrcp.pop %v336
      %v338 = vmul.f32 %v325, %v337
      %v339 = vmul.f32 %v327, %v337
      %v340 = vmul.f32 %v338, %v306
      %v341 = vmul.f32 %v339, %v307
      %v342 = vsel %vm312, %v340, 0.0
      %v343 = vsel %vm312, %v341, 0.0
      %v344 = vadd.f32 %v342, %v343
      %v345 = vrot.slane %v344, 4
      %v346 = vadd.f32 %v344, %v345
      %v347 = vrot.slane %v346, 2
      %v348 = vadd.f32 %v346, %v347
      %v349 = vrot.slane %v348, 1
      %v350 = vadd.f32 %v348, %v349
      %v351 = vsub.f32 %v306, %v350
      %v352 = vsub.f32 %v307, %v350
      %v353 = vmul.f32 %v351, %v351
      %v354 = vmul.f32 %v352, %v352
      %v355 = vmul.f32 %v338, %v353
      %v356 = vmul.f32 %v339, %v354
      %v357 = vsel %vm312, %v355, 0.0
      %v358 = vsel %vm312, %v356, 0.0
      %v359 = vadd.f32 %v357, %v358
      %v360 = vrot.slane %v359, 4
      %v361 = vadd.f32 %v359, %v360
      %v362 = vrot.slane %v361, 2
      %v363 = vadd.f32 %v361, %v362
      %v364 = vrot.slane %v363, 1
      %v365 = vadd.f32 %v363, %v364
      %v366 = vmax.f32 %v365, 1e-12
      %v367 = vrsqrt.pop %v366
      %v368 = vmul.f32 %v366, %v367
      %vm369 = vcmp.eq.f32.partialorder %v366, inf
      %v370 = vsel %vm369, %v366, %v368
      %vm371 = vcmp.eq.f32.partialorder %v366, 0.0
      %v372 = vand.u32 %v366, 2147483648
      %v373 = vsel %vm371, %v372, %v370
      %vm374 = vcmask 385024
      %375 = vst.msk [vmem:[%s285] sm:$0x1] %vm374, %v350
      %376 = vst.msk [vmem:[%s285 + $0x1] sm:$0x1] %vm374, %v373
      %p377 = scmp.lt.s32.totalorder %s19, 1
      %s378 = scalar_select %p377, %s19, 1
      %p379 = scmp.lt.s32.totalorder %s20, 0
      %s380 = scalar_select %p379, %s20, 0
      %s381 = sadd.s32 %s380, %s378
      %s382 = smul.addr %s381, 2
      %s383 = scalar_lea.vmem %s4, %s382
      // Predicated region
      $region37: #{ecapa_forward.39} parent=35 // pred_check
        %p384 = pneg %p155
      $region38: #{ecapa_forward.39} parent=35 // pred_check_branch
        %386 = sbr.rel (%p384) target = $region40
      $region39: #{ecapa_forward.39} parent=35 // pred_region
        _
      $region40: #{ecapa_forward.39} parent=35 // pred_fallthru
        _
    $region36: #{ecapa_forward.39} parent=5 // pred_fallthru
      _
    %p387 = scmp.le.s32.totalorder 2, %s10
    // Predicated region
    $region41: #{ecapa_forward.39} parent=5 // pred_check
      %p388 = pneg %p387
    $region42: #{ecapa_forward.39} parent=5 // pred_check_branch
      %390 = sbr.rel (%p388) target = $region44
    $region43: #{ecapa_forward.39} parent=5 // pred_region
      %s391 = ssub.s32 %s10, 2
      // Predicated region
      $region45: #{ecapa_forward.39} parent=43 // pred_check
        %p392 = pneg %p161
      $region46: #{ecapa_forward.39} parent=43 // pred_check_branch
        %394 = sbr.rel (%p392) target = $region48
      $region47: #{ecapa_forward.39} parent=43 // pred_region
        %p395 = scmp.lt.s32.totalorder %s21, 1
        %s396 = scalar_select %p395, %s21, 1
        %p397 = scmp.lt.s32.totalorder %s22, 0
        %s398 = scalar_select %p397, %s22, 0
        %s399 = sadd.s32 %s398, %s396
        %s400 = smul.addr %s399, 2
        %s401 = scalar_lea.vmem %s4, %s400
      $region48: #{ecapa_forward.39} parent=43 // pred_fallthru
        _
    $region44: #{ecapa_forward.39} parent=5 // pred_fallthru
      _
  $region6: #{ecapa_forward.39} parent=0 // loop_footer
    %s14 = sadd.s32 1, %s10
  $region7: #{ecapa_forward.39} parent=0 // loop_footer_branch
    %9 = sbr.rel target = $region3
  $region8: #{ecapa_forward.39} parent=0 // loop_exit
    _

</llo_original>
